<compile_context>
chip_gen: v7x
topology: tpu7x:2x2x1
jax: 0.10.0
libtpu: 0.0.40
codegen_flags: <defaults>
</compile_context>

<pallas_src>
import functools

import jax
import jax.numpy as jnp
from jax.experimental import pallas as pl
from jax.experimental.pallas import tpu as pltpu

KSIZE = 7
PAD = KSIZE // 2
# Interior offsets inside the padded scratch canvases: one full sublane tile /
# lane tile so the interior store starts at an aligned offset.
SUB_OFF = 8
LANE_OFF = 128


def _round_up(v, m):
    return -(-v // m) * m


def _spatial_attention_kernel(w_ref, x_ref, o_ref,
                              sum_sc, max_sc, avg_canvas, max_canvas,
                              *, C, H, W):
    # w_ref : SMEM (2*7*7,) f32, flattened conv weight, index = c*49 + di*7 + dj
    # x_ref : VMEM (1, ct, H, W) in the input dtype — channel tile of one batch
    # o_ref : VMEM (1, 1, H, W)
    # sum_sc/max_sc        : VMEM (H, W) f32 running channel sum / max
    # avg_canvas/max_canvas: VMEM (H+2*SUB_OFF, W+2*LANE_OFF) f32 padded maps
    c_idx = pl.program_id(1)
    n_cblk = pl.num_programs(1)

    x = x_ref[0].astype(jnp.float32)                       # (ct, H, W)

    @pl.when(c_idx == 0)
    def _init():
        sum_sc[...] = jnp.zeros_like(sum_sc)
        max_sc[...] = jnp.full_like(max_sc, -jnp.inf)

    sum_sc[...] = sum_sc[...] + jnp.sum(x, axis=0)
    max_sc[...] = jnp.maximum(max_sc[...], jnp.max(x, axis=0))

    @pl.when(c_idx == n_cblk - 1)
    def _finalize():
        # Zero-padded canvases; interior placed at the aligned
        # (SUB_OFF, LANE_OFF) offset so the interior stores are tile-aligned.
        avg_canvas[...] = jnp.zeros_like(avg_canvas)
        max_canvas[...] = jnp.zeros_like(max_canvas)
        avg_canvas[SUB_OFF:SUB_OFF + H, LANE_OFF:LANE_OFF + W] = (
            sum_sc[...] * (1.0 / C))
        max_canvas[SUB_OFF:SUB_OFF + H, LANE_OFF:LANE_OFF + W] = max_sc[...]

        # 7x7 "same" cross-correlation over the 2-channel (avg, max) map, then
        # sigmoid.  Lane shift hoisted: one lane-offset column slab per
        # (map, dj); the inner di loop uses only sublane-offset value slices.
        acc = jnp.zeros((H, W), jnp.float32)
        for ci, canvas in enumerate((avg_canvas, max_canvas)):
            for dj in range(KSIZE):
                col = canvas[:, pl.ds(LANE_OFF - PAD + dj, W)]  # (H+2*SUB_OFF, W)
                for di in range(KSIZE):
                    wv = w_ref[ci * KSIZE * KSIZE + di * KSIZE + dj]
                    r0 = SUB_OFF - PAD + di
                    acc = acc + wv * col[r0:r0 + H, :]

        o_ref[0, 0, :, :] = jax.nn.sigmoid(acc).astype(o_ref.dtype)


def _padded_plane_bytes(H, W, itemsize):
    """VMEM bytes of one (H, W) plane after (8, 128) tile padding."""
    return _round_up(H, 8) * _round_up(W, 128) * itemsize


def _choose_c_tile(C, H, W, itemsize, block_budget_bytes=4 << 20):
    """Largest divisor of C whose padded (1, ct, H, W) block fits the budget."""
    plane = _padded_plane_bytes(H, W, itemsize)
    ct = 1
    for d in range(1, C + 1):
        if C % d == 0 and d * plane <= block_budget_bytes:
            ct = d
    return ct


def spatial_attention(x, weight):
    """x: (N, C, H, W); weight: (1, 2, 7, 7) (PyTorch OIHW, bias=False)."""
    N, C, H, W = x.shape
    itemsize = jnp.dtype(x.dtype).itemsize
    w_flat = weight.reshape(-1).astype(jnp.float32)        # order: (c, di, dj)

    ct = _choose_c_tile(C, H, W, itemsize)
    grid = (N, C // ct)

    kernel = functools.partial(_spatial_attention_kernel, C=C, H=H, W=W)

    canvas_shape = (H + 2 * SUB_OFF, W + 2 * LANE_OFF)

    # VMEM budget in *padded* bytes: double-buffered input + double-buffered
    # output + f32 scratch planes + padded canvases + margin.
    in_blk = ct * _padded_plane_bytes(H, W, itemsize)
    out_blk = _padded_plane_bytes(H, W, itemsize)
    f32_plane = _padded_plane_bytes(H, W, 4)
    canvas_bytes = _padded_plane_bytes(canvas_shape[0], canvas_shape[1], 4)
    est = 2 * in_blk + 2 * out_blk + 2 * f32_plane + 2 * canvas_bytes + (2 << 20)
    vmem_limit = int(min(48 << 20, max(16 << 20, est)))

    grid_spec = pltpu.PrefetchScalarGridSpec(
        num_scalar_prefetch=0,
        grid=grid,
        in_specs=[
            pl.BlockSpec(memory_space=pltpu.MemorySpace.SMEM),        # weights
            pl.BlockSpec((1, ct, H, W), lambda n, c: (n, c, 0, 0)),   # x tile
        ],
        out_specs=pl.BlockSpec((1, 1, H, W), lambda n, c: (n, 0, 0, 0)),
        scratch_shapes=[
            pltpu.VMEM((H, W), jnp.float32),        # running channel sum
            pltpu.VMEM((H, W), jnp.float32),        # running channel max
            pltpu.VMEM(canvas_shape, jnp.float32),  # zero-padded avg map
            pltpu.VMEM(canvas_shape, jnp.float32),  # zero-padded max map
        ],
    )

    return pl.pallas_call(
        kernel,
        out_shape=jax.ShapeDtypeStruct((N, 1, H, W), x.dtype),
        grid_spec=grid_spec,
        compiler_params=pltpu.CompilerParams(
            dimension_semantics=("parallel", "arbitrary"),
            vmem_limit_bytes=vmem_limit),
    )(w_flat, x)


def spatial_attention_ref(x, weight):
    xf = x.astype(jnp.float32)
    avg = jnp.mean(xf, axis=1, keepdims=True)
    mx = jnp.max(xf, axis=1, keepdims=True)
    cat = jnp.concatenate([avg, mx], axis=1)
    y = jax.lax.conv_general_dilated(
        cat, weight.astype(jnp.float32), window_strides=(1, 1),
        padding=[(PAD, PAD), (PAD, PAD)],
        dimension_numbers=("NCHW", "OIHW", "NCHW"))
    return jax.nn.sigmoid(y).astype(x.dtype)


if __name__ == "__main__":
    key = jax.random.PRNGKey(0)
    kx, kw = jax.random.split(key)

    N, C, H, W = 2, 4, 16, 16
    x = jax.random.normal(kx, (N, C, H, W), dtype=jnp.float32)
    # Matches nn.Conv2d(2, 1, 7, padding=3, bias=False) weight shape.
    weight = jax.random.normal(kw, (1, 2, KSIZE, KSIZE), dtype=jnp.float32) * 0.1

    out = jax.block_until_ready(spatial_attention(x, weight))

    ref = spatial_attention_ref(x, weight)
    assert out.shape == (N, 1, H, W)
    assert jnp.allclose(out, ref, atol=2e-5, rtol=2e-5), "mismatch vs reference"

    print("KERNEL_OK")
</pallas_src>

<mosaic_0001>
module attributes {stable_mosaic.version = 11 : i64} {
  func.func @_spatial_attention_kernel(%arg0: i32, %arg1: i32, %arg2: memref<98xf32, #tpu.memory_space<smem>>, %arg3: memref<1x4x16x16xf32, #tpu.memory_space<vmem>>, %arg4: memref<1x1x16x16xf32, #tpu.memory_space<vmem>>, %arg5: memref<16x16xf32, #tpu.memory_space<vmem>>, %arg6: memref<16x16xf32, #tpu.memory_space<vmem>>, %arg7: memref<32x272xf32, #tpu.memory_space<vmem>>, %arg8: memref<32x272xf32, #tpu.memory_space<vmem>>) attributes {dimension_semantics = [#tpu.dimension_semantics<parallel>, #tpu.dimension_semantics<arbitrary>], iteration_bounds = array<i64: 2, 1>, scalar_prefetch = 0 : i64, scratch_operands = 4 : i64, tpu.core_type = #tpu.core_type<tc>, window_params = [{transform_indices = @transform_0, window_bounds = array<i64: 98>}, {transform_indices = @transform_1, window_bounds = array<i64: 1, 4, 16, 16>}, {transform_indices = @transform_2, window_bounds = array<i64: 1, 1, 16, 16>}]} {
    %c0 = arith.constant 0 : index
    %c0_0 = arith.constant 0 : index
    %c0_1 = arith.constant 0 : index
    %c0_2 = arith.constant 0 : index
    %0 = vector.load %arg3[%c0, %c0_0, %c0_1, %c0_2] : memref<1x4x16x16xf32, #tpu.memory_space<vmem>>, vector<1x4x16x16xf32>
    %1 = vector.shape_cast %0 : vector<1x4x16x16xf32> to vector<4x16x16xf32>
    %c0_i32 = arith.constant 0 : i32
    %2 = arith.cmpi eq, %arg1, %c0_i32 : i32
    %3 = arith.extui %2 : i1 to i32
    %c0_i32_3 = arith.constant 0 : i32
    %4 = arith.cmpi ne, %3, %c0_i32_3 : i32
    scf.if %4 {
      %cst_15 = arith.constant 0.000000e+00 : f32
      %16 = vector.broadcast %cst_15 : f32 to vector<16x16xf32>
      %c0_16 = arith.constant 0 : index
      %c0_17 = arith.constant 0 : index
      %17 = vector.load %arg5[%c0_16, %c0_17] : memref<16x16xf32, #tpu.memory_space<vmem>>, vector<16x16xf32>
      tpu.vector_store %arg5[%c0_16, %c0_17], %16 {strides = array<i32>} : memref<16x16xf32, #tpu.memory_space<vmem>>, vector<16x16xf32>,
      %cst_18 = arith.constant 0xFF800000 : f32
      %18 = vector.broadcast %cst_18 : f32 to vector<16x16xf32>
      %c0_19 = arith.constant 0 : index
      %c0_20 = arith.constant 0 : index
      %19 = vector.load %arg6[%c0_19, %c0_20] : memref<16x16xf32, #tpu.memory_space<vmem>>, vector<16x16xf32>
      tpu.vector_store %arg6[%c0_19, %c0_20], %18 {strides = array<i32>} : memref<16x16xf32, #tpu.memory_space<vmem>>, vector<16x16xf32>,
    } else {
    }
    %c0_4 = arith.constant 0 : index
    %c0_5 = arith.constant 0 : index
    %5 = vector.load %arg5[%c0_4, %c0_5] : memref<16x16xf32, #tpu.memory_space<vmem>>, vector<16x16xf32>
    %cst = arith.constant dense<0.000000e+00> : vector<16x16xf32>
    %6 = vector.multi_reduction <add>, %1, %cst [0] : vector<4x16x16xf32> to vector<16x16xf32>
    %7 = arith.addf %5, %6 : vector<16x16xf32>
    %c0_6 = arith.constant 0 : index
    %c0_7 = arith.constant 0 : index
    %8 = vector.load %arg5[%c0_6, %c0_7] : memref<16x16xf32, #tpu.memory_space<vmem>>, vector<16x16xf32>
    tpu.vector_store %arg5[%c0_6, %c0_7], %7 {strides = array<i32>} : memref<16x16xf32, #tpu.memory_space<vmem>>, vector<16x16xf32>,
    %c0_8 = arith.constant 0 : index
    %c0_9 = arith.constant 0 : index
    %9 = vector.load %arg6[%c0_8, %c0_9] : memref<16x16xf32, #tpu.memory_space<vmem>>, vector<16x16xf32>
    %cst_10 = arith.constant dense<0xFF800000> : vector<16x16xf32>
    %10 = vector.multi_reduction <maximumf>, %1, %cst_10 [0] : vector<4x16x16xf32> to vector<16x16xf32>
    %11 = arith.maximumf %9, %10 : vector<16x16xf32>
    %c0_11 = arith.constant 0 : index
    %c0_12 = arith.constant 0 : index
    %12 = vector.load %arg6[%c0_11, %c0_12] : memref<16x16xf32, #tpu.memory_space<vmem>>, vector<16x16xf32>
    tpu.vector_store %arg6[%c0_11, %c0_12], %11 {strides = array<i32>} : memref<16x16xf32, #tpu.memory_space<vmem>>, vector<16x16xf32>,
    %c0_i32_13 = arith.constant 0 : i32
    %13 = arith.cmpi eq, %arg1, %c0_i32_13 : i32
    %14 = arith.extui %13 : i1 to i32
    %c0_i32_14 = arith.constant 0 : i32
    %15 = arith.cmpi ne, %14, %c0_i32_14 : i32
    scf.if %15 {
      %cst_15 = arith.constant 0.000000e+00 : f32
      %16 = vector.broadcast %cst_15 : f32 to vector<32x272xf32>
      %c0_16 = arith.constant 0 : index
      %c0_17 = arith.constant 0 : index
      %17 = vector.load %arg7[%c0_16, %c0_17] : memref<32x272xf32, #tpu.memory_space<vmem>>, vector<32x272xf32>
      tpu.vector_store %arg7[%c0_16, %c0_17], %16 {strides = array<i32>} : memref<32x272xf32, #tpu.memory_space<vmem>>, vector<32x272xf32>,
      %cst_18 = arith.constant 0.000000e+00 : f32
      %18 = vector.broadcast %cst_18 : f32 to vector<32x272xf32>
      %c0_19 = arith.constant 0 : index
      %c0_20 = arith.constant 0 : index
      %19 = vector.load %arg8[%c0_19, %c0_20] : memref<32x272xf32, #tpu.memory_space<vmem>>, vector<32x272xf32>
      tpu.vector_store %arg8[%c0_19, %c0_20], %18 {strides = array<i32>} : memref<32x272xf32, #tpu.memory_space<vmem>>, vector<32x272xf32>,
      %c0_21 = arith.constant 0 : index
      %c0_22 = arith.constant 0 : index
      %20 = vector.load %arg5[%c0_21, %c0_22] : memref<16x16xf32, #tpu.memory_space<vmem>>, vector<16x16xf32>
      %cst_23 = arith.constant 2.500000e-01 : f32
      %21 = vector.broadcast %cst_23 : f32 to vector<16x16xf32>
      %22 = arith.mulf %20, %21 : vector<16x16xf32>
      %c8 = arith.constant 8 : index
      %c128 = arith.constant 128 : index
      %23 = vector.load %arg7[%c8, %c128] : memref<32x272xf32, #tpu.memory_space<vmem>>, vector<16x16xf32>
      tpu.vector_store %arg7[%c8, %c128], %22 {strides = array<i32>} : memref<32x272xf32, #tpu.memory_space<vmem>>, vector<16x16xf32>,
      %c0_24 = arith.constant 0 : index
      %c0_25 = arith.constant 0 : index
      %24 = vector.load %arg6[%c0_24, %c0_25] : memref<16x16xf32, #tpu.memory_space<vmem>>, vector<16x16xf32>
      %c8_26 = arith.constant 8 : index
      %c128_27 = arith.constant 128 : index
      %25 = vector.load %arg8[%c8_26, %c128_27] : memref<32x272xf32, #tpu.memory_space<vmem>>, vector<16x16xf32>
      tpu.vector_store %arg8[%c8_26, %c128_27], %24 {strides = array<i32>} : memref<32x272xf32, #tpu.memory_space<vmem>>, vector<16x16xf32>,
      %cst_28 = arith.constant 0.000000e+00 : f32
      %26 = vector.broadcast %cst_28 : f32 to vector<16x16xf32>
      %c0_29 = arith.constant 0 : index
      %c125 = arith.constant 125 : index
      %27 = vector.load %arg7[%c0_29, %c125] : memref<32x272xf32, #tpu.memory_space<vmem>>, vector<32x16xf32>
      %c0_30 = arith.constant 0 : index
      %28 = memref.load %arg2[%c0_30] : memref<98xf32, #tpu.memory_space<smem>>
      %29 = vector.extract_strided_slice %27 {offsets = [5, 0], sizes = [16, 16], strides = [1, 1]} : vector<32x16xf32> to vector<16x16xf32>
      %30 = vector.broadcast %28 : f32 to vector<16x16xf32>
      %31 = arith.mulf %30, %29 : vector<16x16xf32>
      %32 = arith.addf %26, %31 : vector<16x16xf32>
      %c7 = arith.constant 7 : index
      %33 = memref.load %arg2[%c7] : memref<98xf32, #tpu.memory_space<smem>>
      %34 = vector.extract_strided_slice %27 {offsets = [6, 0], sizes = [16, 16], strides = [1, 1]} : vector<32x16xf32> to vector<16x16xf32>
      %35 = vector.broadcast %33 : f32 to vector<16x16xf32>
      %36 = arith.mulf %35, %34 : vector<16x16xf32>
      %37 = arith.addf %32, %36 : vector<16x16xf32>
      %c14 = arith.constant 14 : index
      %38 = memref.load %arg2[%c14] : memref<98xf32, #tpu.memory_space<smem>>
      %39 = vector.extract_strided_slice %27 {offsets = [7, 0], sizes = [16, 16], strides = [1, 1]} : vector<32x16xf32> to vector<16x16xf32>
      %40 = vector.broadcast %38 : f32 to vector<16x16xf32>
      %41 = arith.mulf %40, %39 : vector<16x16xf32>
      %42 = arith.addf %37, %41 : vector<16x16xf32>
      %c21 = arith.constant 21 : index
      %43 = memref.load %arg2[%c21] : memref<98xf32, #tpu.memory_space<smem>>
      %44 = vector.extract_strided_slice %27 {offsets = [8, 0], sizes = [16, 16], strides = [1, 1]} : vector<32x16xf32> to vector<16x16xf32>
      %45 = vector.broadcast %43 : f32 to vector<16x16xf32>
      %46 = arith.mulf %45, %44 : vector<16x16xf32>
      %47 = arith.addf %42, %46 : vector<16x16xf32>
      %c28 = arith.constant 28 : index
      %48 = memref.load %arg2[%c28] : memref<98xf32, #tpu.memory_space<smem>>
      %49 = vector.extract_strided_slice %27 {offsets = [9, 0], sizes = [16, 16], strides = [1, 1]} : vector<32x16xf32> to vector<16x16xf32>
      %50 = vector.broadcast %48 : f32 to vector<16x16xf32>
      %51 = arith.mulf %50, %49 : vector<16x16xf32>
      %52 = arith.addf %47, %51 : vector<16x16xf32>
      %c35 = arith.constant 35 : index
      %53 = memref.load %arg2[%c35] : memref<98xf32, #tpu.memory_space<smem>>
      %54 = vector.extract_strided_slice %27 {offsets = [10, 0], sizes = [16, 16], strides = [1, 1]} : vector<32x16xf32> to vector<16x16xf32>
      %55 = vector.broadcast %53 : f32 to vector<16x16xf32>
      %56 = arith.mulf %55, %54 : vector<16x16xf32>
      %57 = arith.addf %52, %56 : vector<16x16xf32>
      %c42 = arith.constant 42 : index
      %58 = memref.load %arg2[%c42] : memref<98xf32, #tpu.memory_space<smem>>
      %59 = vector.extract_strided_slice %27 {offsets = [11, 0], sizes = [16, 16], strides = [1, 1]} : vector<32x16xf32> to vector<16x16xf32>
      %60 = vector.broadcast %58 : f32 to vector<16x16xf32>
      %61 = arith.mulf %60, %59 : vector<16x16xf32>
      %62 = arith.addf %57, %61 : vector<16x16xf32>
      %c0_31 = arith.constant 0 : index
      %c126 = arith.constant 126 : index
      %63 = vector.load %arg7[%c0_31, %c126] : memref<32x272xf32, #tpu.memory_space<vmem>>, vector<32x16xf32>
      %c1 = arith.constant 1 : index
      %64 = memref.load %arg2[%c1] : memref<98xf32, #tpu.memory_space<smem>>
      %65 = vector.extract_strided_slice %63 {offsets = [5, 0], sizes = [16, 16], strides = [1, 1]} : vector<32x16xf32> to vector<16x16xf32>
      %66 = vector.broadcast %64 : f32 to vector<16x16xf32>
      %67 = arith.mulf %66, %65 : vector<16x16xf32>
      %68 = arith.addf %62, %67 : vector<16x16xf32>
      %c8_32 = arith.constant 8 : index
      %69 = memref.load %arg2[%c8_32] : memref<98xf32, #tpu.memory_space<smem>>
      %70 = vector.extract_strided_slice %63 {offsets = [6, 0], sizes = [16, 16], strides = [1, 1]} : vector<32x16xf32> to vector<16x16xf32>
      %71 = vector.broadcast %69 : f32 to vector<16x16xf32>
      %72 = arith.mulf %71, %70 : vector<16x16xf32>
      %73 = arith.addf %68, %72 : vector<16x16xf32>
      %c15 = arith.constant 15 : index
      %74 = memref.load %arg2[%c15] : memref<98xf32, #tpu.memory_space<smem>>
      %75 = vector.extract_strided_slice %63 {offsets = [7, 0], sizes = [16, 16], strides = [1, 1]} : vector<32x16xf32> to vector<16x16xf32>
      %76 = vector.broadcast %74 : f32 to vector<16x16xf32>
      %77 = arith.mulf %76, %75 : vector<16x16xf32>
      %78 = arith.addf %73, %77 : vector<16x16xf32>
      %c22 = arith.constant 22 : index
      %79 = memref.load %arg2[%c22] : memref<98xf32, #tpu.memory_space<smem>>
      %80 = vector.extract_strided_slice %63 {offsets = [8, 0], sizes = [16, 16], strides = [1, 1]} : vector<32x16xf32> to vector<16x16xf32>
      %81 = vector.broadcast %79 : f32 to vector<16x16xf32>
      %82 = arith.mulf %81, %80 : vector<16x16xf32>
      %83 = arith.addf %78, %82 : vector<16x16xf32>
      %c29 = arith.constant 29 : index
      %84 = memref.load %arg2[%c29] : memref<98xf32, #tpu.memory_space<smem>>
      %85 = vector.extract_strided_slice %63 {offsets = [9, 0], sizes = [16, 16], strides = [1, 1]} : vector<32x16xf32> to vector<16x16xf32>
      %86 = vector.broadcast %84 : f32 to vector<16x16xf32>
      %87 = arith.mulf %86, %85 : vector<16x16xf32>
      %88 = arith.addf %83, %87 : vector<16x16xf32>
      %c36 = arith.constant 36 : index
      %89 = memref.load %arg2[%c36] : memref<98xf32, #tpu.memory_space<smem>>
      %90 = vector.extract_strided_slice %63 {offsets = [10, 0], sizes = [16, 16], strides = [1, 1]} : vector<32x16xf32> to vector<16x16xf32>
      %91 = vector.broadcast %89 : f32 to vector<16x16xf32>
      %92 = arith.mulf %91, %90 : vector<16x16xf32>
      %93 = arith.addf %88, %92 : vector<16x16xf32>
      %c43 = arith.constant 43 : index
      %94 = memref.load %arg2[%c43] : memref<98xf32, #tpu.memory_space<smem>>
      %95 = vector.extract_strided_slice %63 {offsets = [11, 0], sizes = [16, 16], strides = [1, 1]} : vector<32x16xf32> to vector<16x16xf32>
      %96 = vector.broadcast %94 : f32 to vector<16x16xf32>
      %97 = arith.mulf %96, %95 : vector<16x16xf32>
      %98 = arith.addf %93, %97 : vector<16x16xf32>
      %c0_33 = arith.constant 0 : index
      %c127 = arith.constant 127 : index
      %99 = vector.load %arg7[%c0_33, %c127] : memref<32x272xf32, #tpu.memory_space<vmem>>, vector<32x16xf32>
      %c2 = arith.constant 2 : index
      %100 = memref.load %arg2[%c2] : memref<98xf32, #tpu.memory_space<smem>>
      %101 = vector.extract_strided_slice %99 {offsets = [5, 0], sizes = [16, 16], strides = [1, 1]} : vector<32x16xf32> to vector<16x16xf32>
      %102 = vector.broadcast %100 : f32 to vector<16x16xf32>
      %103 = arith.mulf %102, %101 : vector<16x16xf32>
      %104 = arith.addf %98, %103 : vector<16x16xf32>
      %c9 = arith.constant 9 : index
      %105 = memref.load %arg2[%c9] : memref<98xf32, #tpu.memory_space<smem>>
      %106 = vector.extract_strided_slice %99 {offsets = [6, 0], sizes = [16, 16], strides = [1, 1]} : vector<32x16xf32> to vector<16x16xf32>
      %107 = vector.broadcast %105 : f32 to vector<16x16xf32>
      %108 = arith.mulf %107, %106 : vector<16x16xf32>
      %109 = arith.addf %104, %108 : vector<16x16xf32>
      %c16 = arith.constant 16 : index
      %110 = memref.load %arg2[%c16] : memref<98xf32, #tpu.memory_space<smem>>
      %111 = vector.extract_strided_slice %99 {offsets = [7, 0], sizes = [16, 16], strides = [1, 1]} : vector<32x16xf32> to vector<16x16xf32>
      %112 = vector.broadcast %110 : f32 to vector<16x16xf32>
      %113 = arith.mulf %112, %111 : vector<16x16xf32>
      %114 = arith.addf %109, %113 : vector<16x16xf32>
      %c23 = arith.constant 23 : index
      %115 = memref.load %arg2[%c23] : memref<98xf32, #tpu.memory_space<smem>>
      %116 = vector.extract_strided_slice %99 {offsets = [8, 0], sizes = [16, 16], strides = [1, 1]} : vector<32x16xf32> to vector<16x16xf32>
      %117 = vector.broadcast %115 : f32 to vector<16x16xf32>
      %118 = arith.mulf %117, %116 : vector<16x16xf32>
      %119 = arith.addf %114, %118 : vector<16x16xf32>
      %c30 = arith.constant 30 : index
      %120 = memref.load %arg2[%c30] : memref<98xf32, #tpu.memory_space<smem>>
      %121 = vector.extract_strided_slice %99 {offsets = [9, 0], sizes = [16, 16], strides = [1, 1]} : vector<32x16xf32> to vector<16x16xf32>
      %122 = vector.broadcast %120 : f32 to vector<16x16xf32>
      %123 = arith.mulf %122, %121 : vector<16x16xf32>
      %124 = arith.addf %119, %123 : vector<16x16xf32>
      %c37 = arith.constant 37 : index
      %125 = memref.load %arg2[%c37] : memref<98xf32, #tpu.memory_space<smem>>
      %126 = vector.extract_strided_slice %99 {offsets = [10, 0], sizes = [16, 16], strides = [1, 1]} : vector<32x16xf32> to vector<16x16xf32>
      %127 = vector.broadcast %125 : f32 to vector<16x16xf32>
      %128 = arith.mulf %127, %126 : vector<16x16xf32>
      %129 = arith.addf %124, %128 : vector<16x16xf32>
      %c44 = arith.constant 44 : index
      %130 = memref.load %arg2[%c44] : memref<98xf32, #tpu.memory_space<smem>>
      %131 = vector.extract_strided_slice %99 {offsets = [11, 0], sizes = [16, 16], strides = [1, 1]} : vector<32x16xf32> to vector<16x16xf32>
      %132 = vector.broadcast %130 : f32 to vector<16x16xf32>
      %133 = arith.mulf %132, %131 : vector<16x16xf32>
      %134 = arith.addf %129, %133 : vector<16x16xf32>
      %c0_34 = arith.constant 0 : index
      %c128_35 = arith.constant 128 : index
      %135 = vector.load %arg7[%c0_34, %c128_35] : memref<32x272xf32, #tpu.memory_space<vmem>>, vector<32x16xf32>
      %c3 = arith.constant 3 : index
      %136 = memref.load %arg2[%c3] : memref<98xf32, #tpu.memory_space<smem>>
      %137 = vector.extract_strided_slice %135 {offsets = [5, 0], sizes = [16, 16], strides = [1, 1]} : vector<32x16xf32> to vector<16x16xf32>
      %138 = vector.broadcast %136 : f32 to vector<16x16xf32>
      %139 = arith.mulf %138, %137 : vector<16x16xf32>
      %140 = arith.addf %134, %139 : vector<16x16xf32>
      %c10 = arith.constant 10 : index
      %141 = memref.load %arg2[%c10] : memref<98xf32, #tpu.memory_space<smem>>
      %142 = vector.extract_strided_slice %135 {offsets = [6, 0], sizes = [16, 16], strides = [1, 1]} : vector<32x16xf32> to vector<16x16xf32>
      %143 = vector.broadcast %141 : f32 to vector<16x16xf32>
      %144 = arith.mulf %143, %142 : vector<16x16xf32>
      %145 = arith.addf %140, %144 : vector<16x16xf32>
      %c17 = arith.constant 17 : index
      %146 = memref.load %arg2[%c17] : memref<98xf32, #tpu.memory_space<smem>>
      %147 = vector.extract_strided_slice %135 {offsets = [7, 0], sizes = [16, 16], strides = [1, 1]} : vector<32x16xf32> to vector<16x16xf32>
      %148 = vector.broadcast %146 : f32 to vector<16x16xf32>
      %149 = arith.mulf %148, %147 : vector<16x16xf32>
      %150 = arith.addf %145, %149 : vector<16x16xf32>
      %c24 = arith.constant 24 : index
      %151 = memref.load %arg2[%c24] : memref<98xf32, #tpu.memory_space<smem>>
      %152 = vector.extract_strided_slice %135 {offsets = [8, 0], sizes = [16, 16], strides = [1, 1]} : vector<32x16xf32> to vector<16x16xf32>
      %153 = vector.broadcast %151 : f32 to vector<16x16xf32>
      %154 = arith.mulf %153, %152 : vector<16x16xf32>
      %155 = arith.addf %150, %154 : vector<16x16xf32>
      %c31 = arith.constant 31 : index
      %156 = memref.load %arg2[%c31] : memref<98xf32, #tpu.memory_space<smem>>
      %157 = vector.extract_strided_slice %135 {offsets = [9, 0], sizes = [16, 16], strides = [1, 1]} : vector<32x16xf32> to vector<16x16xf32>
      %158 = vector.broadcast %156 : f32 to vector<16x16xf32>
      %159 = arith.mulf %158, %157 : vector<16x16xf32>
      %160 = arith.addf %155, %159 : vector<16x16xf32>
      %c38 = arith.constant 38 : index
      %161 = memref.load %arg2[%c38] : memref<98xf32, #tpu.memory_space<smem>>
      %162 = vector.extract_strided_slice %135 {offsets = [10, 0], sizes = [16, 16], strides = [1, 1]} : vector<32x16xf32> to vector<16x16xf32>
      %163 = vector.broadcast %161 : f32 to vector<16x16xf32>
      %164 = arith.mulf %163, %162 : vector<16x16xf32>
      %165 = arith.addf %160, %164 : vector<16x16xf32>
      %c45 = arith.constant 45 : index
      %166 = memref.load %arg2[%c45] : memref<98xf32, #tpu.memory_space<smem>>
      %167 = vector.extract_strided_slice %135 {offsets = [11, 0], sizes = [16, 16], strides = [1, 1]} : vector<32x16xf32> to vector<16x16xf32>
      %168 = vector.broadcast %166 : f32 to vector<16x16xf32>
      %169 = arith.mulf %168, %167 : vector<16x16xf32>
      %170 = arith.addf %165, %169 : vector<16x16xf32>
      %c0_36 = arith.constant 0 : index
      %c129 = arith.constant 129 : index
      %171 = vector.load %arg7[%c0_36, %c129] : memref<32x272xf32, #tpu.memory_space<vmem>>, vector<32x16xf32>
      %c4 = arith.constant 4 : index
      %172 = memref.load %arg2[%c4] : memref<98xf32, #tpu.memory_space<smem>>
      %173 = vector.extract_strided_slice %171 {offsets = [5, 0], sizes = [16, 16], strides = [1, 1]} : vector<32x16xf32> to vector<16x16xf32>
      %174 = vector.broadcast %172 : f32 to vector<16x16xf32>
      %175 = arith.mulf %174, %173 : vector<16x16xf32>
      %176 = arith.addf %170, %175 : vector<16x16xf32>
      %c11 = arith.constant 11 : index
      %177 = memref.load %arg2[%c11] : memref<98xf32, #tpu.memory_space<smem>>
      %178 = vector.extract_strided_slice %171 {offsets = [6, 0], sizes = [16, 16], strides = [1, 1]} : vector<32x16xf32> to vector<16x16xf32>
      %179 = vector.broadcast %177 : f32 to vector<16x16xf32>
      %180 = arith.mulf %179, %178 : vector<16x16xf32>
      %181 = arith.addf %176, %180 : vector<16x16xf32>
      %c18 = arith.constant 18 : index
      %182 = memref.load %arg2[%c18] : memref<98xf32, #tpu.memory_space<smem>>
      %183 = vector.extract_strided_slice %171 {offsets = [7, 0], sizes = [16, 16], strides = [1, 1]} : vector<32x16xf32> to vector<16x16xf32>
      %184 = vector.broadcast %182 : f32 to vector<16x16xf32>
      %185 = arith.mulf %184, %183 : vector<16x16xf32>
      %186 = arith.addf %181, %185 : vector<16x16xf32>
      %c25 = arith.constant 25 : index
      %187 = memref.load %arg2[%c25] : memref<98xf32, #tpu.memory_space<smem>>
      %188 = vector.extract_strided_slice %171 {offsets = [8, 0], sizes = [16, 16], strides = [1, 1]} : vector<32x16xf32> to vector<16x16xf32>
      %189 = vector.broadcast %187 : f32 to vector<16x16xf32>
      %190 = arith.mulf %189, %188 : vector<16x16xf32>
      %191 = arith.addf %186, %190 : vector<16x16xf32>
      %c32 = arith.constant 32 : index
      %192 = memref.load %arg2[%c32] : memref<98xf32, #tpu.memory_space<smem>>
      %193 = vector.extract_strided_slice %171 {offsets = [9, 0], sizes = [16, 16], strides = [1, 1]} : vector<32x16xf32> to vector<16x16xf32>
      %194 = vector.broadcast %192 : f32 to vector<16x16xf32>
      %195 = arith.mulf %194, %193 : vector<16x16xf32>
      %196 = arith.addf %191, %195 : vector<16x16xf32>
      %c39 = arith.constant 39 : index
      %197 = memref.load %arg2[%c39] : memref<98xf32, #tpu.memory_space<smem>>
      %198 = vector.extract_strided_slice %171 {offsets = [10, 0], sizes = [16, 16], strides = [1, 1]} : vector<32x16xf32> to vector<16x16xf32>
      %199 = vector.broadcast %197 : f32 to vector<16x16xf32>
      %200 = arith.mulf %199, %198 : vector<16x16xf32>
      %201 = arith.addf %196, %200 : vector<16x16xf32>
      %c46 = arith.constant 46 : index
      %202 = memref.load %arg2[%c46] : memref<98xf32, #tpu.memory_space<smem>>
      %203 = vector.extract_strided_slice %171 {offsets = [11, 0], sizes = [16, 16], strides = [1, 1]} : vector<32x16xf32> to vector<16x16xf32>
      %204 = vector.broadcast %202 : f32 to vector<16x16xf32>
      %205 = arith.mulf %204, %203 : vector<16x16xf32>
      %206 = arith.addf %201, %205 : vector<16x16xf32>
      %c0_37 = arith.constant 0 : index
      %c130 = arith.constant 130 : index
      %207 = vector.load %arg7[%c0_37, %c130] : memref<32x272xf32, #tpu.memory_space<vmem>>, vector<32x16xf32>
      %c5 = arith.constant 5 : index
      %208 = memref.load %arg2[%c5] : memref<98xf32, #tpu.memory_space<smem>>
      %209 = vector.extract_strided_slice %207 {offsets = [5, 0], sizes = [16, 16], strides = [1, 1]} : vector<32x16xf32> to vector<16x16xf32>
      %210 = vector.broadcast %208 : f32 to vector<16x16xf32>
      %211 = arith.mulf %210, %209 : vector<16x16xf32>
      %212 = arith.addf %206, %211 : vector<16x16xf32>
      %c12 = arith.constant 12 : index
      %213 = memref.load %arg2[%c12] : memref<98xf32, #tpu.memory_space<smem>>
      %214 = vector.extract_strided_slice %207 {offsets = [6, 0], sizes = [16, 16], strides = [1, 1]} : vector<32x16xf32> to vector<16x16xf32>
      %215 = vector.broadcast %213 : f32 to vector<16x16xf32>
      %216 = arith.mulf %215, %214 : vector<16x16xf32>
      %217 = arith.addf %212, %216 : vector<16x16xf32>
      %c19 = arith.constant 19 : index
      %218 = memref.load %arg2[%c19] : memref<98xf32, #tpu.memory_space<smem>>
      %219 = vector.extract_strided_slice %207 {offsets = [7, 0], sizes = [16, 16], strides = [1, 1]} : vector<32x16xf32> to vector<16x16xf32>
      %220 = vector.broadcast %218 : f32 to vector<16x16xf32>
      %221 = arith.mulf %220, %219 : vector<16x16xf32>
      %222 = arith.addf %217, %221 : vector<16x16xf32>
      %c26 = arith.constant 26 : index
      %223 = memref.load %arg2[%c26] : memref<98xf32, #tpu.memory_space<smem>>
      %224 = vector.extract_strided_slice %207 {offsets = [8, 0], sizes = [16, 16], strides = [1, 1]} : vector<32x16xf32> to vector<16x16xf32>
      %225 = vector.broadcast %223 : f32 to vector<16x16xf32>
      %226 = arith.mulf %225, %224 : vector<16x16xf32>
      %227 = arith.addf %222, %226 : vector<16x16xf32>
      %c33 = arith.constant 33 : index
      %228 = memref.load %arg2[%c33] : memref<98xf32, #tpu.memory_space<smem>>
      %229 = vector.extract_strided_slice %207 {offsets = [9, 0], sizes = [16, 16], strides = [1, 1]} : vector<32x16xf32> to vector<16x16xf32>
      %230 = vector.broadcast %228 : f32 to vector<16x16xf32>
      %231 = arith.mulf %230, %229 : vector<16x16xf32>
      %232 = arith.addf %227, %231 : vector<16x16xf32>
      %c40 = arith.constant 40 : index
      %233 = memref.load %arg2[%c40] : memref<98xf32, #tpu.memory_space<smem>>
      %234 = vector.extract_strided_slice %207 {offsets = [10, 0], sizes = [16, 16], strides = [1, 1]} : vector<32x16xf32> to vector<16x16xf32>
      %235 = vector.broadcast %233 : f32 to vector<16x16xf32>
      %236 = arith.mulf %235, %234 : vector<16x16xf32>
      %237 = arith.addf %232, %236 : vector<16x16xf32>
      %c47 = arith.constant 47 : index
      %238 = memref.load %arg2[%c47] : memref<98xf32, #tpu.memory_space<smem>>
      %239 = vector.extract_strided_slice %207 {offsets = [11, 0], sizes = [16, 16], strides = [1, 1]} : vector<32x16xf32> to vector<16x16xf32>
      %240 = vector.broadcast %238 : f32 to vector<16x16xf32>
      %241 = arith.mulf %240, %239 : vector<16x16xf32>
      %242 = arith.addf %237, %241 : vector<16x16xf32>
      %c0_38 = arith.constant 0 : index
      %c131 = arith.constant 131 : index
      %243 = vector.load %arg7[%c0_38, %c131] : memref<32x272xf32, #tpu.memory_space<vmem>>, vector<32x16xf32>
      %c6 = arith.constant 6 : index
      %244 = memref.load %arg2[%c6] : memref<98xf32, #tpu.memory_space<smem>>
      %245 = vector.extract_strided_slice %243 {offsets = [5, 0], sizes = [16, 16], strides = [1, 1]} : vector<32x16xf32> to vector<16x16xf32>
      %246 = vector.broadcast %244 : f32 to vector<16x16xf32>
      %247 = arith.mulf %246, %245 : vector<16x16xf32>
      %248 = arith.addf %242, %247 : vector<16x16xf32>
      %c13 = arith.constant 13 : index
      %249 = memref.load %arg2[%c13] : memref<98xf32, #tpu.memory_space<smem>>
      %250 = vector.extract_strided_slice %243 {offsets = [6, 0], sizes = [16, 16], strides = [1, 1]} : vector<32x16xf32> to vector<16x16xf32>
      %251 = vector.broadcast %249 : f32 to vector<16x16xf32>
      %252 = arith.mulf %251, %250 : vector<16x16xf32>
      %253 = arith.addf %248, %252 : vector<16x16xf32>
      %c20 = arith.constant 20 : index
      %254 = memref.load %arg2[%c20] : memref<98xf32, #tpu.memory_space<smem>>
      %255 = vector.extract_strided_slice %243 {offsets = [7, 0], sizes = [16, 16], strides = [1, 1]} : vector<32x16xf32> to vector<16x16xf32>
      %256 = vector.broadcast %254 : f32 to vector<16x16xf32>
      %257 = arith.mulf %256, %255 : vector<16x16xf32>
      %258 = arith.addf %253, %257 : vector<16x16xf32>
      %c27 = arith.constant 27 : index
      %259 = memref.load %arg2[%c27] : memref<98xf32, #tpu.memory_space<smem>>
      %260 = vector.extract_strided_slice %243 {offsets = [8, 0], sizes = [16, 16], strides = [1, 1]} : vector<32x16xf32> to vector<16x16xf32>
      %261 = vector.broadcast %259 : f32 to vector<16x16xf32>
      %262 = arith.mulf %261, %260 : vector<16x16xf32>
      %263 = arith.addf %258, %262 : vector<16x16xf32>
      %c34 = arith.constant 34 : index
      %264 = memref.load %arg2[%c34] : memref<98xf32, #tpu.memory_space<smem>>
      %265 = vector.extract_strided_slice %243 {offsets = [9, 0], sizes = [16, 16], strides = [1, 1]} : vector<32x16xf32> to vector<16x16xf32>
      %266 = vector.broadcast %264 : f32 to vector<16x16xf32>
      %267 = arith.mulf %266, %265 : vector<16x16xf32>
      %268 = arith.addf %263, %267 : vector<16x16xf32>
      %c41 = arith.constant 41 : index
      %269 = memref.load %arg2[%c41] : memref<98xf32, #tpu.memory_space<smem>>
      %270 = vector.extract_strided_slice %243 {offsets = [10, 0], sizes = [16, 16], strides = [1, 1]} : vector<32x16xf32> to vector<16x16xf32>
      %271 = vector.broadcast %269 : f32 to vector<16x16xf32>
      %272 = arith.mulf %271, %270 : vector<16x16xf32>
      %273 = arith.addf %268, %272 : vector<16x16xf32>
      %c48 = arith.constant 48 : index
      %274 = memref.load %arg2[%c48] : memref<98xf32, #tpu.memory_space<smem>>
      %275 = vector.extract_strided_slice %243 {offsets = [11, 0], sizes = [16, 16], strides = [1, 1]} : vector<32x16xf32> to vector<16x16xf32>
      %276 = vector.broadcast %274 : f32 to vector<16x16xf32>
      %277 = arith.mulf %276, %275 : vector<16x16xf32>
      %278 = arith.addf %273, %277 : vector<16x16xf32>
      %c0_39 = arith.constant 0 : index
      %c125_40 = arith.constant 125 : index
      %279 = vector.load %arg8[%c0_39, %c125_40] : memref<32x272xf32, #tpu.memory_space<vmem>>, vector<32x16xf32>
      %c49 = arith.constant 49 : index
      %280 = memref.load %arg2[%c49] : memref<98xf32, #tpu.memory_space<smem>>
      %281 = vector.extract_strided_slice %279 {offsets = [5, 0], sizes = [16, 16], strides = [1, 1]} : vector<32x16xf32> to vector<16x16xf32>
      %282 = vector.broadcast %280 : f32 to vector<16x16xf32>
      %283 = arith.mulf %282, %281 : vector<16x16xf32>
      %284 = arith.addf %278, %283 : vector<16x16xf32>
      %c56 = arith.constant 56 : index
      %285 = memref.load %arg2[%c56] : memref<98xf32, #tpu.memory_space<smem>>
      %286 = vector.extract_strided_slice %279 {offsets = [6, 0], sizes = [16, 16], strides = [1, 1]} : vector<32x16xf32> to vector<16x16xf32>
      %287 = vector.broadcast %285 : f32 to vector<16x16xf32>
      %288 = arith.mulf %287, %286 : vector<16x16xf32>
      %289 = arith.addf %284, %288 : vector<16x16xf32>
      %c63 = arith.constant 63 : index
      %290 = memref.load %arg2[%c63] : memref<98xf32, #tpu.memory_space<smem>>
      %291 = vector.extract_strided_slice %279 {offsets = [7, 0], sizes = [16, 16], strides = [1, 1]} : vector<32x16xf32> to vector<16x16xf32>
      %292 = vector.broadcast %290 : f32 to vector<16x16xf32>
      %293 = arith.mulf %292, %291 : vector<16x16xf32>
      %294 = arith.addf %289, %293 : vector<16x16xf32>
      %c70 = arith.constant 70 : index
      %295 = memref.load %arg2[%c70] : memref<98xf32, #tpu.memory_space<smem>>
      %296 = vector.extract_strided_slice %279 {offsets = [8, 0], sizes = [16, 16], strides = [1, 1]} : vector<32x16xf32> to vector<16x16xf32>
      %297 = vector.broadcast %295 : f32 to vector<16x16xf32>
      %298 = arith.mulf %297, %296 : vector<16x16xf32>
      %299 = arith.addf %294, %298 : vector<16x16xf32>
      %c77 = arith.constant 77 : index
      %300 = memref.load %arg2[%c77] : memref<98xf32, #tpu.memory_space<smem>>
      %301 = vector.extract_strided_slice %279 {offsets = [9, 0], sizes = [16, 16], strides = [1, 1]} : vector<32x16xf32> to vector<16x16xf32>
      %302 = vector.broadcast %300 : f32 to vector<16x16xf32>
      %303 = arith.mulf %302, %301 : vector<16x16xf32>
      %304 = arith.addf %299, %303 : vector<16x16xf32>
      %c84 = arith.constant 84 : index
      %305 = memref.load %arg2[%c84] : memref<98xf32, #tpu.memory_space<smem>>
      %306 = vector.extract_strided_slice %279 {offsets = [10, 0], sizes = [16, 16], strides = [1, 1]} : vector<32x16xf32> to vector<16x16xf32>
      %307 = vector.broadcast %305 : f32 to vector<16x16xf32>
      %308 = arith.mulf %307, %306 : vector<16x16xf32>
      %309 = arith.addf %304, %308 : vector<16x16xf32>
      %c91 = arith.constant 91 : index
      %310 = memref.load %arg2[%c91] : memref<98xf32, #tpu.memory_space<smem>>
      %311 = vector.extract_strided_slice %279 {offsets = [11, 0], sizes = [16, 16], strides = [1, 1]} : vector<32x16xf32> to vector<16x16xf32>
      %312 = vector.broadcast %310 : f32 to vector<16x16xf32>
      %313 = arith.mulf %312, %311 : vector<16x16xf32>
      %314 = arith.addf %309, %313 : vector<16x16xf32>
      %c0_41 = arith.constant 0 : index
      %c126_42 = arith.constant 126 : index
      %315 = vector.load %arg8[%c0_41, %c126_42] : memref<32x272xf32, #tpu.memory_space<vmem>>, vector<32x16xf32>
      %c50 = arith.constant 50 : index
      %316 = memref.load %arg2[%c50] : memref<98xf32, #tpu.memory_space<smem>>
      %317 = vector.extract_strided_slice %315 {offsets = [5, 0], sizes = [16, 16], strides = [1, 1]} : vector<32x16xf32> to vector<16x16xf32>
      %318 = vector.broadcast %316 : f32 to vector<16x16xf32>
      %319 = arith.mulf %318, %317 : vector<16x16xf32>
      %320 = arith.addf %314, %319 : vector<16x16xf32>
      %c57 = arith.constant 57 : index
      %321 = memref.load %arg2[%c57] : memref<98xf32, #tpu.memory_space<smem>>
      %322 = vector.extract_strided_slice %315 {offsets = [6, 0], sizes = [16, 16], strides = [1, 1]} : vector<32x16xf32> to vector<16x16xf32>
      %323 = vector.broadcast %321 : f32 to vector<16x16xf32>
      %324 = arith.mulf %323, %322 : vector<16x16xf32>
      %325 = arith.addf %320, %324 : vector<16x16xf32>
      %c64 = arith.constant 64 : index
      %326 = memref.load %arg2[%c64] : memref<98xf32, #tpu.memory_space<smem>>
      %327 = vector.extract_strided_slice %315 {offsets = [7, 0], sizes = [16, 16], strides = [1, 1]} : vector<32x16xf32> to vector<16x16xf32>
      %328 = vector.broadcast %326 : f32 to vector<16x16xf32>
      %329 = arith.mulf %328, %327 : vector<16x16xf32>
      %330 = arith.addf %325, %329 : vector<16x16xf32>
      %c71 = arith.constant 71 : index
      %331 = memref.load %arg2[%c71] : memref<98xf32, #tpu.memory_space<smem>>
      %332 = vector.extract_strided_slice %315 {offsets = [8, 0], sizes = [16, 16], strides = [1, 1]} : vector<32x16xf32> to vector<16x16xf32>
      %333 = vector.broadcast %331 : f32 to vector<16x16xf32>
      %334 = arith.mulf %333, %332 : vector<16x16xf32>
      %335 = arith.addf %330, %334 : vector<16x16xf32>
      %c78 = arith.constant 78 : index
      %336 = memref.load %arg2[%c78] : memref<98xf32, #tpu.memory_space<smem>>
      %337 = vector.extract_strided_slice %315 {offsets = [9, 0], sizes = [16, 16], strides = [1, 1]} : vector<32x16xf32> to vector<16x16xf32>
      %338 = vector.broadcast %336 : f32 to vector<16x16xf32>
      %339 = arith.mulf %338, %337 : vector<16x16xf32>
      %340 = arith.addf %335, %339 : vector<16x16xf32>
      %c85 = arith.constant 85 : index
      %341 = memref.load %arg2[%c85] : memref<98xf32, #tpu.memory_space<smem>>
      %342 = vector.extract_strided_slice %315 {offsets = [10, 0], sizes = [16, 16], strides = [1, 1]} : vector<32x16xf32> to vector<16x16xf32>
      %343 = vector.broadcast %341 : f32 to vector<16x16xf32>
      %344 = arith.mulf %343, %342 : vector<16x16xf32>
      %345 = arith.addf %340, %344 : vector<16x16xf32>
      %c92 = arith.constant 92 : index
      %346 = memref.load %arg2[%c92] : memref<98xf32, #tpu.memory_space<smem>>
      %347 = vector.extract_strided_slice %315 {offsets = [11, 0], sizes = [16, 16], strides = [1, 1]} : vector<32x16xf32> to vector<16x16xf32>
      %348 = vector.broadcast %346 : f32 to vector<16x16xf32>
      %349 = arith.mulf %348, %347 : vector<16x16xf32>
      %350 = arith.addf %345, %349 : vector<16x16xf32>
      %c0_43 = arith.constant 0 : index
      %c127_44 = arith.constant 127 : index
      %351 = vector.load %arg8[%c0_43, %c127_44] : memref<32x272xf32, #tpu.memory_space<vmem>>, vector<32x16xf32>
      %c51 = arith.constant 51 : index
      %352 = memref.load %arg2[%c51] : memref<98xf32, #tpu.memory_space<smem>>
      %353 = vector.extract_strided_slice %351 {offsets = [5, 0], sizes = [16, 16], strides = [1, 1]} : vector<32x16xf32> to vector<16x16xf32>
      %354 = vector.broadcast %352 : f32 to vector<16x16xf32>
      %355 = arith.mulf %354, %353 : vector<16x16xf32>
      %356 = arith.addf %350, %355 : vector<16x16xf32>
      %c58 = arith.constant 58 : index
      %357 = memref.load %arg2[%c58] : memref<98xf32, #tpu.memory_space<smem>>
      %358 = vector.extract_strided_slice %351 {offsets = [6, 0], sizes = [16, 16], strides = [1, 1]} : vector<32x16xf32> to vector<16x16xf32>
      %359 = vector.broadcast %357 : f32 to vector<16x16xf32>
      %360 = arith.mulf %359, %358 : vector<16x16xf32>
      %361 = arith.addf %356, %360 : vector<16x16xf32>
      %c65 = arith.constant 65 : index
      %362 = memref.load %arg2[%c65] : memref<98xf32, #tpu.memory_space<smem>>
      %363 = vector.extract_strided_slice %351 {offsets = [7, 0], sizes = [16, 16], strides = [1, 1]} : vector<32x16xf32> to vector<16x16xf32>
      %364 = vector.broadcast %362 : f32 to vector<16x16xf32>
      %365 = arith.mulf %364, %363 : vector<16x16xf32>
      %366 = arith.addf %361, %365 : vector<16x16xf32>
      %c72 = arith.constant 72 : index
      %367 = memref.load %arg2[%c72] : memref<98xf32, #tpu.memory_space<smem>>
      %368 = vector.extract_strided_slice %351 {offsets = [8, 0], sizes = [16, 16], strides = [1, 1]} : vector<32x16xf32> to vector<16x16xf32>
      %369 = vector.broadcast %367 : f32 to vector<16x16xf32>
      %370 = arith.mulf %369, %368 : vector<16x16xf32>
      %371 = arith.addf %366, %370 : vector<16x16xf32>
      %c79 = arith.constant 79 : index
      %372 = memref.load %arg2[%c79] : memref<98xf32, #tpu.memory_space<smem>>
      %373 = vector.extract_strided_slice %351 {offsets = [9, 0], sizes = [16, 16], strides = [1, 1]} : vector<32x16xf32> to vector<16x16xf32>
      %374 = vector.broadcast %372 : f32 to vector<16x16xf32>
      %375 = arith.mulf %374, %373 : vector<16x16xf32>
      %376 = arith.addf %371, %375 : vector<16x16xf32>
      %c86 = arith.constant 86 : index
      %377 = memref.load %arg2[%c86] : memref<98xf32, #tpu.memory_space<smem>>
      %378 = vector.extract_strided_slice %351 {offsets = [10, 0], sizes = [16, 16], strides = [1, 1]} : vector<32x16xf32> to vector<16x16xf32>
      %379 = vector.broadcast %377 : f32 to vector<16x16xf32>
      %380 = arith.mulf %379, %378 : vector<16x16xf32>
      %381 = arith.addf %376, %380 : vector<16x16xf32>
      %c93 = arith.constant 93 : index
      %382 = memref.load %arg2[%c93] : memref<98xf32, #tpu.memory_space<smem>>
      %383 = vector.extract_strided_slice %351 {offsets = [11, 0], sizes = [16, 16], strides = [1, 1]} : vector<32x16xf32> to vector<16x16xf32>
      %384 = vector.broadcast %382 : f32 to vector<16x16xf32>
      %385 = arith.mulf %384, %383 : vector<16x16xf32>
      %386 = arith.addf %381, %385 : vector<16x16xf32>
      %c0_45 = arith.constant 0 : index
      %c128_46 = arith.constant 128 : index
      %387 = vector.load %arg8[%c0_45, %c128_46] : memref<32x272xf32, #tpu.memory_space<vmem>>, vector<32x16xf32>
      %c52 = arith.constant 52 : index
      %388 = memref.load %arg2[%c52] : memref<98xf32, #tpu.memory_space<smem>>
      %389 = vector.extract_strided_slice %387 {offsets = [5, 0], sizes = [16, 16], strides = [1, 1]} : vector<32x16xf32> to vector<16x16xf32>
      %390 = vector.broadcast %388 : f32 to vector<16x16xf32>
      %391 = arith.mulf %390, %389 : vector<16x16xf32>
      %392 = arith.addf %386, %391 : vector<16x16xf32>
      %c59 = arith.constant 59 : index
      %393 = memref.load %arg2[%c59] : memref<98xf32, #tpu.memory_space<smem>>
      %394 = vector.extract_strided_slice %387 {offsets = [6, 0], sizes = [16, 16], strides = [1, 1]} : vector<32x16xf32> to vector<16x16xf32>
      %395 = vector.broadcast %393 : f32 to vector<16x16xf32>
      %396 = arith.mulf %395, %394 : vector<16x16xf32>
      %397 = arith.addf %392, %396 : vector<16x16xf32>
      %c66 = arith.constant 66 : index
      %398 = memref.load %arg2[%c66] : memref<98xf32, #tpu.memory_space<smem>>
      %399 = vector.extract_strided_slice %387 {offsets = [7, 0], sizes = [16, 16], strides = [1, 1]} : vector<32x16xf32> to vector<16x16xf32>
      %400 = vector.broadcast %398 : f32 to vector<16x16xf32>
      %401 = arith.mulf %400, %399 : vector<16x16xf32>
      %402 = arith.addf %397, %401 : vector<16x16xf32>
      %c73 = arith.constant 73 : index
      %403 = memref.load %arg2[%c73] : memref<98xf32, #tpu.memory_space<smem>>
      %404 = vector.extract_strided_slice %387 {offsets = [8, 0], sizes = [16, 16], strides = [1, 1]} : vector<32x16xf32> to vector<16x16xf32>
      %405 = vector.broadcast %403 : f32 to vector<16x16xf32>
      %406 = arith.mulf %405, %404 : vector<16x16xf32>
      %407 = arith.addf %402, %406 : vector<16x16xf32>
      %c80 = arith.constant 80 : index
      %408 = memref.load %arg2[%c80] : memref<98xf32, #tpu.memory_space<smem>>
      %409 = vector.extract_strided_slice %387 {offsets = [9, 0], sizes = [16, 16], strides = [1, 1]} : vector<32x16xf32> to vector<16x16xf32>
      %410 = vector.broadcast %408 : f32 to vector<16x16xf32>
      %411 = arith.mulf %410, %409 : vector<16x16xf32>
      %412 = arith.addf %407, %411 : vector<16x16xf32>
      %c87 = arith.constant 87 : index
      %413 = memref.load %arg2[%c87] : memref<98xf32, #tpu.memory_space<smem>>
      %414 = vector.extract_strided_slice %387 {offsets = [10, 0], sizes = [16, 16], strides = [1, 1]} : vector<32x16xf32> to vector<16x16xf32>
      %415 = vector.broadcast %413 : f32 to vector<16x16xf32>
      %416 = arith.mulf %415, %414 : vector<16x16xf32>
      %417 = arith.addf %412, %416 : vector<16x16xf32>
      %c94 = arith.constant 94 : index
      %418 = memref.load %arg2[%c94] : memref<98xf32, #tpu.memory_space<smem>>
      %419 = vector.extract_strided_slice %387 {offsets = [11, 0], sizes = [16, 16], strides = [1, 1]} : vector<32x16xf32> to vector<16x16xf32>
      %420 = vector.broadcast %418 : f32 to vector<16x16xf32>
      %421 = arith.mulf %420, %419 : vector<16x16xf32>
      %422 = arith.addf %417, %421 : vector<16x16xf32>
      %c0_47 = arith.constant 0 : index
      %c129_48 = arith.constant 129 : index
      %423 = vector.load %arg8[%c0_47, %c129_48] : memref<32x272xf32, #tpu.memory_space<vmem>>, vector<32x16xf32>
      %c53 = arith.constant 53 : index
      %424 = memref.load %arg2[%c53] : memref<98xf32, #tpu.memory_space<smem>>
      %425 = vector.extract_strided_slice %423 {offsets = [5, 0], sizes = [16, 16], strides = [1, 1]} : vector<32x16xf32> to vector<16x16xf32>
      %426 = vector.broadcast %424 : f32 to vector<16x16xf32>
      %427 = arith.mulf %426, %425 : vector<16x16xf32>
      %428 = arith.addf %422, %427 : vector<16x16xf32>
      %c60 = arith.constant 60 : index
      %429 = memref.load %arg2[%c60] : memref<98xf32, #tpu.memory_space<smem>>
      %430 = vector.extract_strided_slice %423 {offsets = [6, 0], sizes = [16, 16], strides = [1, 1]} : vector<32x16xf32> to vector<16x16xf32>
      %431 = vector.broadcast %429 : f32 to vector<16x16xf32>
      %432 = arith.mulf %431, %430 : vector<16x16xf32>
      %433 = arith.addf %428, %432 : vector<16x16xf32>
      %c67 = arith.constant 67 : index
      %434 = memref.load %arg2[%c67] : memref<98xf32, #tpu.memory_space<smem>>
      %435 = vector.extract_strided_slice %423 {offsets = [7, 0], sizes = [16, 16], strides = [1, 1]} : vector<32x16xf32> to vector<16x16xf32>
      %436 = vector.broadcast %434 : f32 to vector<16x16xf32>
      %437 = arith.mulf %436, %435 : vector<16x16xf32>
      %438 = arith.addf %433, %437 : vector<16x16xf32>
      %c74 = arith.constant 74 : index
      %439 = memref.load %arg2[%c74] : memref<98xf32, #tpu.memory_space<smem>>
      %440 = vector.extract_strided_slice %423 {offsets = [8, 0], sizes = [16, 16], strides = [1, 1]} : vector<32x16xf32> to vector<16x16xf32>
      %441 = vector.broadcast %439 : f32 to vector<16x16xf32>
      %442 = arith.mulf %441, %440 : vector<16x16xf32>
      %443 = arith.addf %438, %442 : vector<16x16xf32>
      %c81 = arith.constant 81 : index
      %444 = memref.load %arg2[%c81] : memref<98xf32, #tpu.memory_space<smem>>
      %445 = vector.extract_strided_slice %423 {offsets = [9, 0], sizes = [16, 16], strides = [1, 1]} : vector<32x16xf32> to vector<16x16xf32>
      %446 = vector.broadcast %444 : f32 to vector<16x16xf32>
      %447 = arith.mulf %446, %445 : vector<16x16xf32>
      %448 = arith.addf %443, %447 : vector<16x16xf32>
      %c88 = arith.constant 88 : index
      %449 = memref.load %arg2[%c88] : memref<98xf32, #tpu.memory_space<smem>>
      %450 = vector.extract_strided_slice %423 {offsets = [10, 0], sizes = [16, 16], strides = [1, 1]} : vector<32x16xf32> to vector<16x16xf32>
      %451 = vector.broadcast %449 : f32 to vector<16x16xf32>
      %452 = arith.mulf %451, %450 : vector<16x16xf32>
      %453 = arith.addf %448, %452 : vector<16x16xf32>
      %c95 = arith.constant 95 : index
      %454 = memref.load %arg2[%c95] : memref<98xf32, #tpu.memory_space<smem>>
      %455 = vector.extract_strided_slice %423 {offsets = [11, 0], sizes = [16, 16], strides = [1, 1]} : vector<32x16xf32> to vector<16x16xf32>
      %456 = vector.broadcast %454 : f32 to vector<16x16xf32>
      %457 = arith.mulf %456, %455 : vector<16x16xf32>
      %458 = arith.addf %453, %457 : vector<16x16xf32>
      %c0_49 = arith.constant 0 : index
      %c130_50 = arith.constant 130 : index
      %459 = vector.load %arg8[%c0_49, %c130_50] : memref<32x272xf32, #tpu.memory_space<vmem>>, vector<32x16xf32>
      %c54 = arith.constant 54 : index
      %460 = memref.load %arg2[%c54] : memref<98xf32, #tpu.memory_space<smem>>
      %461 = vector.extract_strided_slice %459 {offsets = [5, 0], sizes = [16, 16], strides = [1, 1]} : vector<32x16xf32> to vector<16x16xf32>
      %462 = vector.broadcast %460 : f32 to vector<16x16xf32>
      %463 = arith.mulf %462, %461 : vector<16x16xf32>
      %464 = arith.addf %458, %463 : vector<16x16xf32>
      %c61 = arith.constant 61 : index
      %465 = memref.load %arg2[%c61] : memref<98xf32, #tpu.memory_space<smem>>
      %466 = vector.extract_strided_slice %459 {offsets = [6, 0], sizes = [16, 16], strides = [1, 1]} : vector<32x16xf32> to vector<16x16xf32>
      %467 = vector.broadcast %465 : f32 to vector<16x16xf32>
      %468 = arith.mulf %467, %466 : vector<16x16xf32>
      %469 = arith.addf %464, %468 : vector<16x16xf32>
      %c68 = arith.constant 68 : index
      %470 = memref.load %arg2[%c68] : memref<98xf32, #tpu.memory_space<smem>>
      %471 = vector.extract_strided_slice %459 {offsets = [7, 0], sizes = [16, 16], strides = [1, 1]} : vector<32x16xf32> to vector<16x16xf32>
      %472 = vector.broadcast %470 : f32 to vector<16x16xf32>
      %473 = arith.mulf %472, %471 : vector<16x16xf32>
      %474 = arith.addf %469, %473 : vector<16x16xf32>
      %c75 = arith.constant 75 : index
      %475 = memref.load %arg2[%c75] : memref<98xf32, #tpu.memory_space<smem>>
      %476 = vector.extract_strided_slice %459 {offsets = [8, 0], sizes = [16, 16], strides = [1, 1]} : vector<32x16xf32> to vector<16x16xf32>
      %477 = vector.broadcast %475 : f32 to vector<16x16xf32>
      %478 = arith.mulf %477, %476 : vector<16x16xf32>
      %479 = arith.addf %474, %478 : vector<16x16xf32>
      %c82 = arith.constant 82 : index
      %480 = memref.load %arg2[%c82] : memref<98xf32, #tpu.memory_space<smem>>
      %481 = vector.extract_strided_slice %459 {offsets = [9, 0], sizes = [16, 16], strides = [1, 1]} : vector<32x16xf32> to vector<16x16xf32>
      %482 = vector.broadcast %480 : f32 to vector<16x16xf32>
      %483 = arith.mulf %482, %481 : vector<16x16xf32>
      %484 = arith.addf %479, %483 : vector<16x16xf32>
      %c89 = arith.constant 89 : index
      %485 = memref.load %arg2[%c89] : memref<98xf32, #tpu.memory_space<smem>>
      %486 = vector.extract_strided_slice %459 {offsets = [10, 0], sizes = [16, 16], strides = [1, 1]} : vector<32x16xf32> to vector<16x16xf32>
      %487 = vector.broadcast %485 : f32 to vector<16x16xf32>
      %488 = arith.mulf %487, %486 : vector<16x16xf32>
      %489 = arith.addf %484, %488 : vector<16x16xf32>
      %c96 = arith.constant 96 : index
      %490 = memref.load %arg2[%c96] : memref<98xf32, #tpu.memory_space<smem>>
      %491 = vector.extract_strided_slice %459 {offsets = [11, 0], sizes = [16, 16], strides = [1, 1]} : vector<32x16xf32> to vector<16x16xf32>
      %492 = vector.broadcast %490 : f32 to vector<16x16xf32>
      %493 = arith.mulf %492, %491 : vector<16x16xf32>
      %494 = arith.addf %489, %493 : vector<16x16xf32>
      %c0_51 = arith.constant 0 : index
      %c131_52 = arith.constant 131 : index
      %495 = vector.load %arg8[%c0_51, %c131_52] : memref<32x272xf32, #tpu.memory_space<vmem>>, vector<32x16xf32>
      %c55 = arith.constant 55 : index
      %496 = memref.load %arg2[%c55] : memref<98xf32, #tpu.memory_space<smem>>
      %497 = vector.extract_strided_slice %495 {offsets = [5, 0], sizes = [16, 16], strides = [1, 1]} : vector<32x16xf32> to vector<16x16xf32>
      %498 = vector.broadcast %496 : f32 to vector<16x16xf32>
      %499 = arith.mulf %498, %497 : vector<16x16xf32>
      %500 = arith.addf %494, %499 : vector<16x16xf32>
      %c62 = arith.constant 62 : index
      %501 = memref.load %arg2[%c62] : memref<98xf32, #tpu.memory_space<smem>>
      %502 = vector.extract_strided_slice %495 {offsets = [6, 0], sizes = [16, 16], strides = [1, 1]} : vector<32x16xf32> to vector<16x16xf32>
      %503 = vector.broadcast %501 : f32 to vector<16x16xf32>
      %504 = arith.mulf %503, %502 : vector<16x16xf32>
      %505 = arith.addf %500, %504 : vector<16x16xf32>
      %c69 = arith.constant 69 : index
      %506 = memref.load %arg2[%c69] : memref<98xf32, #tpu.memory_space<smem>>
      %507 = vector.extract_strided_slice %495 {offsets = [7, 0], sizes = [16, 16], strides = [1, 1]} : vector<32x16xf32> to vector<16x16xf32>
      %508 = vector.broadcast %506 : f32 to vector<16x16xf32>
      %509 = arith.mulf %508, %507 : vector<16x16xf32>
      %510 = arith.addf %505, %509 : vector<16x16xf32>
      %c76 = arith.constant 76 : index
      %511 = memref.load %arg2[%c76] : memref<98xf32, #tpu.memory_space<smem>>
      %512 = vector.extract_strided_slice %495 {offsets = [8, 0], sizes = [16, 16], strides = [1, 1]} : vector<32x16xf32> to vector<16x16xf32>
      %513 = vector.broadcast %511 : f32 to vector<16x16xf32>
      %514 = arith.mulf %513, %512 : vector<16x16xf32>
      %515 = arith.addf %510, %514 : vector<16x16xf32>
      %c83 = arith.constant 83 : index
      %516 = memref.load %arg2[%c83] : memref<98xf32, #tpu.memory_space<smem>>
      %517 = vector.extract_strided_slice %495 {offsets = [9, 0], sizes = [16, 16], strides = [1, 1]} : vector<32x16xf32> to vector<16x16xf32>
      %518 = vector.broadcast %516 : f32 to vector<16x16xf32>
      %519 = arith.mulf %518, %517 : vector<16x16xf32>
      %520 = arith.addf %515, %519 : vector<16x16xf32>
      %c90 = arith.constant 90 : index
      %521 = memref.load %arg2[%c90] : memref<98xf32, #tpu.memory_space<smem>>
      %522 = vector.extract_strided_slice %495 {offsets = [10, 0], sizes = [16, 16], strides = [1, 1]} : vector<32x16xf32> to vector<16x16xf32>
      %523 = vector.broadcast %521 : f32 to vector<16x16xf32>
      %524 = arith.mulf %523, %522 : vector<16x16xf32>
      %525 = arith.addf %520, %524 : vector<16x16xf32>
      %c97 = arith.constant 97 : index
      %526 = memref.load %arg2[%c97] : memref<98xf32, #tpu.memory_space<smem>>
      %527 = vector.extract_strided_slice %495 {offsets = [11, 0], sizes = [16, 16], strides = [1, 1]} : vector<32x16xf32> to vector<16x16xf32>
      %528 = vector.broadcast %526 : f32 to vector<16x16xf32>
      %529 = arith.mulf %528, %527 : vector<16x16xf32>
      %530 = arith.addf %525, %529 : vector<16x16xf32>
      %531 = arith.negf %530 : vector<16x16xf32>
      %532 = math.exp %531 : vector<16x16xf32>
      %cst_53 = arith.constant 1.000000e+00 : f32
      %533 = vector.broadcast %cst_53 : f32 to vector<16x16xf32>
      %534 = arith.addf %533, %532 : vector<16x16xf32>
      %535 = arith.divf %533, %534 : vector<16x16xf32>
      %c0_54 = arith.constant 0 : index
      %c0_55 = arith.constant 0 : index
      %c0_56 = arith.constant 0 : index
      %c0_57 = arith.constant 0 : index
      %536 = vector.load %arg4[%c0_54, %c0_55, %c0_56, %c0_57] : memref<1x1x16x16xf32, #tpu.memory_space<vmem>>, vector<1x1x16x16xf32>
      %537 = vector.shape_cast %536 : vector<1x1x16x16xf32> to vector<16x16xf32>
      %538 = vector.shape_cast %535 : vector<16x16xf32> to vector<1x1x16x16xf32>
      tpu.vector_store %arg4[%c0_54, %c0_55, %c0_56, %c0_57], %538 {strides = array<i32>} : memref<1x1x16x16xf32, #tpu.memory_space<vmem>>, vector<1x1x16x16xf32>,
    } else {
    }
    return
  }
  func.func @transform_0(%arg0: i32, %arg1: i32) -> i32 {
    %c0_i32 = arith.constant 0 : i32
    %c0_i32_0 = arith.constant 0 : i32
    return %c0_i32 : i32
  }
  func.func @transform_1(%arg0: i32, %arg1: i32) -> (i32, i32, i32, i32) {
    %c0_i32 = arith.constant 0 : i32
    %c0_i32_0 = arith.constant 0 : i32
    %c0_i32_1 = arith.constant 0 : i32
    return %arg0, %arg1, %c0_i32, %c0_i32_0 : i32, i32, i32, i32
  }
  func.func @transform_2(%arg0: i32, %arg1: i32) -> (i32, i32, i32, i32) {
    %c0_i32 = arith.constant 0 : i32
    %c0_i32_0 = arith.constant 0 : i32
    %c0_i32_1 = arith.constant 0 : i32
    %c0_i32_2 = arith.constant 0 : i32
    return %arg0, %c0_i32, %c0_i32_0, %c0_i32_1 : i32, i32, i32, i32
  }
}

</mosaic_0001>

<llo_original>
// kernel: tpu_custom_call.1
$region0: #{tpu_custom_call.1}
  #allocation0 [shape = 'u32[]', space=smem, size = 0x4, offset = 0x4, fixed_abs, tag = 'smem constant byte address 0x4 - core index']
  #allocation1 [shape = 'u32[144,128]{1,0:T(1,128)}', space=vmem, size = 0x12000, scoped, tag = 'internal scratch']
  #allocation2 [shape = 'f32[16,16]{1,0:T(8,128)}', space=vmem, size = 0x2000, scoped, tag = 'scratch operand']
  #allocation3 [shape = 'f32[16,16]{1,0:T(8,128)}', space=vmem, size = 0x2000, scoped, tag = 'scratch operand']
  #allocation4 [shape = 'f32[32,272]{1,0:T(8,128)}', space=vmem, size = 0xc000, scoped, tag = 'scratch operand']
  #allocation5 [shape = 'f32[32,272]{1,0:T(8,128)}', space=vmem, size = 0xc000, scoped, tag = 'scratch operand']
  %s0 = inlined_call_operand.hbm [shape: f32[98], index: 0, kind: input, shape index: {}]
  %s1 = inlined_call_operand.hbm [shape: f32[2,4,16,16], index: 1, kind: input, shape index: {}]
  %s2 = inlined_call_operand.hbm [shape: f32[2,1,16,16], index: 2, kind: output, shape index: {}]
  %s3 = sld [smem:[#allocation0]]
  $region57: #{tpu_custom_call.1} parent=0
    _
  %s5 = ssub.s32 1, %s3
  %s6 = scalar_select 0, %s5, %s3
  $region1: #{tpu_custom_call.1} parent=0
    #allocation6 [shape = 'u8[512]{0}', space=smem, size = 0x200, scoped, tag = 'input window, operand 0, single buffered']
    #allocation7 [shape = 's32[2]{0}', space=sflag, size = 0x8, scoped, tag = 'scoped memory for tpu_custom_call.1']
    #allocation8 [shape = 's32[2]{0}', space=sflag, size = 0x8, scoped, tag = 'scoped memory for tpu_custom_call.1']
    #allocation9 [shape = 's32[2]{0}', space=sflag, size = 0x8, scoped, tag = 'scoped memory for tpu_custom_call.1']
    #allocation10 [shape = 'u8[65536]{0}', space=vmem, size = 0x10000, scoped, tag = 'input window, operand 1']
    #allocation11 [shape = 'u8[16384]{0}', space=vmem, size = 0x4000, scoped, tag = 'output window, operand 0']
    %7 = vsyncpa [#allocation9], 0
    %8 = vsyncpa [#allocation7], 0
    %s9 = scalar_lea.sflag [#allocation7], 1
    %10 = vsyncpa %s9, 0
    %11 = vsyncpa [#allocation8], 0
    %s12 = scalar_lea.sflag [#allocation8], 1
    %13 = vsyncpa %s12, 0
    loop: start=0, step=1, limit=4
    $region2: #{tpu_custom_call.1} parent=1 // loop_pre_header
      _
    $region3: #{tpu_custom_call.1} parent=1 // loop_header
      %s15 = sphi 0, %s19
      %p16 = scmp.ge.s32.totalorder %s15, 4
      %s22 = sphi 0, %s34
      %s23 = sphi 0, %s30
      %s24 = sphi 0, %s22
      %s25 = sphi 0, %s23
      %s26 = sphi 0, %s24
      %s27 = sphi 0, %s25
      %s35 = sphi 0, %s35
      %s37 = sphi 0, %s35
      %s38 = sphi 0, %s37
      %s52 = sphi 0, %s38
      %s60 = sphi 0, %s62
      %s63 = sphi 0, %s60
      %s64 = sphi 0, %s63
      %s80 = sphi 0, %s64
      %s86 = sphi 0, %s88
      %s89 = sphi 0, %s86
      %s90 = sphi 0, %s89
      %s106 = sphi 0, %s90
    $region4: #{tpu_custom_call.1} parent=1 // loop_header_branch
      %18 = sbr.rel (%p16) target = $region8
    $region5: #{tpu_custom_call.1} parent=1 // loop_body
      %s20 = ssub.s32 %s15, 1
      %s21 = ssub.s32 %s15, 2
      %s28 = sadd.s32 1, %s23
      %p29 = scmp.ge.s32.totalorder %s28, 1
      %s30 = scalar_select %p29, 0, %s28
      %s31 = sadd.s32 1, %s22
      %s32 = scalar_select %p29, %s31, %s22
      %p33 = scmp.ge.s32.totalorder %s32, 2
      %s34 = scalar_select %p33, 0, %s32
      %s36 = sadd.s32 %s35, 1
      %p39 = scmp.eq.s32.totalorder %s15, 1
      %p40 = scmp.ne.s32.totalorder %s35, %s37
      %p41 = scmp.eq.s32.totalorder %s15, 0
      %p42 = por %p40, %p41
      %p43 = scmp.ne.s32.totalorder %s35, %s37
      %p44 = scmp.eq.s32.totalorder %s20, 1
      %p45 = por %p43, %p44
      %p46 = scmp.ne.s32.totalorder %s37, %s38
      %p47 = scmp.eq.s32.totalorder %s20, 0
      %p48 = por %p46, %p47
      %p49 = scmp.ne.s32.totalorder %s37, %s38
      %p50 = scmp.eq.s32.totalorder %s21, 1
      %p51 = por %p49, %p50
      %p53 = scmp.ne.s32.totalorder %s38, %s52
      %p54 = scmp.eq.s32.totalorder %s21, 0
      %p55 = por %p53, %p54
      %s56 = ssub.s32 %s22, %s34
      %s57 = ssub.s32 %s23, %s30
      %s58 = sor.u32 %s56, %s57
      %p59 = scmp.eq.s32.totalorder %s58, 0
      %s61 = sadd.s32 %s60, 1
      %s62 = scalar_select %p59, %s60, %s61
      %p65 = pneg %p59
      %p66 = scmp.eq.s32.totalorder %s15, 1
      %p67 = por %p65, %p66
      %p68 = scmp.ne.s32.totalorder %s60, %s63
      %p69 = scmp.eq.s32.totalorder %s15, 0
      %p70 = por %p68, %p69
      %p71 = scmp.ne.s32.totalorder %s60, %s63
      %p72 = scmp.eq.s32.totalorder %s20, 1
      %p73 = por %p71, %p72
      %p74 = scmp.ne.s32.totalorder %s63, %s64
      %p75 = scmp.eq.s32.totalorder %s20, 0
      %p76 = por %p74, %p75
      %p77 = scmp.ne.s32.totalorder %s63, %s64
      %p78 = scmp.eq.s32.totalorder %s21, 1
      %p79 = por %p77, %p78
      %p81 = scmp.ne.s32.totalorder %s64, %s80
      %p82 = scmp.eq.s32.totalorder %s21, 0
      %p83 = por %p81, %p82
      %s84 = ssub.s32 %s22, %s34
      %p85 = scmp.eq.s32.totalorder %s84, 0
      %s87 = sadd.s32 %s86, 1
      %s88 = scalar_select %p85, %s86, %s87
      %p91 = pneg %p85
      %p92 = scmp.eq.s32.totalorder %s15, 1
      %p93 = por %p91, %p92
      %p94 = scmp.ne.s32.totalorder %s86, %s89
      %p95 = scmp.eq.s32.totalorder %s15, 0
      %p96 = por %p94, %p95
      %p97 = scmp.ne.s32.totalorder %s86, %s89
      %p98 = scmp.eq.s32.totalorder %s20, 1
      %p99 = por %p97, %p98
      %p100 = scmp.ne.s32.totalorder %s89, %s90
      %p101 = scmp.eq.s32.totalorder %s20, 0
      %p102 = por %p100, %p101
      %p103 = scmp.ne.s32.totalorder %s89, %s90
      %p104 = scmp.eq.s32.totalorder %s21, 1
      %p105 = por %p103, %p104
      %p107 = scmp.ne.s32.totalorder %s90, %s106
      %p108 = scmp.eq.s32.totalorder %s21, 0
      %p109 = por %p107, %p108
      %p110 = scmp.le.s32.totalorder 1, %s15
      %p111 = scmp.lt.s32.totalorder %s15, 3
      %p112 = pnand %p110, %p111
      %p113 = pneg %p112
      // Predicated region
      $region9: #{tpu_custom_call.1} parent=5 // pred_check
        _
      $region10: #{tpu_custom_call.1} parent=5 // pred_check_branch
        %115 = sbr.rel (%p112) target = $region12
      $region11: #{tpu_custom_call.1} parent=5 // pred_region
        %s116 = ssub.s32 %s15, 1
        // Predicated region
        $region13: #{tpu_custom_call.1} parent=11 // pred_check
          %p117 = pneg %p48
        $region14: #{tpu_custom_call.1} parent=11 // pred_check_branch
          %119 = sbr.rel (%p117) target = $region16
        $region15: #{tpu_custom_call.1} parent=11 // pred_region
          %s121 = ssub.s32 16, 16
          %122 = vsyncadd [#allocation9], %s121
          %125 = dma.hbm_to_smem %s0, 16, [#allocation6], [#allocation9]
        $region16: #{tpu_custom_call.1} parent=11 // pred_fallthru
          _
      $region12: #{tpu_custom_call.1} parent=5 // pred_fallthru
        _
      %p126 = scmp.lt.s32.totalorder %s15, 2
      // Predicated region
      $region17: #{tpu_custom_call.1} parent=5 // pred_check
        %p127 = pneg %p126
      $region18: #{tpu_custom_call.1} parent=5 // pred_check_branch
        %129 = sbr.rel (%p127) target = $region20
      $region19: #{tpu_custom_call.1} parent=5 // pred_region
        // Predicated region
        $region21: #{tpu_custom_call.1} parent=19 // pred_check
          %p130 = pneg %p70
        $region22: #{tpu_custom_call.1} parent=19 // pred_check_branch
          %132 = sbr.rel (%p130) target = $region24
        $region23: #{tpu_custom_call.1} parent=19 // pred_region
          %s133 = sand.u32 %s60, 1
          %s134 = scalar_lea.sflag [#allocation7], %s133
          %s135 = sand.u32 %s60, 1
          %s136 = smul.addr %s135, 64
          %s137 = scalar_lea.vmem [#allocation10], %s136
          %s138 = smul.u32 4, %s23
          %s140 = ssub.s32 1024, 1024
          %141 = vsyncadd %s134, %s140
          %s142 = smul.addr %s138, 2
          %s143 = smul.addr %s22, 8
          %s144 = sadd.s32 %s142, %s143
          %s145 = smul.addr %s144, 128
          %s146 = scalar_lea.hbm %s1, %s145
          %s147 = sshll.u32 %s137, 4
          %s148 = int_to_ptr.vmem [resolvable:$true] %s147
          %153 = dma.hbm_to_vmem [thread:$0]  %s146, 1024, %s148, %s134, 128, 128, 8
        $region24: #{tpu_custom_call.1} parent=19 // pred_fallthru
          _
      $region20: #{tpu_custom_call.1} parent=5 // pred_fallthru
        _
      %p154 = scmp.le.s32.totalorder 1, %s15
      %p155 = scmp.lt.s32.totalorder %s15, 3
      %p156 = pnand %p154, %p155
      %p157 = pneg %p156
      // Predicated region
      $region25: #{tpu_custom_call.1} parent=5 // pred_check
        _
      $region26: #{tpu_custom_call.1} parent=5 // pred_check_branch
        %159 = sbr.rel (%p156) target = $region28
      $region27: #{tpu_custom_call.1} parent=5 // pred_region
        %s160 = ssub.s32 %s15, 1
        // Predicated region
        $region29: #{tpu_custom_call.1} parent=27 // pred_check
          %p161 = pneg %p48
        $region30: #{tpu_custom_call.1} parent=27 // pred_check_branch
          %163 = sbr.rel (%p161) target = $region32
        $region31: #{tpu_custom_call.1} parent=27 // pred_region
          %164 = dma.done [#allocation9], 16
        $region32: #{tpu_custom_call.1} parent=27 // pred_fallthru
          _
        %s165 = sand.u32 %s63, 1
        %s166 = scalar_lea.sflag [#allocation7], %s165
        %s167 = sand.u32 %s63, 1
        %s168 = smul.addr %s167, 64
        %s169 = scalar_lea.vmem [#allocation10], %s168
        // Predicated region
        $region33: #{tpu_custom_call.1} parent=27 // pred_check
          %p170 = pneg %p76
        $region34: #{tpu_custom_call.1} parent=27 // pred_check_branch
          %172 = sbr.rel (%p170) target = $region36
        $region35: #{tpu_custom_call.1} parent=27 // pred_region
          %173 = dma.done %s166, 1024
        $region36: #{tpu_custom_call.1} parent=27 // pred_fallthru
          _
        %174 = sfence
        %p175 = pneg %p48
        %p176 = pneg %p45
        %s177 = sand.u32 %s63, 1
        %s178 = scalar_lea.sflag [#allocation7], %s177
        %s179 = sand.u32 %s63, 1
        %s180 = smul.addr %s179, 64
        %s181 = scalar_lea.vmem [#allocation10], %s180
        %p182 = pneg %p76
        %p183 = pneg %p73
        %p184 = pneg %p102
        %p185 = pneg %p99
        %s186 = sand.u32 %s89, 1
        %s187 = scalar_lea.sflag [#allocation8], %s186
        %s188 = sand.u32 %s89, 1
        %s189 = smul.addr %s188, 16
        %s190 = scalar_lea.vmem [#allocation11], %s189
        %s191 = smul.u32 4, %s25
        %v192 = vld [vmem:[%s169] sm:$0xff]
        %v193 = vld [vmem:[%s169 + $0x8] sm:$0xff]
        %v194 = vld [vmem:[%s169 + $0x10] sm:$0xff]
        %v195 = vld [vmem:[%s169 + $0x18] sm:$0xff]
        %v196 = vld [vmem:[%s169 + $0x20] sm:$0xff]
        %v197 = vld [vmem:[%s169 + $0x28] sm:$0xff]
        %v198 = vld [vmem:[%s169 + $0x30] sm:$0xff]
        %v199 = vld [vmem:[%s169 + $0x38] sm:$0xff]
        %p200 = scmp.eq.s32.totalorder %s25, 0
        // Predicated region
        $region37: #{tpu_custom_call.1} parent=27 // pred_check
          %p201 = pneg %p200
        $region38: #{tpu_custom_call.1} parent=27 // pred_check_branch
          %203 = sbr.rel (%p201) target = $region40
        $region39: #{tpu_custom_call.1} parent=27 // pred_region
          %vm204 = vcmask 130048
          %205 = vst.msk [vmem:[#allocation2] sm:$0xff] %vm204, 0.0
          %206 = vst.msk [vmem:[#allocation2 + $0x8] sm:$0xff] %vm204, 0.0
          %207 = vst.msk [vmem:[#allocation3] sm:$0xff] %vm204, -inf
          %208 = vst.msk [vmem:[#allocation3 + $0x8] sm:$0xff] %vm204, -inf
        $region40: #{tpu_custom_call.1} parent=27 // pred_fallthru
          _
        %v209 = vld [vmem:[#allocation2] sm:$0xff]
        %v210 = vld [vmem:[#allocation2 + $0x8] sm:$0xff]
        %vm211 = vcmask 130048
        %v212 = vsel %vm211, %v192, 0.0
        %v213 = vsel %vm211, %v194, 0.0
        %v214 = vadd.f32 %v212, %v213
        %v215 = vsel %vm211, %v196, 0.0
        %v216 = vadd.f32 %v214, %v215
        %v217 = vsel %vm211, %v198, 0.0
        %v218 = vadd.f32 %v216, %v217
        %v219 = vsel %vm211, %v193, 0.0
        %v220 = vsel %vm211, %v195, 0.0
        %v221 = vadd.f32 %v219, %v220
        %v222 = vsel %vm211, %v197, 0.0
        %v223 = vadd.f32 %v221, %v222
        %v224 = vsel %vm211, %v199, 0.0
        %v225 = vadd.f32 %v223, %v224
        %v226 = vadd.f32 %v209, %v218
        %v227 = vadd.f32 %v210, %v225
        %228 = vst.msk [vmem:[#allocation2] sm:$0xff] %vm211, %v226
        %229 = vst.msk [vmem:[#allocation2 + $0x8] sm:$0xff] %vm211, %v227
        %v230 = vld [vmem:[#allocation3] sm:$0xff]
        %v231 = vld [vmem:[#allocation3 + $0x8] sm:$0xff]
        %v232 = vsel %vm211, %v192, -inf
        %v233 = vsel %vm211, %v194, -inf
        %v234 = vsel %vm211, %v196, -inf
        %v235 = vmax.f32 %v232, %v234
        %v236 = vsel %vm211, %v198, -inf
        %v237 = vmax.f32 %v233, %v236
        %v238 = vmax.f32 %v235, %v237
        %v239 = vsel %vm211, %v193, -inf
        %v240 = vsel %vm211, %v195, -inf
        %v241 = vsel %vm211, %v197, -inf
        %v242 = vmax.f32 %v239, %v241
        %v243 = vsel %vm211, %v199, -inf
        %v244 = vmax.f32 %v240, %v243
        %v245 = vmax.f32 %v242, %v244
        %v246 = vmax.f32 %v230, %v238
        %v247 = vmax.f32 %v231, %v245
        %248 = vst.msk [vmem:[#allocation3] sm:$0xff] %vm211, %v246
        %249 = vst.msk [vmem:[#allocation3 + $0x8] sm:$0xff] %vm211, %v247
        // Predicated region
        $region41: #{tpu_custom_call.1} parent=27 // pred_check
          %p250 = pneg %p200
        $region42: #{tpu_custom_call.1} parent=27 // pred_check_branch
          %252 = sbr.rel (%p250) target = $region44
        $region43: #{tpu_custom_call.1} parent=27 // pred_region
          %253 = vst [vmem:[#allocation4] sm:$0xff] 0.0
          %254 = vst [vmem:[#allocation4 + $0x8] sm:$0xff] 0.0
          %255 = vst.msk [vmem:[#allocation4 + $0x10] sm:$0xff] %vm211, 0.0
          %256 = vst [vmem:[#allocation4 + $0x18] sm:$0xff] 0.0
          %257 = vst [vmem:[#allocation4 + $0x20] sm:$0xff] 0.0
          %258 = vst.msk [vmem:[#allocation4 + $0x28] sm:$0xff] %vm211, 0.0
          %259 = vst [vmem:[#allocation4 + $0x30] sm:$0xff] 0.0
          %260 = vst [vmem:[#allocation4 + $0x38] sm:$0xff] 0.0
          %261 = vst.msk [vmem:[#allocation4 + $0x40] sm:$0xff] %vm211, 0.0
          %262 = vst [vmem:[#allocation4 + $0x48] sm:$0xff] 0.0
          %263 = vst [vmem:[#allocation4 + $0x50] sm:$0xff] 0.0
          %264 = vst.msk [vmem:[#allocation4 + $0x58] sm:$0xff] %vm211, 0.0
          %265 = vst [vmem:[#allocation5] sm:$0xff] 0.0
          %266 = vst [vmem:[#allocation5 + $0x8] sm:$0xff] 0.0
          %267 = vst.msk [vmem:[#allocation5 + $0x10] sm:$0xff] %vm211, 0.0
          %268 = vst [vmem:[#allocation5 + $0x18] sm:$0xff] 0.0
          %269 = vst [vmem:[#allocation5 + $0x20] sm:$0xff] 0.0
          %270 = vst.msk [vmem:[#allocation5 + $0x28] sm:$0xff] %vm211, 0.0
          %271 = vst [vmem:[#allocation5 + $0x30] sm:$0xff] 0.0
          %272 = vst [vmem:[#allocation5 + $0x38] sm:$0xff] 0.0
          %273 = vst.msk [vmem:[#allocation5 + $0x40] sm:$0xff] %vm211, 0.0
          %274 = vst [vmem:[#allocation5 + $0x48] sm:$0xff] 0.0
          %275 = vst [vmem:[#allocation5 + $0x50] sm:$0xff] 0.0
          %276 = vst.msk [vmem:[#allocation5 + $0x58] sm:$0xff] %vm211, 0.0
          %v277 = vld [vmem:[#allocation2] sm:$0xff]
          %v278 = vld [vmem:[#allocation2 + $0x8] sm:$0xff]
          %v279 = vmul.f32 %v277, 0.25
          %v280 = vmul.f32 %v278, 0.25
          %281 = vst.msk [vmem:[#allocation4 + $0x20] sm:$0xff] %vm211, %v279
          %282 = vst.msk [vmem:[#allocation4 + $0x38] sm:$0xff] %vm211, %v280
          %v283 = vld [vmem:[#allocation3] sm:$0xff]
          %v284 = vld [vmem:[#allocation3 + $0x8] sm:$0xff]
          %285 = vst.msk [vmem:[#allocation5 + $0x20] sm:$0xff] %vm211, %v283
          %286 = vst.msk [vmem:[#allocation5 + $0x38] sm:$0xff] %vm211, %v284
          %v287 = vld [vmem:[#allocation4] sm:$0xff]
          %v288 = vld [vmem:[#allocation4 + $0x8] sm:$0xff]
          %v289 = vld [vmem:[#allocation4 + $0x18] sm:$0xff]
          %v290 = vld [vmem:[#allocation4 + $0x20] sm:$0xff]
          %v291 = vld [vmem:[#allocation4 + $0x30] sm:$0xff]
          %v292 = vld [vmem:[#allocation4 + $0x38] sm:$0xff]
          %v293 = vld [vmem:[#allocation4 + $0x48] sm:$0xff]
          %v294 = vld [vmem:[#allocation4 + $0x50] sm:$0xff]
          %s295 = sld [smem:[#allocation6]]
          %v296 = vstv %s295
          %v297 = vmul.f32 %v296, %v287
          %v298 = vmul.f32 %v296, %v288
          %v299 = vmul.f32 %v296, %v289
          %v300 = vmul.f32 %v296, %v290
          %v301 = vmul.f32 %v296, %v291
          %v302 = vmul.f32 %v296, %v292
          %v303 = vadd.f32 %v297, 0.0
          %v304 = vadd.f32 %v298, 0.0
          %v305 = vadd.f32 %v299, 0.0
          %v306 = vadd.f32 %v300, 0.0
          %v307 = vadd.f32 %v301, 0.0
          %v308 = vadd.f32 %v302, 0.0
          %s309 = sld [smem:[#allocation6 + $0x7]]
          %v310 = vstv %s309
          %v311 = vmul.f32 %v310, %v287
          %v312 = vmul.f32 %v310, %v288
          %v313 = vmul.f32 %v310, %v289
          %v314 = vmul.f32 %v310, %v290
          %v315 = vmul.f32 %v310, %v291
          %v316 = vmul.f32 %v310, %v292
          %vm323 = vcmask 1046528
          %v324 = vrot.slane %v311, 1
          %v325 = vrot.slane %v313, 1
          %v326 = vsel %vm323, %v324, %v325
          %v327 = vrot.slane %v312, 1
          %v328 = vrot.slane %v314, 1
          %v329 = vsel %vm323, %v327, %v328
          %v330 = vrot.slane %v315, 1
          %v331 = vsel %vm323, %v325, %v330
          %v332 = vrot.slane %v316, 1
          %v333 = vsel %vm323, %v328, %v332
          %v340 = vadd.f32 %v303, %v326
          %v341 = vadd.f32 %v304, %v329
          %v342 = vadd.f32 %v305, %v331
          %v343 = vadd.f32 %v306, %v333
          %v344 = vadd.f32 %v307, %v330
          %v345 = vadd.f32 %v308, %v332
          %s346 = sld [smem:[#allocation6 + $0xe]]
          %v347 = vstv %s346
          %v348 = vmul.f32 %v347, %v287
          %v349 = vmul.f32 %v347, %v288
          %v350 = vmul.f32 %v347, %v289
          %v351 = vmul.f32 %v347, %v290
          %v352 = vmul.f32 %v347, %v291
          %v353 = vmul.f32 %v347, %v292
          %vm360 = vcmask 1045504
          %v361 = vrot.slane %v348, 2
          %v362 = vrot.slane %v350, 2
          %v363 = vsel %vm360, %v361, %v362
          %v364 = vrot.slane %v349, 2
          %v365 = vrot.slane %v351, 2
          %v366 = vsel %vm360, %v364, %v365
          %v367 = vrot.slane %v352, 2
          %v368 = vsel %vm360, %v362, %v367
          %v369 = vrot.slane %v353, 2
          %v370 = vsel %vm360, %v365, %v369
          %v377 = vadd.f32 %v340, %v363
          %v378 = vadd.f32 %v341, %v366
          %v379 = vadd.f32 %v342, %v368
          %v380 = vadd.f32 %v343, %v370
          %v381 = vadd.f32 %v344, %v367
          %v382 = vadd.f32 %v345, %v369
          %s383 = sld [smem:[#allocation6 + $0x15]]
          %v384 = vstv %s383
          %v385 = vmul.f32 %v384, %v289
          %v386 = vmul.f32 %v384, %v290
          %v387 = vmul.f32 %v384, %v291
          %v388 = vmul.f32 %v384, %v292
          %vm393 = vcmask 1044480
          %v394 = vrot.slane %v385, 3
          %v395 = vrot.slane %v386, 3
          %v396 = vrot.slane %v387, 3
          %v397 = vsel %vm393, %v394, %v396
          %v398 = vrot.slane %v388, 3
          %v399 = vsel %vm393, %v395, %v398
          %v406 = vadd.f32 %v377, %v394
          %v407 = vadd.f32 %v378, %v395
          %v408 = vadd.f32 %v379, %v397
          %v409 = vadd.f32 %v380, %v399
          %v410 = vadd.f32 %v381, %v396
          %v411 = vadd.f32 %v382, %v398
          %s412 = sld [smem:[#allocation6 + $0x1c]]
          %v413 = vstv %s412
          %v414 = vmul.f32 %v413, %v289
          %v415 = vmul.f32 %v413, %v290
          %v416 = vmul.f32 %v413, %v291
          %v417 = vmul.f32 %v413, %v292
          %v418 = vmul.f32 %v413, %v293
          %v419 = vmul.f32 %v413, %v294
          %vm426 = vcmask 1043456
          %v427 = vrot.slane %v414, 4
          %v428 = vrot.slane %v415, 4
          %v429 = vrot.slane %v416, 4
          %v430 = vsel %vm426, %v427, %v429
          %v431 = vrot.slane %v417, 4
          %v432 = vsel %vm426, %v428, %v431
          %v433 = vrot.slane %v418, 4
          %v434 = vsel %vm426, %v429, %v433
          %v435 = vrot.slane %v419, 4
          %v436 = vsel %vm426, %v431, %v435
          %v443 = vadd.f32 %v406, %v427
          %v444 = vadd.f32 %v407, %v428
          %v445 = vadd.f32 %v408, %v430
          %v446 = vadd.f32 %v409, %v432
          %v447 = vadd.f32 %v410, %v434
          %v448 = vadd.f32 %v411, %v436
          %s449 = sld [smem:[#allocation6 + $0x23]]
          %v450 = vstv %s449
          %v451 = vmul.f32 %v450, %v289
          %v452 = vmul.f32 %v450, %v290
          %v453 = vmul.f32 %v450, %v291
          %v454 = vmul.f32 %v450, %v292
          %v455 = vmul.f32 %v450, %v293
          %v456 = vmul.f32 %v450, %v294
          %vm463 = vcmask 1042432
          %v464 = vrot.slane %v451, 5
          %v465 = vrot.slane %v452, 5
          %v466 = vrot.slane %v453, 5
          %v467 = vsel %vm463, %v464, %v466
          %v468 = vrot.slane %v454, 5
          %v469 = vsel %vm463, %v465, %v468
          %v470 = vrot.slane %v455, 5
          %v471 = vsel %vm463, %v466, %v470
          %v472 = vrot.slane %v456, 5
          %v473 = vsel %vm463, %v468, %v472
          %v480 = vadd.f32 %v443, %v464
          %v481 = vadd.f32 %v444, %v465
          %v482 = vadd.f32 %v445, %v467
          %v483 = vadd.f32 %v446, %v469
          %v484 = vadd.f32 %v447, %v471
          %v485 = vadd.f32 %v448, %v473
          %s486 = sld [smem:[#allocation6 + $0x2a]]
          %v487 = vstv %s486
          %v488 = vmul.f32 %v487, %v289
          %v489 = vmul.f32 %v487, %v290
          %v490 = vmul.f32 %v487, %v291
          %v491 = vmul.f32 %v487, %v292
          %v492 = vmul.f32 %v487, %v293
          %v493 = vmul.f32 %v487, %v294
          %vm500 = vcmask 1041408
          %v501 = vrot.slane %v488, 6
          %v502 = vrot.slane %v489, 6
          %v503 = vrot.slane %v490, 6
          %v504 = vsel %vm500, %v501, %v503
          %v505 = vrot.slane %v491, 6
          %v506 = vsel %vm500, %v502, %v505
          %v507 = vrot.slane %v492, 6
          %v508 = vsel %vm500, %v503, %v507
          %v509 = vrot.slane %v493, 6
          %v510 = vsel %vm500, %v505, %v509
          %v517 = vadd.f32 %v480, %v501
          %v518 = vadd.f32 %v481, %v502
          %v519 = vadd.f32 %v482, %v504
          %v520 = vadd.f32 %v483, %v506
          %v521 = vadd.f32 %v484, %v508
          %v522 = vadd.f32 %v485, %v510
          %s523 = sld [smem:[#allocation6 + $0x1]]
          %v524 = vstv %s523
          %v525 = vmul.f32 %v524, %v287
          %v526 = vmul.f32 %v524, %v288
          %v527 = vmul.f32 %v524, %v289
          %v528 = vmul.f32 %v524, %v290
          %v529 = vmul.f32 %v524, %v291
          %v530 = vmul.f32 %v524, %v292
          %537 = vrot.lane.b32.xlu0 %v525, 127
          %v538 = vpop.permute.xlu0 %537
          %539 = vrot.lane.b32.xlu0 %v526, 127
          %v540 = vpop.permute.xlu0 %539
          %541 = vrot.lane.b32.xlu0 %v527, 127
          %v542 = vpop.permute.xlu0 %541
          %543 = vrot.lane.b32.xlu0 %v528, 127
          %v544 = vpop.permute.xlu0 %543
          %545 = vrot.lane.b32.xlu0 %v529, 127
          %v546 = vpop.permute.xlu0 %545
          %547 = vrot.lane.b32.xlu0 %v530, 127
          %v548 = vpop.permute.xlu0 %547
          %vm549 = vcmask 1039360
          %v550 = vsel %vm549, %v538, %v540
          %v551 = vsel %vm549, %v542, %v544
          %v552 = vsel %vm549, %v546, %v548
          %v559 = vadd.f32 %v517, %v550
          %v560 = vadd.f32 %v518, %v540
          %v561 = vadd.f32 %v519, %v551
          %v562 = vadd.f32 %v520, %v544
          %v563 = vadd.f32 %v521, %v552
          %v564 = vadd.f32 %v522, %v548
          %s565 = sld [smem:[#allocation6 + $0x8]]
          %v566 = vstv %s565
          %v567 = vmul.f32 %v566, %v287
          %v568 = vmul.f32 %v566, %v288
          %v569 = vmul.f32 %v566, %v289
          %v570 = vmul.f32 %v566, %v290
          %v571 = vmul.f32 %v566, %v291
          %v572 = vmul.f32 %v566, %v292
          %v579 = vrot.slane %v567, 1
          %v580 = vrot.slane %v569, 1
          %v581 = vsel %vm323, %v579, %v580
          %v582 = vrot.slane %v568, 1
          %v583 = vrot.slane %v570, 1
          %v584 = vsel %vm323, %v582, %v583
          %v585 = vrot.slane %v571, 1
          %v586 = vsel %vm323, %v580, %v585
          %v587 = vrot.slane %v572, 1
          %v588 = vsel %vm323, %v583, %v587
          %589 = vrot.lane.b32.xlu0 %v581, 127
          %v590 = vpop.permute.xlu0 %589
          %591 = vrot.lane.b32.xlu0 %v584, 127
          %v592 = vpop.permute.xlu0 %591
          %593 = vrot.lane.b32.xlu0 %v586, 127
          %v594 = vpop.permute.xlu0 %593
          %595 = vrot.lane.b32.xlu0 %v588, 127
          %v596 = vpop.permute.xlu0 %595
          %597 = vrot.lane.b32.xlu0 %v585, 127
          %v598 = vpop.permute.xlu0 %597
          %599 = vrot.lane.b32.xlu0 %v587, 127
          %v600 = vpop.permute.xlu0 %599
          %v601 = vsel %vm549, %v590, %v592
          %v602 = vsel %vm549, %v594, %v596
          %v603 = vsel %vm549, %v598, %v600
          %v610 = vadd.f32 %v559, %v601
          %v611 = vadd.f32 %v560, %v592
          %v612 = vadd.f32 %v561, %v602
          %v613 = vadd.f32 %v562, %v596
          %v614 = vadd.f32 %v563, %v603
          %v615 = vadd.f32 %v564, %v600
          %s616 = sld [smem:[#allocation6 + $0xf]]
          %v617 = vstv %s616
          %v618 = vmul.f32 %v617, %v287
          %v619 = vmul.f32 %v617, %v288
          %v620 = vmul.f32 %v617, %v289
          %v621 = vmul.f32 %v617, %v290
          %v622 = vmul.f32 %v617, %v291
          %v623 = vmul.f32 %v617, %v292
          %v630 = vrot.slane %v618, 2
          %v631 = vrot.slane %v620, 2
          %v632 = vsel %vm360, %v630, %v631
          %v633 = vrot.slane %v619, 2
          %v634 = vrot.slane %v621, 2
          %v635 = vsel %vm360, %v633, %v634
          %v636 = vrot.slane %v622, 2
          %v637 = vsel %vm360, %v631, %v636
          %v638 = vrot.slane %v623, 2
          %v639 = vsel %vm360, %v634, %v638
          %640 = vrot.lane.b32.xlu0 %v632, 127
          %v641 = vpop.permute.xlu0 %640
          %642 = vrot.lane.b32.xlu0 %v635, 127
          %v643 = vpop.permute.xlu0 %642
          %644 = vrot.lane.b32.xlu0 %v637, 127
          %v645 = vpop.permute.xlu0 %644
          %646 = vrot.lane.b32.xlu0 %v639, 127
          %v647 = vpop.permute.xlu0 %646
          %648 = vrot.lane.b32.xlu0 %v636, 127
          %v649 = vpop.permute.xlu0 %648
          %650 = vrot.lane.b32.xlu0 %v638, 127
          %v651 = vpop.permute.xlu0 %650
          %v652 = vsel %vm549, %v641, %v643
          %v653 = vsel %vm549, %v645, %v647
          %v654 = vsel %vm549, %v649, %v651
          %v661 = vadd.f32 %v610, %v652
          %v662 = vadd.f32 %v611, %v643
          %v663 = vadd.f32 %v612, %v653
          %v664 = vadd.f32 %v613, %v647
          %v665 = vadd.f32 %v614, %v654
          %v666 = vadd.f32 %v615, %v651
          %s667 = sld [smem:[#allocation6 + $0x16]]
          %v668 = vstv %s667
          %v669 = vmul.f32 %v668, %v289
          %v670 = vmul.f32 %v668, %v290
          %v671 = vmul.f32 %v668, %v291
          %v672 = vmul.f32 %v668, %v292
          %v677 = vrot.slane %v669, 3
          %v678 = vrot.slane %v670, 3
          %v679 = vrot.slane %v671, 3
          %v680 = vsel %vm393, %v677, %v679
          %v681 = vrot.slane %v672, 3
          %v682 = vsel %vm393, %v678, %v681
          %683 = vrot.lane.b32.xlu0 %v677, 127
          %v684 = vpop.permute.xlu0 %683
          %685 = vrot.lane.b32.xlu0 %v678, 127
          %v686 = vpop.permute.xlu0 %685
          %687 = vrot.lane.b32.xlu0 %v680, 127
          %v688 = vpop.permute.xlu0 %687
          %689 = vrot.lane.b32.xlu0 %v682, 127
          %v690 = vpop.permute.xlu0 %689
          %691 = vrot.lane.b32.xlu0 %v679, 127
          %v692 = vpop.permute.xlu0 %691
          %693 = vrot.lane.b32.xlu0 %v681, 127
          %v694 = vpop.permute.xlu0 %693
          %v695 = vsel %vm549, %v684, %v686
          %v696 = vsel %vm549, %v688, %v690
          %v697 = vsel %vm549, %v692, %v694
          %v704 = vadd.f32 %v661, %v695
          %v705 = vadd.f32 %v662, %v686
          %v706 = vadd.f32 %v663, %v696
          %v707 = vadd.f32 %v664, %v690
          %v708 = vadd.f32 %v665, %v697
          %v709 = vadd.f32 %v666, %v694
          %s710 = sld [smem:[#allocation6 + $0x1d]]
          %v711 = vstv %s710
          %v712 = vmul.f32 %v711, %v289
          %v713 = vmul.f32 %v711, %v290
          %v714 = vmul.f32 %v711, %v291
          %v715 = vmul.f32 %v711, %v292
          %v716 = vmul.f32 %v711, %v293
          %v717 = vmul.f32 %v711, %v294
          %v724 = vrot.slane %v712, 4
          %v725 = vrot.slane %v713, 4
          %v726 = vrot.slane %v714, 4
          %v727 = vsel %vm426, %v724, %v726
          %v728 = vrot.slane %v715, 4
          %v729 = vsel %vm426, %v725, %v728
          %v730 = vrot.slane %v716, 4
          %v731 = vsel %vm426, %v726, %v730
          %v732 = vrot.slane %v717, 4
          %v733 = vsel %vm426, %v728, %v732
          %734 = vrot.lane.b32.xlu0 %v724, 127
          %v735 = vpop.permute.xlu0 %734
          %736 = vrot.lane.b32.xlu0 %v725, 127
          %v737 = vpop.permute.xlu0 %736
          %738 = vrot.lane.b32.xlu0 %v727, 127
          %v739 = vpop.permute.xlu0 %738
          %740 = vrot.lane.b32.xlu0 %v729, 127
          %v741 = vpop.permute.xlu0 %740
          %742 = vrot.lane.b32.xlu0 %v731, 127
          %v743 = vpop.permute.xlu0 %742
          %744 = vrot.lane.b32.xlu0 %v733, 127
          %v745 = vpop.permute.xlu0 %744
          %v746 = vsel %vm549, %v735, %v737
          %v747 = vsel %vm549, %v739, %v741
          %v748 = vsel %vm549, %v743, %v745
          %v755 = vadd.f32 %v704, %v746
          %v756 = vadd.f32 %v705, %v737
          %v757 = vadd.f32 %v706, %v747
          %v758 = vadd.f32 %v707, %v741
          %v759 = vadd.f32 %v708, %v748
          %v760 = vadd.f32 %v709, %v745
          %s761 = sld [smem:[#allocation6 + $0x24]]
          %v762 = vstv %s761
          %v763 = vmul.f32 %v762, %v289
          %v764 = vmul.f32 %v762, %v290
          %v765 = vmul.f32 %v762, %v291
          %v766 = vmul.f32 %v762, %v292
          %v767 = vmul.f32 %v762, %v293
          %v768 = vmul.f32 %v762, %v294
          %v775 = vrot.slane %v763, 5
          %v776 = vrot.slane %v764, 5
          %v777 = vrot.slane %v765, 5
          %v778 = vsel %vm463, %v775, %v777
          %v779 = vrot.slane %v766, 5
          %v780 = vsel %vm463, %v776, %v779
          %v781 = vrot.slane %v767, 5
          %v782 = vsel %vm463, %v777, %v781
          %v783 = vrot.slane %v768, 5
          %v784 = vsel %vm463, %v779, %v783
          %785 = vrot.lane.b32.xlu0 %v775, 127
          %v786 = vpop.permute.xlu0 %785
          %787 = vrot.lane.b32.xlu0 %v776, 127
          %v788 = vpop.permute.xlu0 %787
          %789 = vrot.lane.b32.xlu0 %v778, 127
          %v790 = vpop.permute.xlu0 %789
          %791 = vrot.lane.b32.xlu0 %v780, 127
          %v792 = vpop.permute.xlu0 %791
          %793 = vrot.lane.b32.xlu0 %v782, 127
          %v794 = vpop.permute.xlu0 %793
          %795 = vrot.lane.b32.xlu0 %v784, 127
          %v796 = vpop.permute.xlu0 %795
          %v797 = vsel %vm549, %v786, %v788
          %v798 = vsel %vm549, %v790, %v792
          %v799 = vsel %vm549, %v794, %v796
          %v806 = vadd.f32 %v755, %v797
          %v807 = vadd.f32 %v756, %v788
          %v808 = vadd.f32 %v757, %v798
          %v809 = vadd.f32 %v758, %v792
          %v810 = vadd.f32 %v759, %v799
          %v811 = vadd.f32 %v760, %v796
          %s812 = sld [smem:[#allocation6 + $0x2b]]
          %v813 = vstv %s812
          %v814 = vmul.f32 %v813, %v289
          %v815 = vmul.f32 %v813, %v290
          %v816 = vmul.f32 %v813, %v291
          %v817 = vmul.f32 %v813, %v292
          %v818 = vmul.f32 %v813, %v293
          %v819 = vmul.f32 %v813, %v294
          %v826 = vrot.slane %v814, 6
          %v827 = vrot.slane %v815, 6
          %v828 = vrot.slane %v816, 6
          %v829 = vsel %vm500, %v826, %v828
          %v830 = vrot.slane %v817, 6
          %v831 = vsel %vm500, %v827, %v830
          %v832 = vrot.slane %v818, 6
          %v833 = vsel %vm500, %v828, %v832
          %v834 = vrot.slane %v819, 6
          %v835 = vsel %vm500, %v830, %v834
          %836 = vrot.lane.b32.xlu0 %v826, 127
          %v837 = vpop.permute.xlu0 %836
          %838 = vrot.lane.b32.xlu0 %v827, 127
          %v839 = vpop.permute.xlu0 %838
          %840 = vrot.lane.b32.xlu0 %v829, 127
          %v841 = vpop.permute.xlu0 %840
          %842 = vrot.lane.b32.xlu0 %v831, 127
          %v843 = vpop.permute.xlu0 %842
          %844 = vrot.lane.b32.xlu0 %v833, 127
          %v845 = vpop.permute.xlu0 %844
          %846 = vrot.lane.b32.xlu0 %v835, 127
          %v847 = vpop.permute.xlu0 %846
          %v848 = vsel %vm549, %v837, %v839
          %v849 = vsel %vm549, %v841, %v843
          %v850 = vsel %vm549, %v845, %v847
          %v857 = vadd.f32 %v806, %v848
          %v858 = vadd.f32 %v807, %v839
          %v859 = vadd.f32 %v808, %v849
          %v860 = vadd.f32 %v809, %v843
          %v861 = vadd.f32 %v810, %v850
          %v862 = vadd.f32 %v811, %v847
          %s863 = sld [smem:[#allocation6 + $0x2]]
          %v864 = vstv %s863
          %v865 = vmul.f32 %v864, %v287
          %v866 = vmul.f32 %v864, %v288
          %v867 = vmul.f32 %v864, %v289
          %v868 = vmul.f32 %v864, %v290
          %v869 = vmul.f32 %v864, %v291
          %v870 = vmul.f32 %v864, %v292
          %877 = vrot.lane.b32.xlu0 %v865, 126
          %v878 = vpop.permute.xlu0 %877
          %879 = vrot.lane.b32.xlu0 %v866, 126
          %v880 = vpop.permute.xlu0 %879
          %881 = vrot.lane.b32.xlu0 %v867, 126
          %v882 = vpop.permute.xlu0 %881
          %883 = vrot.lane.b32.xlu0 %v868, 126
          %v884 = vpop.permute.xlu0 %883
          %885 = vrot.lane.b32.xlu0 %v869, 126
          %v886 = vpop.permute.xlu0 %885
          %887 = vrot.lane.b32.xlu0 %v870, 126
          %v888 = vpop.permute.xlu0 %887
          %vm889 = vcmask 1031168
          %v890 = vsel %vm889, %v878, %v880
          %v891 = vsel %vm889, %v882, %v884
          %v892 = vsel %vm889, %v886, %v888
          %v899 = vadd.f32 %v857, %v890
          %v900 = vadd.f32 %v858, %v880
          %v901 = vadd.f32 %v859, %v891
          %v902 = vadd.f32 %v860, %v884
          %v903 = vadd.f32 %v861, %v892
          %v904 = vadd.f32 %v862, %v888
          %s905 = sld [smem:[#allocation6 + $0x9]]
          %v906 = vstv %s905
          %v907 = vmul.f32 %v906, %v287
          %v908 = vmul.f32 %v906, %v288
          %v909 = vmul.f32 %v906, %v289
          %v910 = vmul.f32 %v906, %v290
          %v911 = vmul.f32 %v906, %v291
          %v912 = vmul.f32 %v906, %v292
          %v919 = vrot.slane %v907, 1
          %v920 = vrot.slane %v909, 1
          %v921 = vsel %vm323, %v919, %v920
          %v922 = vrot.slane %v908, 1
          %v923 = vrot.slane %v910, 1
          %v924 = vsel %vm323, %v922, %v923
          %v925 = vrot.slane %v911, 1
          %v926 = vsel %vm323, %v920, %v925
          %v927 = vrot.slane %v912, 1
          %v928 = vsel %vm323, %v923, %v927
          %929 = vrot.lane.b32.xlu0 %v921, 126
          %v930 = vpop.permute.xlu0 %929
          %931 = vrot.lane.b32.xlu0 %v924, 126
          %v932 = vpop.permute.xlu0 %931
          %933 = vrot.lane.b32.xlu0 %v926, 126
          %v934 = vpop.permute.xlu0 %933
          %935 = vrot.lane.b32.xlu0 %v928, 126
          %v936 = vpop.permute.xlu0 %935
          %937 = vrot.lane.b32.xlu0 %v925, 126
          %v938 = vpop.permute.xlu0 %937
          %939 = vrot.lane.b32.xlu0 %v927, 126
          %v940 = vpop.permute.xlu0 %939
          %v941 = vsel %vm889, %v930, %v932
          %v942 = vsel %vm889, %v934, %v936
          %v943 = vsel %vm889, %v938, %v940
          %v950 = vadd.f32 %v899, %v941
          %v951 = vadd.f32 %v900, %v932
          %v952 = vadd.f32 %v901, %v942
          %v953 = vadd.f32 %v902, %v936
          %v954 = vadd.f32 %v903, %v943
          %v955 = vadd.f32 %v904, %v940
          %s956 = sld [smem:[#allocation6 + $0x10]]
          %v957 = vstv %s956
          %v958 = vmul.f32 %v957, %v287
          %v959 = vmul.f32 %v957, %v288
          %v960 = vmul.f32 %v957, %v289
          %v961 = vmul.f32 %v957, %v290
          %v962 = vmul.f32 %v957, %v291
          %v963 = vmul.f32 %v957, %v292
          %v970 = vrot.slane %v958, 2
          %v971 = vrot.slane %v960, 2
          %v972 = vsel %vm360, %v970, %v971
          %v973 = vrot.slane %v959, 2
          %v974 = vrot.slane %v961, 2
          %v975 = vsel %vm360, %v973, %v974
          %v976 = vrot.slane %v962, 2
          %v977 = vsel %vm360, %v971, %v976
          %v978 = vrot.slane %v963, 2
          %v979 = vsel %vm360, %v974, %v978
          %980 = vrot.lane.b32.xlu0 %v972, 126
          %v981 = vpop.permute.xlu0 %980
          %982 = vrot.lane.b32.xlu0 %v975, 126
          %v983 = vpop.permute.xlu0 %982
          %984 = vrot.lane.b32.xlu0 %v977, 126
          %v985 = vpop.permute.xlu0 %984
          %986 = vrot.lane.b32.xlu0 %v979, 126
          %v987 = vpop.permute.xlu0 %986
          %988 = vrot.lane.b32.xlu0 %v976, 126
          %v989 = vpop.permute.xlu0 %988
          %990 = vrot.lane.b32.xlu0 %v978, 126
          %v991 = vpop.permute.xlu0 %990
          %v992 = vsel %vm889, %v981, %v983
          %v993 = vsel %vm889, %v985, %v987
          %v994 = vsel %vm889, %v989, %v991
          %v1001 = vadd.f32 %v950, %v992
          %v1002 = vadd.f32 %v951, %v983
          %v1003 = vadd.f32 %v952, %v993
          %v1004 = vadd.f32 %v953, %v987
          %v1005 = vadd.f32 %v954, %v994
          %v1006 = vadd.f32 %v955, %v991
          %s1007 = sld [smem:[#allocation6 + $0x17]]
          %v1008 = vstv %s1007
          %v1009 = vmul.f32 %v1008, %v289
          %v1010 = vmul.f32 %v1008, %v290
          %v1011 = vmul.f32 %v1008, %v291
          %v1012 = vmul.f32 %v1008, %v292
          %v1017 = vrot.slane %v1009, 3
          %v1018 = vrot.slane %v1010, 3
          %v1019 = vrot.slane %v1011, 3
          %v1020 = vsel %vm393, %v1017, %v1019
          %v1021 = vrot.slane %v1012, 3
          %v1022 = vsel %vm393, %v1018, %v1021
          %1023 = vrot.lane.b32.xlu0 %v1017, 126
          %v1024 = vpop.permute.xlu0 %1023
          %1025 = vrot.lane.b32.xlu0 %v1018, 126
          %v1026 = vpop.permute.xlu0 %1025
          %1027 = vrot.lane.b32.xlu0 %v1020, 126
          %v1028 = vpop.permute.xlu0 %1027
          %1029 = vrot.lane.b32.xlu0 %v1022, 126
          %v1030 = vpop.permute.xlu0 %1029
          %1031 = vrot.lane.b32.xlu0 %v1019, 126
          %v1032 = vpop.permute.xlu0 %1031
          %1033 = vrot.lane.b32.xlu0 %v1021, 126
          %v1034 = vpop.permute.xlu0 %1033
          %v1035 = vsel %vm889, %v1024, %v1026
          %v1036 = vsel %vm889, %v1028, %v1030
          %v1037 = vsel %vm889, %v1032, %v1034
          %v1044 = vadd.f32 %v1001, %v1035
          %v1045 = vadd.f32 %v1002, %v1026
          %v1046 = vadd.f32 %v1003, %v1036
          %v1047 = vadd.f32 %v1004, %v1030
          %v1048 = vadd.f32 %v1005, %v1037
          %v1049 = vadd.f32 %v1006, %v1034
          %s1050 = sld [smem:[#allocation6 + $0x1e]]
          %v1051 = vstv %s1050
          %v1052 = vmul.f32 %v1051, %v289
          %v1053 = vmul.f32 %v1051, %v290
          %v1054 = vmul.f32 %v1051, %v291
          %v1055 = vmul.f32 %v1051, %v292
          %v1056 = vmul.f32 %v1051, %v293
          %v1057 = vmul.f32 %v1051, %v294
          %v1064 = vrot.slane %v1052, 4
          %v1065 = vrot.slane %v1053, 4
          %v1066 = vrot.slane %v1054, 4
          %v1067 = vsel %vm426, %v1064, %v1066
          %v1068 = vrot.slane %v1055, 4
          %v1069 = vsel %vm426, %v1065, %v1068
          %v1070 = vrot.slane %v1056, 4
          %v1071 = vsel %vm426, %v1066, %v1070
          %v1072 = vrot.slane %v1057, 4
          %v1073 = vsel %vm426, %v1068, %v1072
          %1074 = vrot.lane.b32.xlu0 %v1064, 126
          %v1075 = vpop.permute.xlu0 %1074
          %1076 = vrot.lane.b32.xlu0 %v1065, 126
          %v1077 = vpop.permute.xlu0 %1076
          %1078 = vrot.lane.b32.xlu0 %v1067, 126
          %v1079 = vpop.permute.xlu0 %1078
          %1080 = vrot.lane.b32.xlu0 %v1069, 126
          %v1081 = vpop.permute.xlu0 %1080
          %1082 = vrot.lane.b32.xlu0 %v1071, 126
          %v1083 = vpop.permute.xlu0 %1082
          %1084 = vrot.lane.b32.xlu0 %v1073, 126
          %v1085 = vpop.permute.xlu0 %1084
          %v1086 = vsel %vm889, %v1075, %v1077
          %v1087 = vsel %vm889, %v1079, %v1081
          %v1088 = vsel %vm889, %v1083, %v1085
          %v1095 = vadd.f32 %v1044, %v1086
          %v1096 = vadd.f32 %v1045, %v1077
          %v1097 = vadd.f32 %v1046, %v1087
          %v1098 = vadd.f32 %v1047, %v1081
          %v1099 = vadd.f32 %v1048, %v1088
          %v1100 = vadd.f32 %v1049, %v1085
          %s1101 = sld [smem:[#allocation6 + $0x25]]
          %v1102 = vstv %s1101
          %v1103 = vmul.f32 %v1102, %v289
          %v1104 = vmul.f32 %v1102, %v290
          %v1105 = vmul.f32 %v1102, %v291
          %v1106 = vmul.f32 %v1102, %v292
          %v1107 = vmul.f32 %v1102, %v293
          %v1108 = vmul.f32 %v1102, %v294
          %v1115 = vrot.slane %v1103, 5
          %v1116 = vrot.slane %v1104, 5
          %v1117 = vrot.slane %v1105, 5
          %v1118 = vsel %vm463, %v1115, %v1117
          %v1119 = vrot.slane %v1106, 5
          %v1120 = vsel %vm463, %v1116, %v1119
          %v1121 = vrot.slane %v1107, 5
          %v1122 = vsel %vm463, %v1117, %v1121
          %v1123 = vrot.slane %v1108, 5
          %v1124 = vsel %vm463, %v1119, %v1123
          %1125 = vrot.lane.b32.xlu0 %v1115, 126
          %v1126 = vpop.permute.xlu0 %1125
          %1127 = vrot.lane.b32.xlu0 %v1116, 126
          %v1128 = vpop.permute.xlu0 %1127
          %1129 = vrot.lane.b32.xlu0 %v1118, 126
          %v1130 = vpop.permute.xlu0 %1129
          %1131 = vrot.lane.b32.xlu0 %v1120, 126
          %v1132 = vpop.permute.xlu0 %1131
          %1133 = vrot.lane.b32.xlu0 %v1122, 126
          %v1134 = vpop.permute.xlu0 %1133
          %1135 = vrot.lane.b32.xlu0 %v1124, 126
          %v1136 = vpop.permute.xlu0 %1135
          %v1137 = vsel %vm889, %v1126, %v1128
          %v1138 = vsel %vm889, %v1130, %v1132
          %v1139 = vsel %vm889, %v1134, %v1136
          %v1146 = vadd.f32 %v1095, %v1137
          %v1147 = vadd.f32 %v1096, %v1128
          %v1148 = vadd.f32 %v1097, %v1138
          %v1149 = vadd.f32 %v1098, %v1132
          %v1150 = vadd.f32 %v1099, %v1139
          %v1151 = vadd.f32 %v1100, %v1136
          %s1152 = sld [smem:[#allocation6 + $0x2c]]
          %v1153 = vstv %s1152
          %v1154 = vmul.f32 %v1153, %v289
          %v1155 = vmul.f32 %v1153, %v290
          %v1156 = vmul.f32 %v1153, %v291
          %v1157 = vmul.f32 %v1153, %v292
          %v1158 = vmul.f32 %v1153, %v293
          %v1159 = vmul.f32 %v1153, %v294
          %v1166 = vrot.slane %v1154, 6
          %v1167 = vrot.slane %v1155, 6
          %v1168 = vrot.slane %v1156, 6
          %v1169 = vsel %vm500, %v1166, %v1168
          %v1170 = vrot.slane %v1157, 6
          %v1171 = vsel %vm500, %v1167, %v1170
          %v1172 = vrot.slane %v1158, 6
          %v1173 = vsel %vm500, %v1168, %v1172
          %v1174 = vrot.slane %v1159, 6
          %v1175 = vsel %vm500, %v1170, %v1174
          %1176 = vrot.lane.b32.xlu0 %v1166, 126
          %v1177 = vpop.permute.xlu0 %1176
          %1178 = vrot.lane.b32.xlu0 %v1167, 126
          %v1179 = vpop.permute.xlu0 %1178
          %1180 = vrot.lane.b32.xlu0 %v1169, 126
          %v1181 = vpop.permute.xlu0 %1180
          %1182 = vrot.lane.b32.xlu0 %v1171, 126
          %v1183 = vpop.permute.xlu0 %1182
          %1184 = vrot.lane.b32.xlu0 %v1173, 126
          %v1185 = vpop.permute.xlu0 %1184
          %1186 = vrot.lane.b32.xlu0 %v1175, 126
          %v1187 = vpop.permute.xlu0 %1186
          %v1188 = vsel %vm889, %v1177, %v1179
          %v1189 = vsel %vm889, %v1181, %v1183
          %v1190 = vsel %vm889, %v1185, %v1187
          %v1197 = vadd.f32 %v1146, %v1188
          %v1198 = vadd.f32 %v1147, %v1179
          %v1199 = vadd.f32 %v1148, %v1189
          %v1200 = vadd.f32 %v1149, %v1183
          %v1201 = vadd.f32 %v1150, %v1190
          %v1202 = vadd.f32 %v1151, %v1187
          %s1203 = sld [smem:[#allocation6 + $0x3]]
          %v1204 = vstv %s1203
          %v1205 = vmul.f32 %v1204, %v288
          %v1206 = vmul.f32 %v1204, %v290
          %v1207 = vmul.f32 %v1204, %v292
          %1211 = vrot.lane.b32.xlu0 %v1205, 125
          %v1212 = vpop.permute.xlu0 %1211
          %1213 = vrot.lane.b32.xlu0 %v1206, 125
          %v1214 = vpop.permute.xlu0 %1213
          %1215 = vrot.lane.b32.xlu0 %v1207, 125
          %v1216 = vpop.permute.xlu0 %1215
          %v1220 = vadd.f32 %v1197, %v1212
          %v1221 = vadd.f32 %v1198, %v1212
          %v1222 = vadd.f32 %v1199, %v1214
          %v1223 = vadd.f32 %v1200, %v1214
          %v1224 = vadd.f32 %v1201, %v1216
          %v1225 = vadd.f32 %v1202, %v1216
          %s1226 = sld [smem:[#allocation6 + $0xa]]
          %v1227 = vstv %s1226
          %v1228 = vmul.f32 %v1227, %v288
          %v1229 = vmul.f32 %v1227, %v290
          %v1230 = vmul.f32 %v1227, %v292
          %v1234 = vrot.slane %v1228, 1
          %v1235 = vrot.slane %v1229, 1
          %v1236 = vsel %vm323, %v1234, %v1235
          %v1237 = vrot.slane %v1230, 1
          %v1238 = vsel %vm323, %v1235, %v1237
          %1239 = vrot.lane.b32.xlu0 %v1236, 125
          %v1240 = vpop.permute.xlu0 %1239
          %1241 = vrot.lane.b32.xlu0 %v1238, 125
          %v1242 = vpop.permute.xlu0 %1241
          %1243 = vrot.lane.b32.xlu0 %v1237, 125
          %v1244 = vpop.permute.xlu0 %1243
          %v1248 = vadd.f32 %v1220, %v1240
          %v1249 = vadd.f32 %v1221, %v1240
          %v1250 = vadd.f32 %v1222, %v1242
          %v1251 = vadd.f32 %v1223, %v1242
          %v1252 = vadd.f32 %v1224, %v1244
          %v1253 = vadd.f32 %v1225, %v1244
          %s1254 = sld [smem:[#allocation6 + $0x11]]
          %v1255 = vstv %s1254
          %v1256 = vmul.f32 %v1255, %v288
          %v1257 = vmul.f32 %v1255, %v290
          %v1258 = vmul.f32 %v1255, %v292
          %v1262 = vrot.slane %v1256, 2
          %v1263 = vrot.slane %v1257, 2
          %v1264 = vsel %vm360, %v1262, %v1263
          %v1265 = vrot.slane %v1258, 2
          %v1266 = vsel %vm360, %v1263, %v1265
          %1267 = vrot.lane.b32.xlu0 %v1264, 125
          %v1268 = vpop.permute.xlu0 %1267
          %1269 = vrot.lane.b32.xlu0 %v1266, 125
          %v1270 = vpop.permute.xlu0 %1269
          %1271 = vrot.lane.b32.xlu0 %v1265, 125
          %v1272 = vpop.permute.xlu0 %1271
          %v1276 = vadd.f32 %v1248, %v1268
          %v1277 = vadd.f32 %v1249, %v1268
          %v1278 = vadd.f32 %v1250, %v1270
          %v1279 = vadd.f32 %v1251, %v1270
          %v1280 = vadd.f32 %v1252, %v1272
          %v1281 = vadd.f32 %v1253, %v1272
          %s1282 = sld [smem:[#allocation6 + $0x18]]
          %v1283 = vstv %s1282
          %v1284 = vmul.f32 %v1283, %v290
          %v1285 = vmul.f32 %v1283, %v292
          %v1288 = vrot.slane %v1284, 3
          %v1289 = vrot.slane %v1285, 3
          %v1290 = vsel %vm393, %v1288, %v1289
          %1291 = vrot.lane.b32.xlu0 %v1288, 125
          %v1292 = vpop.permute.xlu0 %1291
          %1293 = vrot.lane.b32.xlu0 %v1290, 125
          %v1294 = vpop.permute.xlu0 %1293
          %1295 = vrot.lane.b32.xlu0 %v1289, 125
          %v1296 = vpop.permute.xlu0 %1295
          %v1300 = vadd.f32 %v1276, %v1292
          %v1301 = vadd.f32 %v1277, %v1292
          %v1302 = vadd.f32 %v1278, %v1294
          %v1303 = vadd.f32 %v1279, %v1294
          %v1304 = vadd.f32 %v1280, %v1296
          %v1305 = vadd.f32 %v1281, %v1296
          %s1306 = sld [smem:[#allocation6 + $0x1f]]
          %v1307 = vstv %s1306
          %v1308 = vmul.f32 %v1307, %v290
          %v1309 = vmul.f32 %v1307, %v292
          %v1310 = vmul.f32 %v1307, %v294
          %v1314 = vrot.slane %v1308, 4
          %v1315 = vrot.slane %v1309, 4
          %v1316 = vsel %vm426, %v1314, %v1315
          %v1317 = vrot.slane %v1310, 4
          %v1318 = vsel %vm426, %v1315, %v1317
          %1319 = vrot.lane.b32.xlu0 %v1314, 125
          %v1320 = vpop.permute.xlu0 %1319
          %1321 = vrot.lane.b32.xlu0 %v1316, 125
          %v1322 = vpop.permute.xlu0 %1321
          %1323 = vrot.lane.b32.xlu0 %v1318, 125
          %v1324 = vpop.permute.xlu0 %1323
          %v1328 = vadd.f32 %v1300, %v1320
          %v1329 = vadd.f32 %v1301, %v1320
          %v1330 = vadd.f32 %v1302, %v1322
          %v1331 = vadd.f32 %v1303, %v1322
          %v1332 = vadd.f32 %v1304, %v1324
          %v1333 = vadd.f32 %v1305, %v1324
          %s1334 = sld [smem:[#allocation6 + $0x26]]
          %v1335 = vstv %s1334
          %v1336 = vmul.f32 %v1335, %v290
          %v1337 = vmul.f32 %v1335, %v292
          %v1338 = vmul.f32 %v1335, %v294
          %v1342 = vrot.slane %v1336, 5
          %v1343 = vrot.slane %v1337, 5
          %v1344 = vsel %vm463, %v1342, %v1343
          %v1345 = vrot.slane %v1338, 5
          %v1346 = vsel %vm463, %v1343, %v1345
          %1347 = vrot.lane.b32.xlu0 %v1342, 125
          %v1348 = vpop.permute.xlu0 %1347
          %1349 = vrot.lane.b32.xlu0 %v1344, 125
          %v1350 = vpop.permute.xlu0 %1349
          %1351 = vrot.lane.b32.xlu0 %v1346, 125
          %v1352 = vpop.permute.xlu0 %1351
          %v1356 = vadd.f32 %v1328, %v1348
          %v1357 = vadd.f32 %v1329, %v1348
          %v1358 = vadd.f32 %v1330, %v1350
          %v1359 = vadd.f32 %v1331, %v1350
          %v1360 = vadd.f32 %v1332, %v1352
          %v1361 = vadd.f32 %v1333, %v1352
          %s1362 = sld [smem:[#allocation6 + $0x2d]]
          %v1363 = vstv %s1362
          %v1364 = vmul.f32 %v1363, %v290
          %v1365 = vmul.f32 %v1363, %v292
          %v1366 = vmul.f32 %v1363, %v294
          %v1370 = vrot.slane %v1364, 6
          %v1371 = vrot.slane %v1365, 6
          %v1372 = vsel %vm500, %v1370, %v1371
          %v1373 = vrot.slane %v1366, 6
          %v1374 = vsel %vm500, %v1371, %v1373
          %1375 = vrot.lane.b32.xlu0 %v1370, 125
          %v1376 = vpop.permute.xlu0 %1375
          %1377 = vrot.lane.b32.xlu0 %v1372, 125
          %v1378 = vpop.permute.xlu0 %1377
          %1379 = vrot.lane.b32.xlu0 %v1374, 125
          %v1380 = vpop.permute.xlu0 %1379
          %v1384 = vadd.f32 %v1356, %v1376
          %v1385 = vadd.f32 %v1357, %v1376
          %v1386 = vadd.f32 %v1358, %v1378
          %v1387 = vadd.f32 %v1359, %v1378
          %v1388 = vadd.f32 %v1360, %v1380
          %v1389 = vadd.f32 %v1361, %v1380
          %s1390 = sld [smem:[#allocation6 + $0x4]]
          %v1391 = vstv %s1390
          %v1392 = vmul.f32 %v1391, %v288
          %v1393 = vmul.f32 %v1391, %v290
          %v1394 = vmul.f32 %v1391, %v292
          %1398 = vrot.lane.b32.xlu0 %v1392, 124
          %v1399 = vpop.permute.xlu0 %1398
          %1400 = vrot.lane.b32.xlu0 %v1393, 124
          %v1401 = vpop.permute.xlu0 %1400
          %1402 = vrot.lane.b32.xlu0 %v1394, 124
          %v1403 = vpop.permute.xlu0 %1402
          %v1407 = vadd.f32 %v1384, %v1399
          %v1408 = vadd.f32 %v1385, %v1399
          %v1409 = vadd.f32 %v1386, %v1401
          %v1410 = vadd.f32 %v1387, %v1401
          %v1411 = vadd.f32 %v1388, %v1403
          %v1412 = vadd.f32 %v1389, %v1403
          %s1413 = sld [smem:[#allocation6 + $0xb]]
          %v1414 = vstv %s1413
          %v1415 = vmul.f32 %v1414, %v288
          %v1416 = vmul.f32 %v1414, %v290
          %v1417 = vmul.f32 %v1414, %v292
          %v1421 = vrot.slane %v1415, 1
          %v1422 = vrot.slane %v1416, 1
          %v1423 = vsel %vm323, %v1421, %v1422
          %v1424 = vrot.slane %v1417, 1
          %v1425 = vsel %vm323, %v1422, %v1424
          %1426 = vrot.lane.b32.xlu0 %v1423, 124
          %v1427 = vpop.permute.xlu0 %1426
          %1428 = vrot.lane.b32.xlu0 %v1425, 124
          %v1429 = vpop.permute.xlu0 %1428
          %1430 = vrot.lane.b32.xlu0 %v1424, 124
          %v1431 = vpop.permute.xlu0 %1430
          %v1435 = vadd.f32 %v1407, %v1427
          %v1436 = vadd.f32 %v1408, %v1427
          %v1437 = vadd.f32 %v1409, %v1429
          %v1438 = vadd.f32 %v1410, %v1429
          %v1439 = vadd.f32 %v1411, %v1431
          %v1440 = vadd.f32 %v1412, %v1431
          %s1441 = sld [smem:[#allocation6 + $0x12]]
          %v1442 = vstv %s1441
          %v1443 = vmul.f32 %v1442, %v288
          %v1444 = vmul.f32 %v1442, %v290
          %v1445 = vmul.f32 %v1442, %v292
          %v1449 = vrot.slane %v1443, 2
          %v1450 = vrot.slane %v1444, 2
          %v1451 = vsel %vm360, %v1449, %v1450
          %v1452 = vrot.slane %v1445, 2
          %v1453 = vsel %vm360, %v1450, %v1452
          %1454 = vrot.lane.b32.xlu0 %v1451, 124
          %v1455 = vpop.permute.xlu0 %1454
          %1456 = vrot.lane.b32.xlu0 %v1453, 124
          %v1457 = vpop.permute.xlu0 %1456
          %1458 = vrot.lane.b32.xlu0 %v1452, 124
          %v1459 = vpop.permute.xlu0 %1458
          %v1463 = vadd.f32 %v1435, %v1455
          %v1464 = vadd.f32 %v1436, %v1455
          %v1465 = vadd.f32 %v1437, %v1457
          %v1466 = vadd.f32 %v1438, %v1457
          %v1467 = vadd.f32 %v1439, %v1459
          %v1468 = vadd.f32 %v1440, %v1459
          %s1469 = sld [smem:[#allocation6 + $0x19]]
          %v1470 = vstv %s1469
          %v1471 = vmul.f32 %v1470, %v290
          %v1472 = vmul.f32 %v1470, %v292
          %v1475 = vrot.slane %v1471, 3
          %v1476 = vrot.slane %v1472, 3
          %v1477 = vsel %vm393, %v1475, %v1476
          %1478 = vrot.lane.b32.xlu0 %v1475, 124
          %v1479 = vpop.permute.xlu0 %1478
          %1480 = vrot.lane.b32.xlu0 %v1477, 124
          %v1481 = vpop.permute.xlu0 %1480
          %1482 = vrot.lane.b32.xlu0 %v1476, 124
          %v1483 = vpop.permute.xlu0 %1482
          %v1487 = vadd.f32 %v1463, %v1479
          %v1488 = vadd.f32 %v1464, %v1479
          %v1489 = vadd.f32 %v1465, %v1481
          %v1490 = vadd.f32 %v1466, %v1481
          %v1491 = vadd.f32 %v1467, %v1483
          %v1492 = vadd.f32 %v1468, %v1483
          %s1493 = sld [smem:[#allocation6 + $0x20]]
          %v1494 = vstv %s1493
          %v1495 = vmul.f32 %v1494, %v290
          %v1496 = vmul.f32 %v1494, %v292
          %v1497 = vmul.f32 %v1494, %v294
          %v1501 = vrot.slane %v1495, 4
          %v1502 = vrot.slane %v1496, 4
          %v1503 = vsel %vm426, %v1501, %v1502
          %v1504 = vrot.slane %v1497, 4
          %v1505 = vsel %vm426, %v1502, %v1504
          %1506 = vrot.lane.b32.xlu0 %v1501, 124
          %v1507 = vpop.permute.xlu0 %1506
          %1508 = vrot.lane.b32.xlu0 %v1503, 124
          %v1509 = vpop.permute.xlu0 %1508
          %1510 = vrot.lane.b32.xlu0 %v1505, 124
          %v1511 = vpop.permute.xlu0 %1510
          %v1515 = vadd.f32 %v1487, %v1507
          %v1516 = vadd.f32 %v1488, %v1507
          %v1517 = vadd.f32 %v1489, %v1509
          %v1518 = vadd.f32 %v1490, %v1509
          %v1519 = vadd.f32 %v1491, %v1511
          %v1520 = vadd.f32 %v1492, %v1511
          %s1521 = sld [smem:[#allocation6 + $0x27]]
          %v1522 = vstv %s1521
          %v1523 = vmul.f32 %v1522, %v290
          %v1524 = vmul.f32 %v1522, %v292
          %v1525 = vmul.f32 %v1522, %v294
          %v1529 = vrot.slane %v1523, 5
          %v1530 = vrot.slane %v1524, 5
          %v1531 = vsel %vm463, %v1529, %v1530
          %v1532 = vrot.slane %v1525, 5
          %v1533 = vsel %vm463, %v1530, %v1532
          %1534 = vrot.lane.b32.xlu0 %v1529, 124
          %v1535 = vpop.permute.xlu0 %1534
          %1536 = vrot.lane.b32.xlu0 %v1531, 124
          %v1537 = vpop.permute.xlu0 %1536
          %1538 = vrot.lane.b32.xlu0 %v1533, 124
          %v1539 = vpop.permute.xlu0 %1538
          %v1543 = vadd.f32 %v1515, %v1535
          %v1544 = vadd.f32 %v1516, %v1535
          %v1545 = vadd.f32 %v1517, %v1537
          %v1546 = vadd.f32 %v1518, %v1537
          %v1547 = vadd.f32 %v1519, %v1539
          %v1548 = vadd.f32 %v1520, %v1539
          %s1549 = sld [smem:[#allocation6 + $0x2e]]
          %v1550 = vstv %s1549
          %v1551 = vmul.f32 %v1550, %v290
          %v1552 = vmul.f32 %v1550, %v292
          %v1553 = vmul.f32 %v1550, %v294
          %v1557 = vrot.slane %v1551, 6
          %v1558 = vrot.slane %v1552, 6
          %v1559 = vsel %vm500, %v1557, %v1558
          %v1560 = vrot.slane %v1553, 6
          %v1561 = vsel %vm500, %v1558, %v1560
          %1562 = vrot.lane.b32.xlu0 %v1557, 124
          %v1563 = vpop.permute.xlu0 %1562
          %1564 = vrot.lane.b32.xlu0 %v1559, 124
          %v1565 = vpop.permute.xlu0 %1564
          %1566 = vrot.lane.b32.xlu0 %v1561, 124
          %v1567 = vpop.permute.xlu0 %1566
          %v1571 = vadd.f32 %v1543, %v1563
          %v1572 = vadd.f32 %v1544, %v1563
          %v1573 = vadd.f32 %v1545, %v1565
          %v1574 = vadd.f32 %v1546, %v1565
          %v1575 = vadd.f32 %v1547, %v1567
          %v1576 = vadd.f32 %v1548, %v1567
          %s1577 = sld [smem:[#allocation6 + $0x5]]
          %v1578 = vstv %s1577
          %v1579 = vmul.f32 %v1578, %v288
          %v1580 = vmul.f32 %v1578, %v290
          %v1581 = vmul.f32 %v1578, %v292
          %1585 = vrot.lane.b32.xlu0 %v1579, 123
          %v1586 = vpop.permute.xlu0 %1585
          %1587 = vrot.lane.b32.xlu0 %v1580, 123
          %v1588 = vpop.permute.xlu0 %1587
          %1589 = vrot.lane.b32.xlu0 %v1581, 123
          %v1590 = vpop.permute.xlu0 %1589
          %v1594 = vadd.f32 %v1571, %v1586
          %v1595 = vadd.f32 %v1572, %v1586
          %v1596 = vadd.f32 %v1573, %v1588
          %v1597 = vadd.f32 %v1574, %v1588
          %v1598 = vadd.f32 %v1575, %v1590
          %v1599 = vadd.f32 %v1576, %v1590
          %s1600 = sld [smem:[#allocation6 + $0xc]]
          %v1601 = vstv %s1600
          %v1602 = vmul.f32 %v1601, %v288
          %v1603 = vmul.f32 %v1601, %v290
          %v1604 = vmul.f32 %v1601, %v292
          %v1608 = vrot.slane %v1602, 1
          %v1609 = vrot.slane %v1603, 1
          %v1610 = vsel %vm323, %v1608, %v1609
          %v1611 = vrot.slane %v1604, 1
          %v1612 = vsel %vm323, %v1609, %v1611
          %1613 = vrot.lane.b32.xlu0 %v1610, 123
          %v1614 = vpop.permute.xlu0 %1613
          %1615 = vrot.lane.b32.xlu0 %v1612, 123
          %v1616 = vpop.permute.xlu0 %1615
          %1617 = vrot.lane.b32.xlu0 %v1611, 123
          %v1618 = vpop.permute.xlu0 %1617
          %v1622 = vadd.f32 %v1594, %v1614
          %v1623 = vadd.f32 %v1595, %v1614
          %v1624 = vadd.f32 %v1596, %v1616
          %v1625 = vadd.f32 %v1597, %v1616
          %v1626 = vadd.f32 %v1598, %v1618
          %v1627 = vadd.f32 %v1599, %v1618
          %s1628 = sld [smem:[#allocation6 + $0x13]]
          %v1629 = vstv %s1628
          %v1630 = vmul.f32 %v1629, %v288
          %v1631 = vmul.f32 %v1629, %v290
          %v1632 = vmul.f32 %v1629, %v292
          %v1636 = vrot.slane %v1630, 2
          %v1637 = vrot.slane %v1631, 2
          %v1638 = vsel %vm360, %v1636, %v1637
          %v1639 = vrot.slane %v1632, 2
          %v1640 = vsel %vm360, %v1637, %v1639
          %1641 = vrot.lane.b32.xlu0 %v1638, 123
          %v1642 = vpop.permute.xlu0 %1641
          %1643 = vrot.lane.b32.xlu0 %v1640, 123
          %v1644 = vpop.permute.xlu0 %1643
          %1645 = vrot.lane.b32.xlu0 %v1639, 123
          %v1646 = vpop.permute.xlu0 %1645
          %v1650 = vadd.f32 %v1622, %v1642
          %v1651 = vadd.f32 %v1623, %v1642
          %v1652 = vadd.f32 %v1624, %v1644
          %v1653 = vadd.f32 %v1625, %v1644
          %v1654 = vadd.f32 %v1626, %v1646
          %v1655 = vadd.f32 %v1627, %v1646
          %s1656 = sld [smem:[#allocation6 + $0x1a]]
          %v1657 = vstv %s1656
          %v1658 = vmul.f32 %v1657, %v290
          %v1659 = vmul.f32 %v1657, %v292
          %v1662 = vrot.slane %v1658, 3
          %v1663 = vrot.slane %v1659, 3
          %v1664 = vsel %vm393, %v1662, %v1663
          %1665 = vrot.lane.b32.xlu0 %v1662, 123
          %v1666 = vpop.permute.xlu0 %1665
          %1667 = vrot.lane.b32.xlu0 %v1664, 123
          %v1668 = vpop.permute.xlu0 %1667
          %1669 = vrot.lane.b32.xlu0 %v1663, 123
          %v1670 = vpop.permute.xlu0 %1669
          %v1674 = vadd.f32 %v1650, %v1666
          %v1675 = vadd.f32 %v1651, %v1666
          %v1676 = vadd.f32 %v1652, %v1668
          %v1677 = vadd.f32 %v1653, %v1668
          %v1678 = vadd.f32 %v1654, %v1670
          %v1679 = vadd.f32 %v1655, %v1670
          %s1680 = sld [smem:[#allocation6 + $0x21]]
          %v1681 = vstv %s1680
          %v1682 = vmul.f32 %v1681, %v290
          %v1683 = vmul.f32 %v1681, %v292
          %v1684 = vmul.f32 %v1681, %v294
          %v1688 = vrot.slane %v1682, 4
          %v1689 = vrot.slane %v1683, 4
          %v1690 = vsel %vm426, %v1688, %v1689
          %v1691 = vrot.slane %v1684, 4
          %v1692 = vsel %vm426, %v1689, %v1691
          %1693 = vrot.lane.b32.xlu0 %v1688, 123
          %v1694 = vpop.permute.xlu0 %1693
          %1695 = vrot.lane.b32.xlu0 %v1690, 123
          %v1696 = vpop.permute.xlu0 %1695
          %1697 = vrot.lane.b32.xlu0 %v1692, 123
          %v1698 = vpop.permute.xlu0 %1697
          %v1702 = vadd.f32 %v1674, %v1694
          %v1703 = vadd.f32 %v1675, %v1694
          %v1704 = vadd.f32 %v1676, %v1696
          %v1705 = vadd.f32 %v1677, %v1696
          %v1706 = vadd.f32 %v1678, %v1698
          %v1707 = vadd.f32 %v1679, %v1698
          %s1708 = sld [smem:[#allocation6 + $0x28]]
          %v1709 = vstv %s1708
          %v1710 = vmul.f32 %v1709, %v290
          %v1711 = vmul.f32 %v1709, %v292
          %v1712 = vmul.f32 %v1709, %v294
          %v1716 = vrot.slane %v1710, 5
          %v1717 = vrot.slane %v1711, 5
          %v1718 = vsel %vm463, %v1716, %v1717
          %v1719 = vrot.slane %v1712, 5
          %v1720 = vsel %vm463, %v1717, %v1719
          %1721 = vrot.lane.b32.xlu0 %v1716, 123
          %v1722 = vpop.permute.xlu0 %1721
          %1723 = vrot.lane.b32.xlu0 %v1718, 123
          %v1724 = vpop.permute.xlu0 %1723
          %1725 = vrot.lane.b32.xlu0 %v1720, 123
          %v1726 = vpop.permute.xlu0 %1725
          %v1730 = vadd.f32 %v1702, %v1722
          %v1731 = vadd.f32 %v1703, %v1722
          %v1732 = vadd.f32 %v1704, %v1724
          %v1733 = vadd.f32 %v1705, %v1724
          %v1734 = vadd.f32 %v1706, %v1726
          %v1735 = vadd.f32 %v1707, %v1726
          %s1736 = sld [smem:[#allocation6 + $0x2f]]
          %v1737 = vstv %s1736
          %v1738 = vmul.f32 %v1737, %v290
          %v1739 = vmul.f32 %v1737, %v292
          %v1740 = vmul.f32 %v1737, %v294
          %v1744 = vrot.slane %v1738, 6
          %v1745 = vrot.slane %v1739, 6
          %v1746 = vsel %vm500, %v1744, %v1745
          %v1747 = vrot.slane %v1740, 6
          %v1748 = vsel %vm500, %v1745, %v1747
          %1749 = vrot.lane.b32.xlu0 %v1744, 123
          %v1750 = vpop.permute.xlu0 %1749
          %1751 = vrot.lane.b32.xlu0 %v1746, 123
          %v1752 = vpop.permute.xlu0 %1751
          %1753 = vrot.lane.b32.xlu0 %v1748, 123
          %v1754 = vpop.permute.xlu0 %1753
          %v1758 = vadd.f32 %v1730, %v1750
          %v1759 = vadd.f32 %v1731, %v1750
          %v1760 = vadd.f32 %v1732, %v1752
          %v1761 = vadd.f32 %v1733, %v1752
          %v1762 = vadd.f32 %v1734, %v1754
          %v1763 = vadd.f32 %v1735, %v1754
          %s1764 = sld [smem:[#allocation6 + $0x6]]
          %v1765 = vstv %s1764
          %v1766 = vmul.f32 %v1765, %v288
          %v1767 = vmul.f32 %v1765, %v290
          %v1768 = vmul.f32 %v1765, %v292
          %1772 = vrot.lane.b32.xlu0 %v1766, 122
          %v1773 = vpop.permute.xlu0 %1772
          %1774 = vrot.lane.b32.xlu0 %v1767, 122
          %v1775 = vpop.permute.xlu0 %1774
          %1776 = vrot.lane.b32.xlu0 %v1768, 122
          %v1777 = vpop.permute.xlu0 %1776
          %v1781 = vadd.f32 %v1758, %v1773
          %v1782 = vadd.f32 %v1759, %v1773
          %v1783 = vadd.f32 %v1760, %v1775
          %v1784 = vadd.f32 %v1761, %v1775
          %v1785 = vadd.f32 %v1762, %v1777
          %v1786 = vadd.f32 %v1763, %v1777
          %s1787 = sld [smem:[#allocation6 + $0xd]]
          %v1788 = vstv %s1787
          %v1789 = vmul.f32 %v1788, %v288
          %v1790 = vmul.f32 %v1788, %v290
          %v1791 = vmul.f32 %v1788, %v292
          %v1795 = vrot.slane %v1789, 1
          %v1796 = vrot.slane %v1790, 1
          %v1797 = vsel %vm323, %v1795, %v1796
          %v1798 = vrot.slane %v1791, 1
          %v1799 = vsel %vm323, %v1796, %v1798
          %1800 = vrot.lane.b32.xlu0 %v1797, 122
          %v1801 = vpop.permute.xlu0 %1800
          %1802 = vrot.lane.b32.xlu0 %v1799, 122
          %v1803 = vpop.permute.xlu0 %1802
          %1804 = vrot.lane.b32.xlu0 %v1798, 122
          %v1805 = vpop.permute.xlu0 %1804
          %v1809 = vadd.f32 %v1781, %v1801
          %v1810 = vadd.f32 %v1782, %v1801
          %v1811 = vadd.f32 %v1783, %v1803
          %v1812 = vadd.f32 %v1784, %v1803
          %v1813 = vadd.f32 %v1785, %v1805
          %v1814 = vadd.f32 %v1786, %v1805
          %s1815 = sld [smem:[#allocation6 + $0x14]]
          %v1816 = vstv %s1815
          %v1817 = vmul.f32 %v1816, %v288
          %v1818 = vmul.f32 %v1816, %v290
          %v1819 = vmul.f32 %v1816, %v292
          %v1823 = vrot.slane %v1817, 2
          %v1824 = vrot.slane %v1818, 2
          %v1825 = vsel %vm360, %v1823, %v1824
          %v1826 = vrot.slane %v1819, 2
          %v1827 = vsel %vm360, %v1824, %v1826
          %1828 = vrot.lane.b32.xlu0 %v1825, 122
          %v1829 = vpop.permute.xlu0 %1828
          %1830 = vrot.lane.b32.xlu0 %v1827, 122
          %v1831 = vpop.permute.xlu0 %1830
          %1832 = vrot.lane.b32.xlu0 %v1826, 122
          %v1833 = vpop.permute.xlu0 %1832
          %v1837 = vadd.f32 %v1809, %v1829
          %v1838 = vadd.f32 %v1810, %v1829
          %v1839 = vadd.f32 %v1811, %v1831
          %v1840 = vadd.f32 %v1812, %v1831
          %v1841 = vadd.f32 %v1813, %v1833
          %v1842 = vadd.f32 %v1814, %v1833
          %s1843 = sld [smem:[#allocation6 + $0x1b]]
          %v1844 = vstv %s1843
          %v1845 = vmul.f32 %v1844, %v290
          %v1846 = vmul.f32 %v1844, %v292
          %v1849 = vrot.slane %v1845, 3
          %v1850 = vrot.slane %v1846, 3
          %v1851 = vsel %vm393, %v1849, %v1850
          %1852 = vrot.lane.b32.xlu0 %v1849, 122
          %v1853 = vpop.permute.xlu0 %1852
          %1854 = vrot.lane.b32.xlu0 %v1851, 122
          %v1855 = vpop.permute.xlu0 %1854
          %1856 = vrot.lane.b32.xlu0 %v1850, 122
          %v1857 = vpop.permute.xlu0 %1856
          %v1861 = vadd.f32 %v1837, %v1853
          %v1862 = vadd.f32 %v1838, %v1853
          %v1863 = vadd.f32 %v1839, %v1855
          %v1864 = vadd.f32 %v1840, %v1855
          %v1865 = vadd.f32 %v1841, %v1857
          %v1866 = vadd.f32 %v1842, %v1857
          %s1867 = sld [smem:[#allocation6 + $0x22]]
          %v1868 = vstv %s1867
          %v1869 = vmul.f32 %v1868, %v290
          %v1870 = vmul.f32 %v1868, %v292
          %v1871 = vmul.f32 %v1868, %v294
          %v1875 = vrot.slane %v1869, 4
          %v1876 = vrot.slane %v1870, 4
          %v1877 = vsel %vm426, %v1875, %v1876
          %v1878 = vrot.slane %v1871, 4
          %v1879 = vsel %vm426, %v1876, %v1878
          %1880 = vrot.lane.b32.xlu0 %v1875, 122
          %v1881 = vpop.permute.xlu0 %1880
          %1882 = vrot.lane.b32.xlu0 %v1877, 122
          %v1883 = vpop.permute.xlu0 %1882
          %1884 = vrot.lane.b32.xlu0 %v1879, 122
          %v1885 = vpop.permute.xlu0 %1884
          %v1889 = vadd.f32 %v1861, %v1881
          %v1890 = vadd.f32 %v1862, %v1881
          %v1891 = vadd.f32 %v1863, %v1883
          %v1892 = vadd.f32 %v1864, %v1883
          %v1893 = vadd.f32 %v1865, %v1885
          %v1894 = vadd.f32 %v1866, %v1885
          %s1895 = sld [smem:[#allocation6 + $0x29]]
          %v1896 = vstv %s1895
          %v1897 = vmul.f32 %v1896, %v290
          %v1898 = vmul.f32 %v1896, %v292
          %v1899 = vmul.f32 %v1896, %v294
          %v1903 = vrot.slane %v1897, 5
          %v1904 = vrot.slane %v1898, 5
          %v1905 = vsel %vm463, %v1903, %v1904
          %v1906 = vrot.slane %v1899, 5
          %v1907 = vsel %vm463, %v1904, %v1906
          %1908 = vrot.lane.b32.xlu0 %v1903, 122
          %v1909 = vpop.permute.xlu0 %1908
          %1910 = vrot.lane.b32.xlu0 %v1905, 122
          %v1911 = vpop.permute.xlu0 %1910
          %1912 = vrot.lane.b32.xlu0 %v1907, 122
          %v1913 = vpop.permute.xlu0 %1912
          %v1917 = vadd.f32 %v1889, %v1909
          %v1918 = vadd.f32 %v1890, %v1909
          %v1919 = vadd.f32 %v1891, %v1911
          %v1920 = vadd.f32 %v1892, %v1911
          %v1921 = vadd.f32 %v1893, %v1913
          %v1922 = vadd.f32 %v1894, %v1913
          %s1923 = sld [smem:[#allocation6 + $0x30]]
          %v1924 = vstv %s1923
          %v1925 = vmul.f32 %v1924, %v290
          %v1926 = vmul.f32 %v1924, %v292
          %v1927 = vmul.f32 %v1924, %v294
          %v1931 = vrot.slane %v1925, 6
          %v1932 = vrot.slane %v1926, 6
          %v1933 = vsel %vm500, %v1931, %v1932
          %v1934 = vrot.slane %v1927, 6
          %v1935 = vsel %vm500, %v1932, %v1934
          %1936 = vrot.lane.b32.xlu0 %v1931, 122
          %v1937 = vpop.permute.xlu0 %1936
          %1938 = vrot.lane.b32.xlu0 %v1933, 122
          %v1939 = vpop.permute.xlu0 %1938
          %1940 = vrot.lane.b32.xlu0 %v1935, 122
          %v1941 = vpop.permute.xlu0 %1940
          %v1945 = vadd.f32 %v1917, %v1937
          %v1946 = vadd.f32 %v1918, %v1937
          %v1947 = vadd.f32 %v1919, %v1939
          %v1948 = vadd.f32 %v1920, %v1939
          %v1949 = vadd.f32 %v1921, %v1941
          %v1950 = vadd.f32 %v1922, %v1941
          %v1951 = vld [vmem:[#allocation5] sm:$0xff]
          %v1952 = vld [vmem:[#allocation5 + $0x8] sm:$0xff]
          %v1953 = vld [vmem:[#allocation5 + $0x18] sm:$0xff]
          %v1954 = vld [vmem:[#allocation5 + $0x20] sm:$0xff]
          %v1955 = vld [vmem:[#allocation5 + $0x30] sm:$0xff]
          %v1956 = vld [vmem:[#allocation5 + $0x38] sm:$0xff]
          %v1957 = vld [vmem:[#allocation5 + $0x48] sm:$0xff]
          %v1958 = vld [vmem:[#allocation5 + $0x50] sm:$0xff]
          %s1959 = sld [smem:[#allocation6 + $0x31]]
          %v1960 = vstv %s1959
          %v1961 = vmul.f32 %v1960, %v1951
          %v1962 = vmul.f32 %v1960, %v1952
          %v1963 = vmul.f32 %v1960, %v1953
          %v1964 = vmul.f32 %v1960, %v1954
          %v1965 = vmul.f32 %v1960, %v1955
          %v1966 = vmul.f32 %v1960, %v1956
          %v1967 = vadd.f32 %v1945, %v1961
          %v1968 = vadd.f32 %v1946, %v1962
          %v1969 = vadd.f32 %v1947, %v1963
          %v1970 = vadd.f32 %v1948, %v1964
          %v1971 = vadd.f32 %v1949, %v1965
          %v1972 = vadd.f32 %v1950, %v1966
          %s1973 = sld [smem:[#allocation6 + $0x38]]
          %v1974 = vstv %s1973
          %v1975 = vmul.f32 %v1974, %v1951
          %v1976 = vmul.f32 %v1974, %v1952
          %v1977 = vmul.f32 %v1974, %v1953
          %v1978 = vmul.f32 %v1974, %v1954
          %v1979 = vmul.f32 %v1974, %v1955
          %v1980 = vmul.f32 %v1974, %v1956
          %v1987 = vrot.slane %v1975, 1
          %v1988 = vrot.slane %v1977, 1
          %v1989 = vsel %vm323, %v1987, %v1988
          %v1990 = vrot.slane %v1976, 1
          %v1991 = vrot.slane %v1978, 1
          %v1992 = vsel %vm323, %v1990, %v1991
          %v1993 = vrot.slane %v1979, 1
          %v1994 = vsel %vm323, %v1988, %v1993
          %v1995 = vrot.slane %v1980, 1
          %v1996 = vsel %vm323, %v1991, %v1995
          %v2003 = vadd.f32 %v1967, %v1989
          %v2004 = vadd.f32 %v1968, %v1992
          %v2005 = vadd.f32 %v1969, %v1994
          %v2006 = vadd.f32 %v1970, %v1996
          %v2007 = vadd.f32 %v1971, %v1993
          %v2008 = vadd.f32 %v1972, %v1995
          %s2009 = sld [smem:[#allocation6 + $0x3f]]
          %v2010 = vstv %s2009
          %v2011 = vmul.f32 %v2010, %v1951
          %v2012 = vmul.f32 %v2010, %v1952
          %v2013 = vmul.f32 %v2010, %v1953
          %v2014 = vmul.f32 %v2010, %v1954
          %v2015 = vmul.f32 %v2010, %v1955
          %v2016 = vmul.f32 %v2010, %v1956
          %v2023 = vrot.slane %v2011, 2
          %v2024 = vrot.slane %v2013, 2
          %v2025 = vsel %vm360, %v2023, %v2024
          %v2026 = vrot.slane %v2012, 2
          %v2027 = vrot.slane %v2014, 2
          %v2028 = vsel %vm360, %v2026, %v2027
          %v2029 = vrot.slane %v2015, 2
          %v2030 = vsel %vm360, %v2024, %v2029
          %v2031 = vrot.slane %v2016, 2
          %v2032 = vsel %vm360, %v2027, %v2031
          %v2039 = vadd.f32 %v2003, %v2025
          %v2040 = vadd.f32 %v2004, %v2028
          %v2041 = vadd.f32 %v2005, %v2030
          %v2042 = vadd.f32 %v2006, %v2032
          %v2043 = vadd.f32 %v2007, %v2029
          %v2044 = vadd.f32 %v2008, %v2031
          %s2045 = sld [smem:[#allocation6 + $0x46]]
          %v2046 = vstv %s2045
          %v2047 = vmul.f32 %v2046, %v1953
          %v2048 = vmul.f32 %v2046, %v1954
          %v2049 = vmul.f32 %v2046, %v1955
          %v2050 = vmul.f32 %v2046, %v1956
          %v2055 = vrot.slane %v2047, 3
          %v2056 = vrot.slane %v2048, 3
          %v2057 = vrot.slane %v2049, 3
          %v2058 = vsel %vm393, %v2055, %v2057
          %v2059 = vrot.slane %v2050, 3
          %v2060 = vsel %vm393, %v2056, %v2059
          %v2067 = vadd.f32 %v2039, %v2055
          %v2068 = vadd.f32 %v2040, %v2056
          %v2069 = vadd.f32 %v2041, %v2058
          %v2070 = vadd.f32 %v2042, %v2060
          %v2071 = vadd.f32 %v2043, %v2057
          %v2072 = vadd.f32 %v2044, %v2059
          %s2073 = sld [smem:[#allocation6 + $0x4d]]
          %v2074 = vstv %s2073
          %v2075 = vmul.f32 %v2074, %v1953
          %v2076 = vmul.f32 %v2074, %v1954
          %v2077 = vmul.f32 %v2074, %v1955
          %v2078 = vmul.f32 %v2074, %v1956
          %v2079 = vmul.f32 %v2074, %v1957
          %v2080 = vmul.f32 %v2074, %v1958
          %v2087 = vrot.slane %v2075, 4
          %v2088 = vrot.slane %v2076, 4
          %v2089 = vrot.slane %v2077, 4
          %v2090 = vsel %vm426, %v2087, %v2089
          %v2091 = vrot.slane %v2078, 4
          %v2092 = vsel %vm426, %v2088, %v2091
          %v2093 = vrot.slane %v2079, 4
          %v2094 = vsel %vm426, %v2089, %v2093
          %v2095 = vrot.slane %v2080, 4
          %v2096 = vsel %vm426, %v2091, %v2095
          %v2103 = vadd.f32 %v2067, %v2087
          %v2104 = vadd.f32 %v2068, %v2088
          %v2105 = vadd.f32 %v2069, %v2090
          %v2106 = vadd.f32 %v2070, %v2092
          %v2107 = vadd.f32 %v2071, %v2094
          %v2108 = vadd.f32 %v2072, %v2096
          %s2109 = sld [smem:[#allocation6 + $0x54]]
          %v2110 = vstv %s2109
          %v2111 = vmul.f32 %v2110, %v1953
          %v2112 = vmul.f32 %v2110, %v1954
          %v2113 = vmul.f32 %v2110, %v1955
          %v2114 = vmul.f32 %v2110, %v1956
          %v2115 = vmul.f32 %v2110, %v1957
          %v2116 = vmul.f32 %v2110, %v1958
          %v2123 = vrot.slane %v2111, 5
          %v2124 = vrot.slane %v2112, 5
          %v2125 = vrot.slane %v2113, 5
          %v2126 = vsel %vm463, %v2123, %v2125
          %v2127 = vrot.slane %v2114, 5
          %v2128 = vsel %vm463, %v2124, %v2127
          %v2129 = vrot.slane %v2115, 5
          %v2130 = vsel %vm463, %v2125, %v2129
          %v2131 = vrot.slane %v2116, 5
          %v2132 = vsel %vm463, %v2127, %v2131
          %v2139 = vadd.f32 %v2103, %v2123
          %v2140 = vadd.f32 %v2104, %v2124
          %v2141 = vadd.f32 %v2105, %v2126
          %v2142 = vadd.f32 %v2106, %v2128
          %v2143 = vadd.f32 %v2107, %v2130
          %v2144 = vadd.f32 %v2108, %v2132
          %s2145 = sld [smem:[#allocation6 + $0x5b]]
          %v2146 = vstv %s2145
          %v2147 = vmul.f32 %v2146, %v1953
          %v2148 = vmul.f32 %v2146, %v1954
          %v2149 = vmul.f32 %v2146, %v1955
          %v2150 = vmul.f32 %v2146, %v1956
          %v2151 = vmul.f32 %v2146, %v1957
          %v2152 = vmul.f32 %v2146, %v1958
          %v2159 = vrot.slane %v2147, 6
          %v2160 = vrot.slane %v2148, 6
          %v2161 = vrot.slane %v2149, 6
          %v2162 = vsel %vm500, %v2159, %v2161
          %v2163 = vrot.slane %v2150, 6
          %v2164 = vsel %vm500, %v2160, %v2163
          %v2165 = vrot.slane %v2151, 6
          %v2166 = vsel %vm500, %v2161, %v2165
          %v2167 = vrot.slane %v2152, 6
          %v2168 = vsel %vm500, %v2163, %v2167
          %v2175 = vadd.f32 %v2139, %v2159
          %v2176 = vadd.f32 %v2140, %v2160
          %v2177 = vadd.f32 %v2141, %v2162
          %v2178 = vadd.f32 %v2142, %v2164
          %v2179 = vadd.f32 %v2143, %v2166
          %v2180 = vadd.f32 %v2144, %v2168
          %s2181 = sld [smem:[#allocation6 + $0x32]]
          %v2182 = vstv %s2181
          %v2183 = vmul.f32 %v2182, %v1951
          %v2184 = vmul.f32 %v2182, %v1952
          %v2185 = vmul.f32 %v2182, %v1953
          %v2186 = vmul.f32 %v2182, %v1954
          %v2187 = vmul.f32 %v2182, %v1955
          %v2188 = vmul.f32 %v2182, %v1956
          %2195 = vrot.lane.b32.xlu0 %v2183, 127
          %v2196 = vpop.permute.xlu0 %2195
          %2197 = vrot.lane.b32.xlu0 %v2184, 127
          %v2198 = vpop.permute.xlu0 %2197
          %2199 = vrot.lane.b32.xlu0 %v2185, 127
          %v2200 = vpop.permute.xlu0 %2199
          %2201 = vrot.lane.b32.xlu0 %v2186, 127
          %v2202 = vpop.permute.xlu0 %2201
          %2203 = vrot.lane.b32.xlu0 %v2187, 127
          %v2204 = vpop.permute.xlu0 %2203
          %2205 = vrot.lane.b32.xlu0 %v2188, 127
          %v2206 = vpop.permute.xlu0 %2205
          %v2207 = vsel %vm549, %v2196, %v2198
          %v2208 = vsel %vm549, %v2200, %v2202
          %v2209 = vsel %vm549, %v2204, %v2206
          %v2216 = vadd.f32 %v2175, %v2207
          %v2217 = vadd.f32 %v2176, %v2198
          %v2218 = vadd.f32 %v2177, %v2208
          %v2219 = vadd.f32 %v2178, %v2202
          %v2220 = vadd.f32 %v2179, %v2209
          %v2221 = vadd.f32 %v2180, %v2206
          %s2222 = sld [smem:[#allocation6 + $0x39]]
          %v2223 = vstv %s2222
          %v2224 = vmul.f32 %v2223, %v1951
          %v2225 = vmul.f32 %v2223, %v1952
          %v2226 = vmul.f32 %v2223, %v1953
          %v2227 = vmul.f32 %v2223, %v1954
          %v2228 = vmul.f32 %v2223, %v1955
          %v2229 = vmul.f32 %v2223, %v1956
          %v2236 = vrot.slane %v2224, 1
          %v2237 = vrot.slane %v2226, 1
          %v2238 = vsel %vm323, %v2236, %v2237
          %v2239 = vrot.slane %v2225, 1
          %v2240 = vrot.slane %v2227, 1
          %v2241 = vsel %vm323, %v2239, %v2240
          %v2242 = vrot.slane %v2228, 1
          %v2243 = vsel %vm323, %v2237, %v2242
          %v2244 = vrot.slane %v2229, 1
          %v2245 = vsel %vm323, %v2240, %v2244
          %2246 = vrot.lane.b32.xlu0 %v2238, 127
          %v2247 = vpop.permute.xlu0 %2246
          %2248 = vrot.lane.b32.xlu0 %v2241, 127
          %v2249 = vpop.permute.xlu0 %2248
          %2250 = vrot.lane.b32.xlu0 %v2243, 127
          %v2251 = vpop.permute.xlu0 %2250
          %2252 = vrot.lane.b32.xlu0 %v2245, 127
          %v2253 = vpop.permute.xlu0 %2252
          %2254 = vrot.lane.b32.xlu0 %v2242, 127
          %v2255 = vpop.permute.xlu0 %2254
          %2256 = vrot.lane.b32.xlu0 %v2244, 127
          %v2257 = vpop.permute.xlu0 %2256
          %v2258 = vsel %vm549, %v2247, %v2249
          %v2259 = vsel %vm549, %v2251, %v2253
          %v2260 = vsel %vm549, %v2255, %v2257
          %v2267 = vadd.f32 %v2216, %v2258
          %v2268 = vadd.f32 %v2217, %v2249
          %v2269 = vadd.f32 %v2218, %v2259
          %v2270 = vadd.f32 %v2219, %v2253
          %v2271 = vadd.f32 %v2220, %v2260
          %v2272 = vadd.f32 %v2221, %v2257
          %s2273 = sld [smem:[#allocation6 + $0x40]]
          %v2274 = vstv %s2273
          %v2275 = vmul.f32 %v2274, %v1951
          %v2276 = vmul.f32 %v2274, %v1952
          %v2277 = vmul.f32 %v2274, %v1953
          %v2278 = vmul.f32 %v2274, %v1954
          %v2279 = vmul.f32 %v2274, %v1955
          %v2280 = vmul.f32 %v2274, %v1956
          %v2287 = vrot.slane %v2275, 2
          %v2288 = vrot.slane %v2277, 2
          %v2289 = vsel %vm360, %v2287, %v2288
          %v2290 = vrot.slane %v2276, 2
          %v2291 = vrot.slane %v2278, 2
          %v2292 = vsel %vm360, %v2290, %v2291
          %v2293 = vrot.slane %v2279, 2
          %v2294 = vsel %vm360, %v2288, %v2293
          %v2295 = vrot.slane %v2280, 2
          %v2296 = vsel %vm360, %v2291, %v2295
          %2297 = vrot.lane.b32.xlu0 %v2289, 127
          %v2298 = vpop.permute.xlu0 %2297
          %2299 = vrot.lane.b32.xlu0 %v2292, 127
          %v2300 = vpop.permute.xlu0 %2299
          %2301 = vrot.lane.b32.xlu0 %v2294, 127
          %v2302 = vpop.permute.xlu0 %2301
          %2303 = vrot.lane.b32.xlu0 %v2296, 127
          %v2304 = vpop.permute.xlu0 %2303
          %2305 = vrot.lane.b32.xlu0 %v2293, 127
          %v2306 = vpop.permute.xlu0 %2305
          %2307 = vrot.lane.b32.xlu0 %v2295, 127
          %v2308 = vpop.permute.xlu0 %2307
          %v2309 = vsel %vm549, %v2298, %v2300
          %v2310 = vsel %vm549, %v2302, %v2304
          %v2311 = vsel %vm549, %v2306, %v2308
          %v2318 = vadd.f32 %v2267, %v2309
          %v2319 = vadd.f32 %v2268, %v2300
          %v2320 = vadd.f32 %v2269, %v2310
          %v2321 = vadd.f32 %v2270, %v2304
          %v2322 = vadd.f32 %v2271, %v2311
          %v2323 = vadd.f32 %v2272, %v2308
          %s2324 = sld [smem:[#allocation6 + $0x47]]
          %v2325 = vstv %s2324
          %v2326 = vmul.f32 %v2325, %v1953
          %v2327 = vmul.f32 %v2325, %v1954
          %v2328 = vmul.f32 %v2325, %v1955
          %v2329 = vmul.f32 %v2325, %v1956
          %v2334 = vrot.slane %v2326, 3
          %v2335 = vrot.slane %v2327, 3
          %v2336 = vrot.slane %v2328, 3
          %v2337 = vsel %vm393, %v2334, %v2336
          %v2338 = vrot.slane %v2329, 3
          %v2339 = vsel %vm393, %v2335, %v2338
          %2340 = vrot.lane.b32.xlu0 %v2334, 127
          %v2341 = vpop.permute.xlu0 %2340
          %2342 = vrot.lane.b32.xlu0 %v2335, 127
          %v2343 = vpop.permute.xlu0 %2342
          %2344 = vrot.lane.b32.xlu0 %v2337, 127
          %v2345 = vpop.permute.xlu0 %2344
          %2346 = vrot.lane.b32.xlu0 %v2339, 127
          %v2347 = vpop.permute.xlu0 %2346
          %2348 = vrot.lane.b32.xlu0 %v2336, 127
          %v2349 = vpop.permute.xlu0 %2348
          %2350 = vrot.lane.b32.xlu0 %v2338, 127
          %v2351 = vpop.permute.xlu0 %2350
          %v2352 = vsel %vm549, %v2341, %v2343
          %v2353 = vsel %vm549, %v2345, %v2347
          %v2354 = vsel %vm549, %v2349, %v2351
          %v2361 = vadd.f32 %v2318, %v2352
          %v2362 = vadd.f32 %v2319, %v2343
          %v2363 = vadd.f32 %v2320, %v2353
          %v2364 = vadd.f32 %v2321, %v2347
          %v2365 = vadd.f32 %v2322, %v2354
          %v2366 = vadd.f32 %v2323, %v2351
          %s2367 = sld [smem:[#allocation6 + $0x4e]]
          %v2368 = vstv %s2367
          %v2369 = vmul.f32 %v2368, %v1953
          %v2370 = vmul.f32 %v2368, %v1954
          %v2371 = vmul.f32 %v2368, %v1955
          %v2372 = vmul.f32 %v2368, %v1956
          %v2373 = vmul.f32 %v2368, %v1957
          %v2374 = vmul.f32 %v2368, %v1958
          %v2381 = vrot.slane %v2369, 4
          %v2382 = vrot.slane %v2370, 4
          %v2383 = vrot.slane %v2371, 4
          %v2384 = vsel %vm426, %v2381, %v2383
          %v2385 = vrot.slane %v2372, 4
          %v2386 = vsel %vm426, %v2382, %v2385
          %v2387 = vrot.slane %v2373, 4
          %v2388 = vsel %vm426, %v2383, %v2387
          %v2389 = vrot.slane %v2374, 4
          %v2390 = vsel %vm426, %v2385, %v2389
          %2391 = vrot.lane.b32.xlu0 %v2381, 127
          %v2392 = vpop.permute.xlu0 %2391
          %2393 = vrot.lane.b32.xlu0 %v2382, 127
          %v2394 = vpop.permute.xlu0 %2393
          %2395 = vrot.lane.b32.xlu0 %v2384, 127
          %v2396 = vpop.permute.xlu0 %2395
          %2397 = vrot.lane.b32.xlu0 %v2386, 127
          %v2398 = vpop.permute.xlu0 %2397
          %2399 = vrot.lane.b32.xlu0 %v2388, 127
          %v2400 = vpop.permute.xlu0 %2399
          %2401 = vrot.lane.b32.xlu0 %v2390, 127
          %v2402 = vpop.permute.xlu0 %2401
          %v2403 = vsel %vm549, %v2392, %v2394
          %v2404 = vsel %vm549, %v2396, %v2398
          %v2405 = vsel %vm549, %v2400, %v2402
          %v2412 = vadd.f32 %v2361, %v2403
          %v2413 = vadd.f32 %v2362, %v2394
          %v2414 = vadd.f32 %v2363, %v2404
          %v2415 = vadd.f32 %v2364, %v2398
          %v2416 = vadd.f32 %v2365, %v2405
          %v2417 = vadd.f32 %v2366, %v2402
          %s2418 = sld [smem:[#allocation6 + $0x55]]
          %v2419 = vstv %s2418
          %v2420 = vmul.f32 %v2419, %v1953
          %v2421 = vmul.f32 %v2419, %v1954
          %v2422 = vmul.f32 %v2419, %v1955
          %v2423 = vmul.f32 %v2419, %v1956
          %v2424 = vmul.f32 %v2419, %v1957
          %v2425 = vmul.f32 %v2419, %v1958
          %v2432 = vrot.slane %v2420, 5
          %v2433 = vrot.slane %v2421, 5
          %v2434 = vrot.slane %v2422, 5
          %v2435 = vsel %vm463, %v2432, %v2434
          %v2436 = vrot.slane %v2423, 5
          %v2437 = vsel %vm463, %v2433, %v2436
          %v2438 = vrot.slane %v2424, 5
          %v2439 = vsel %vm463, %v2434, %v2438
          %v2440 = vrot.slane %v2425, 5
          %v2441 = vsel %vm463, %v2436, %v2440
          %2442 = vrot.lane.b32.xlu0 %v2432, 127
          %v2443 = vpop.permute.xlu0 %2442
          %2444 = vrot.lane.b32.xlu0 %v2433, 127
          %v2445 = vpop.permute.xlu0 %2444
          %2446 = vrot.lane.b32.xlu0 %v2435, 127
          %v2447 = vpop.permute.xlu0 %2446
          %2448 = vrot.lane.b32.xlu0 %v2437, 127
          %v2449 = vpop.permute.xlu0 %2448
          %2450 = vrot.lane.b32.xlu0 %v2439, 127
          %v2451 = vpop.permute.xlu0 %2450
          %2452 = vrot.lane.b32.xlu0 %v2441, 127
          %v2453 = vpop.permute.xlu0 %2452
          %v2454 = vsel %vm549, %v2443, %v2445
          %v2455 = vsel %vm549, %v2447, %v2449
          %v2456 = vsel %vm549, %v2451, %v2453
          %v2463 = vadd.f32 %v2412, %v2454
          %v2464 = vadd.f32 %v2413, %v2445
          %v2465 = vadd.f32 %v2414, %v2455
          %v2466 = vadd.f32 %v2415, %v2449
          %v2467 = vadd.f32 %v2416, %v2456
          %v2468 = vadd.f32 %v2417, %v2453
          %s2469 = sld [smem:[#allocation6 + $0x5c]]
          %v2470 = vstv %s2469
          %v2471 = vmul.f32 %v2470, %v1953
          %v2472 = vmul.f32 %v2470, %v1954
          %v2473 = vmul.f32 %v2470, %v1955
          %v2474 = vmul.f32 %v2470, %v1956
          %v2475 = vmul.f32 %v2470, %v1957
          %v2476 = vmul.f32 %v2470, %v1958
          %v2483 = vrot.slane %v2471, 6
          %v2484 = vrot.slane %v2472, 6
          %v2485 = vrot.slane %v2473, 6
          %v2486 = vsel %vm500, %v2483, %v2485
          %v2487 = vrot.slane %v2474, 6
          %v2488 = vsel %vm500, %v2484, %v2487
          %v2489 = vrot.slane %v2475, 6
          %v2490 = vsel %vm500, %v2485, %v2489
          %v2491 = vrot.slane %v2476, 6
          %v2492 = vsel %vm500, %v2487, %v2491
          %2493 = vrot.lane.b32.xlu0 %v2483, 127
          %v2494 = vpop.permute.xlu0 %2493
          %2495 = vrot.lane.b32.xlu0 %v2484, 127
          %v2496 = vpop.permute.xlu0 %2495
          %2497 = vrot.lane.b32.xlu0 %v2486, 127
          %v2498 = vpop.permute.xlu0 %2497
          %2499 = vrot.lane.b32.xlu0 %v2488, 127
          %v2500 = vpop.permute.xlu0 %2499
          %2501 = vrot.lane.b32.xlu0 %v2490, 127
          %v2502 = vpop.permute.xlu0 %2501
          %2503 = vrot.lane.b32.xlu0 %v2492, 127
          %v2504 = vpop.permute.xlu0 %2503
          %v2505 = vsel %vm549, %v2494, %v2496
          %v2506 = vsel %vm549, %v2498, %v2500
          %v2507 = vsel %vm549, %v2502, %v2504
          %v2514 = vadd.f32 %v2463, %v2505
          %v2515 = vadd.f32 %v2464, %v2496
          %v2516 = vadd.f32 %v2465, %v2506
          %v2517 = vadd.f32 %v2466, %v2500
          %v2518 = vadd.f32 %v2467, %v2507
          %v2519 = vadd.f32 %v2468, %v2504
          %s2520 = sld [smem:[#allocation6 + $0x33]]
          %v2521 = vstv %s2520
          %v2522 = vmul.f32 %v2521, %v1951
          %v2523 = vmul.f32 %v2521, %v1952
          %v2524 = vmul.f32 %v2521, %v1953
          %v2525 = vmul.f32 %v2521, %v1954
          %v2526 = vmul.f32 %v2521, %v1955
          %v2527 = vmul.f32 %v2521, %v1956
          %2534 = vrot.lane.b32.xlu0 %v2522, 126
          %v2535 = vpop.permute.xlu0 %2534
          %2536 = vrot.lane.b32.xlu0 %v2523, 126
          %v2537 = vpop.permute.xlu0 %2536
          %2538 = vrot.lane.b32.xlu0 %v2524, 126
          %v2539 = vpop.permute.xlu0 %2538
          %2540 = vrot.lane.b32.xlu0 %v2525, 126
          %v2541 = vpop.permute.xlu0 %2540
          %2542 = vrot.lane.b32.xlu0 %v2526, 126
          %v2543 = vpop.permute.xlu0 %2542
          %2544 = vrot.lane.b32.xlu0 %v2527, 126
          %v2545 = vpop.permute.xlu0 %2544
          %v2546 = vsel %vm889, %v2535, %v2537
          %v2547 = vsel %vm889, %v2539, %v2541
          %v2548 = vsel %vm889, %v2543, %v2545
          %v2555 = vadd.f32 %v2514, %v2546
          %v2556 = vadd.f32 %v2515, %v2537
          %v2557 = vadd.f32 %v2516, %v2547
          %v2558 = vadd.f32 %v2517, %v2541
          %v2559 = vadd.f32 %v2518, %v2548
          %v2560 = vadd.f32 %v2519, %v2545
          %s2561 = sld [smem:[#allocation6 + $0x3a]]
          %v2562 = vstv %s2561
          %v2563 = vmul.f32 %v2562, %v1951
          %v2564 = vmul.f32 %v2562, %v1952
          %v2565 = vmul.f32 %v2562, %v1953
          %v2566 = vmul.f32 %v2562, %v1954
          %v2567 = vmul.f32 %v2562, %v1955
          %v2568 = vmul.f32 %v2562, %v1956
          %v2575 = vrot.slane %v2563, 1
          %v2576 = vrot.slane %v2565, 1
          %v2577 = vsel %vm323, %v2575, %v2576
          %v2578 = vrot.slane %v2564, 1
          %v2579 = vrot.slane %v2566, 1
          %v2580 = vsel %vm323, %v2578, %v2579
          %v2581 = vrot.slane %v2567, 1
          %v2582 = vsel %vm323, %v2576, %v2581
          %v2583 = vrot.slane %v2568, 1
          %v2584 = vsel %vm323, %v2579, %v2583
          %2585 = vrot.lane.b32.xlu0 %v2577, 126
          %v2586 = vpop.permute.xlu0 %2585
          %2587 = vrot.lane.b32.xlu0 %v2580, 126
          %v2588 = vpop.permute.xlu0 %2587
          %2589 = vrot.lane.b32.xlu0 %v2582, 126
          %v2590 = vpop.permute.xlu0 %2589
          %2591 = vrot.lane.b32.xlu0 %v2584, 126
          %v2592 = vpop.permute.xlu0 %2591
          %2593 = vrot.lane.b32.xlu0 %v2581, 126
          %v2594 = vpop.permute.xlu0 %2593
          %2595 = vrot.lane.b32.xlu0 %v2583, 126
          %v2596 = vpop.permute.xlu0 %2595
          %v2597 = vsel %vm889, %v2586, %v2588
          %v2598 = vsel %vm889, %v2590, %v2592
          %v2599 = vsel %vm889, %v2594, %v2596
          %v2606 = vadd.f32 %v2555, %v2597
          %v2607 = vadd.f32 %v2556, %v2588
          %v2608 = vadd.f32 %v2557, %v2598
          %v2609 = vadd.f32 %v2558, %v2592
          %v2610 = vadd.f32 %v2559, %v2599
          %v2611 = vadd.f32 %v2560, %v2596
          %s2612 = sld [smem:[#allocation6 + $0x41]]
          %v2613 = vstv %s2612
          %v2614 = vmul.f32 %v2613, %v1951
          %v2615 = vmul.f32 %v2613, %v1952
          %v2616 = vmul.f32 %v2613, %v1953
          %v2617 = vmul.f32 %v2613, %v1954
          %v2618 = vmul.f32 %v2613, %v1955
          %v2619 = vmul.f32 %v2613, %v1956
          %v2626 = vrot.slane %v2614, 2
          %v2627 = vrot.slane %v2616, 2
          %v2628 = vsel %vm360, %v2626, %v2627
          %v2629 = vrot.slane %v2615, 2
          %v2630 = vrot.slane %v2617, 2
          %v2631 = vsel %vm360, %v2629, %v2630
          %v2632 = vrot.slane %v2618, 2
          %v2633 = vsel %vm360, %v2627, %v2632
          %v2634 = vrot.slane %v2619, 2
          %v2635 = vsel %vm360, %v2630, %v2634
          %2636 = vrot.lane.b32.xlu0 %v2628, 126
          %v2637 = vpop.permute.xlu0 %2636
          %2638 = vrot.lane.b32.xlu0 %v2631, 126
          %v2639 = vpop.permute.xlu0 %2638
          %2640 = vrot.lane.b32.xlu0 %v2633, 126
          %v2641 = vpop.permute.xlu0 %2640
          %2642 = vrot.lane.b32.xlu0 %v2635, 126
          %v2643 = vpop.permute.xlu0 %2642
          %2644 = vrot.lane.b32.xlu0 %v2632, 126
          %v2645 = vpop.permute.xlu0 %2644
          %2646 = vrot.lane.b32.xlu0 %v2634, 126
          %v2647 = vpop.permute.xlu0 %2646
          %v2648 = vsel %vm889, %v2637, %v2639
          %v2649 = vsel %vm889, %v2641, %v2643
          %v2650 = vsel %vm889, %v2645, %v2647
          %v2657 = vadd.f32 %v2606, %v2648
          %v2658 = vadd.f32 %v2607, %v2639
          %v2659 = vadd.f32 %v2608, %v2649
          %v2660 = vadd.f32 %v2609, %v2643
          %v2661 = vadd.f32 %v2610, %v2650
          %v2662 = vadd.f32 %v2611, %v2647
          %s2663 = sld [smem:[#allocation6 + $0x48]]
          %v2664 = vstv %s2663
          %v2665 = vmul.f32 %v2664, %v1953
          %v2666 = vmul.f32 %v2664, %v1954
          %v2667 = vmul.f32 %v2664, %v1955
          %v2668 = vmul.f32 %v2664, %v1956
          %v2673 = vrot.slane %v2665, 3
          %v2674 = vrot.slane %v2666, 3
          %v2675 = vrot.slane %v2667, 3
          %v2676 = vsel %vm393, %v2673, %v2675
          %v2677 = vrot.slane %v2668, 3
          %v2678 = vsel %vm393, %v2674, %v2677
          %2679 = vrot.lane.b32.xlu0 %v2673, 126
          %v2680 = vpop.permute.xlu0 %2679
          %2681 = vrot.lane.b32.xlu0 %v2674, 126
          %v2682 = vpop.permute.xlu0 %2681
          %2683 = vrot.lane.b32.xlu0 %v2676, 126
          %v2684 = vpop.permute.xlu0 %2683
          %2685 = vrot.lane.b32.xlu0 %v2678, 126
          %v2686 = vpop.permute.xlu0 %2685
          %2687 = vrot.lane.b32.xlu0 %v2675, 126
          %v2688 = vpop.permute.xlu0 %2687
          %2689 = vrot.lane.b32.xlu0 %v2677, 126
          %v2690 = vpop.permute.xlu0 %2689
          %v2691 = vsel %vm889, %v2680, %v2682
          %v2692 = vsel %vm889, %v2684, %v2686
          %v2693 = vsel %vm889, %v2688, %v2690
          %v2700 = vadd.f32 %v2657, %v2691
          %v2701 = vadd.f32 %v2658, %v2682
          %v2702 = vadd.f32 %v2659, %v2692
          %v2703 = vadd.f32 %v2660, %v2686
          %v2704 = vadd.f32 %v2661, %v2693
          %v2705 = vadd.f32 %v2662, %v2690
          %s2706 = sld [smem:[#allocation6 + $0x4f]]
          %v2707 = vstv %s2706
          %v2708 = vmul.f32 %v2707, %v1953
          %v2709 = vmul.f32 %v2707, %v1954
          %v2710 = vmul.f32 %v2707, %v1955
          %v2711 = vmul.f32 %v2707, %v1956
          %v2712 = vmul.f32 %v2707, %v1957
          %v2713 = vmul.f32 %v2707, %v1958
          %v2720 = vrot.slane %v2708, 4
          %v2721 = vrot.slane %v2709, 4
          %v2722 = vrot.slane %v2710, 4
          %v2723 = vsel %vm426, %v2720, %v2722
          %v2724 = vrot.slane %v2711, 4
          %v2725 = vsel %vm426, %v2721, %v2724
          %v2726 = vrot.slane %v2712, 4
          %v2727 = vsel %vm426, %v2722, %v2726
          %v2728 = vrot.slane %v2713, 4
          %v2729 = vsel %vm426, %v2724, %v2728
          %2730 = vrot.lane.b32.xlu0 %v2720, 126
          %v2731 = vpop.permute.xlu0 %2730
          %2732 = vrot.lane.b32.xlu0 %v2721, 126
          %v2733 = vpop.permute.xlu0 %2732
          %2734 = vrot.lane.b32.xlu0 %v2723, 126
          %v2735 = vpop.permute.xlu0 %2734
          %2736 = vrot.lane.b32.xlu0 %v2725, 126
          %v2737 = vpop.permute.xlu0 %2736
          %2738 = vrot.lane.b32.xlu0 %v2727, 126
          %v2739 = vpop.permute.xlu0 %2738
          %2740 = vrot.lane.b32.xlu0 %v2729, 126
          %v2741 = vpop.permute.xlu0 %2740
          %v2742 = vsel %vm889, %v2731, %v2733
          %v2743 = vsel %vm889, %v2735, %v2737
          %v2744 = vsel %vm889, %v2739, %v2741
          %v2751 = vadd.f32 %v2700, %v2742
          %v2752 = vadd.f32 %v2701, %v2733
          %v2753 = vadd.f32 %v2702, %v2743
          %v2754 = vadd.f32 %v2703, %v2737
          %v2755 = vadd.f32 %v2704, %v2744
          %v2756 = vadd.f32 %v2705, %v2741
          %s2757 = sld [smem:[#allocation6 + $0x56]]
          %v2758 = vstv %s2757
          %v2759 = vmul.f32 %v2758, %v1953
          %v2760 = vmul.f32 %v2758, %v1954
          %v2761 = vmul.f32 %v2758, %v1955
          %v2762 = vmul.f32 %v2758, %v1956
          %v2763 = vmul.f32 %v2758, %v1957
          %v2764 = vmul.f32 %v2758, %v1958
          %v2771 = vrot.slane %v2759, 5
          %v2772 = vrot.slane %v2760, 5
          %v2773 = vrot.slane %v2761, 5
          %v2774 = vsel %vm463, %v2771, %v2773
          %v2775 = vrot.slane %v2762, 5
          %v2776 = vsel %vm463, %v2772, %v2775
          %v2777 = vrot.slane %v2763, 5
          %v2778 = vsel %vm463, %v2773, %v2777
          %v2779 = vrot.slane %v2764, 5
          %v2780 = vsel %vm463, %v2775, %v2779
          %2781 = vrot.lane.b32.xlu0 %v2771, 126
          %v2782 = vpop.permute.xlu0 %2781
          %2783 = vrot.lane.b32.xlu0 %v2772, 126
          %v2784 = vpop.permute.xlu0 %2783
          %2785 = vrot.lane.b32.xlu0 %v2774, 126
          %v2786 = vpop.permute.xlu0 %2785
          %2787 = vrot.lane.b32.xlu0 %v2776, 126
          %v2788 = vpop.permute.xlu0 %2787
          %2789 = vrot.lane.b32.xlu0 %v2778, 126
          %v2790 = vpop.permute.xlu0 %2789
          %2791 = vrot.lane.b32.xlu0 %v2780, 126
          %v2792 = vpop.permute.xlu0 %2791
          %v2793 = vsel %vm889, %v2782, %v2784
          %v2794 = vsel %vm889, %v2786, %v2788
          %v2795 = vsel %vm889, %v2790, %v2792
          %v2802 = vadd.f32 %v2751, %v2793
          %v2803 = vadd.f32 %v2752, %v2784
          %v2804 = vadd.f32 %v2753, %v2794
          %v2805 = vadd.f32 %v2754, %v2788
          %v2806 = vadd.f32 %v2755, %v2795
          %v2807 = vadd.f32 %v2756, %v2792
          %s2808 = sld [smem:[#allocation6 + $0x5d]]
          %v2809 = vstv %s2808
          %v2810 = vmul.f32 %v2809, %v1953
          %v2811 = vmul.f32 %v2809, %v1954
          %v2812 = vmul.f32 %v2809, %v1955
          %v2813 = vmul.f32 %v2809, %v1956
          %v2814 = vmul.f32 %v2809, %v1957
          %v2815 = vmul.f32 %v2809, %v1958
          %v2822 = vrot.slane %v2810, 6
          %v2823 = vrot.slane %v2811, 6
          %v2824 = vrot.slane %v2812, 6
          %v2825 = vsel %vm500, %v2822, %v2824
          %v2826 = vrot.slane %v2813, 6
          %v2827 = vsel %vm500, %v2823, %v2826
          %v2828 = vrot.slane %v2814, 6
          %v2829 = vsel %vm500, %v2824, %v2828
          %v2830 = vrot.slane %v2815, 6
          %v2831 = vsel %vm500, %v2826, %v2830
          %2832 = vrot.lane.b32.xlu0 %v2822, 126
          %v2833 = vpop.permute.xlu0 %2832
          %2834 = vrot.lane.b32.xlu0 %v2823, 126
          %v2835 = vpop.permute.xlu0 %2834
          %2836 = vrot.lane.b32.xlu0 %v2825, 126
          %v2837 = vpop.permute.xlu0 %2836
          %2838 = vrot.lane.b32.xlu0 %v2827, 126
          %v2839 = vpop.permute.xlu0 %2838
          %2840 = vrot.lane.b32.xlu0 %v2829, 126
          %v2841 = vpop.permute.xlu0 %2840
          %2842 = vrot.lane.b32.xlu0 %v2831, 126
          %v2843 = vpop.permute.xlu0 %2842
          %v2844 = vsel %vm889, %v2833, %v2835
          %v2845 = vsel %vm889, %v2837, %v2839
          %v2846 = vsel %vm889, %v2841, %v2843
          %v2853 = vadd.f32 %v2802, %v2844
          %v2854 = vadd.f32 %v2803, %v2835
          %v2855 = vadd.f32 %v2804, %v2845
          %v2856 = vadd.f32 %v2805, %v2839
          %v2857 = vadd.f32 %v2806, %v2846
          %v2858 = vadd.f32 %v2807, %v2843
          %s2859 = sld [smem:[#allocation6 + $0x34]]
          %v2860 = vstv %s2859
          %v2861 = vmul.f32 %v2860, %v1952
          %v2862 = vmul.f32 %v2860, %v1954
          %v2863 = vmul.f32 %v2860, %v1956
          %2867 = vrot.lane.b32.xlu0 %v2861, 125
          %v2868 = vpop.permute.xlu0 %2867
          %2869 = vrot.lane.b32.xlu0 %v2862, 125
          %v2870 = vpop.permute.xlu0 %2869
          %2871 = vrot.lane.b32.xlu0 %v2863, 125
          %v2872 = vpop.permute.xlu0 %2871
          %v2876 = vadd.f32 %v2853, %v2868
          %v2877 = vadd.f32 %v2854, %v2868
          %v2878 = vadd.f32 %v2855, %v2870
          %v2879 = vadd.f32 %v2856, %v2870
          %v2880 = vadd.f32 %v2857, %v2872
          %v2881 = vadd.f32 %v2858, %v2872
          %s2882 = sld [smem:[#allocation6 + $0x3b]]
          %v2883 = vstv %s2882
          %v2884 = vmul.f32 %v2883, %v1952
          %v2885 = vmul.f32 %v2883, %v1954
          %v2886 = vmul.f32 %v2883, %v1956
          %v2890 = vrot.slane %v2884, 1
          %v2891 = vrot.slane %v2885, 1
          %v2892 = vsel %vm323, %v2890, %v2891
          %v2893 = vrot.slane %v2886, 1
          %v2894 = vsel %vm323, %v2891, %v2893
          %2895 = vrot.lane.b32.xlu0 %v2892, 125
          %v2896 = vpop.permute.xlu0 %2895
          %2897 = vrot.lane.b32.xlu0 %v2894, 125
          %v2898 = vpop.permute.xlu0 %2897
          %2899 = vrot.lane.b32.xlu0 %v2893, 125
          %v2900 = vpop.permute.xlu0 %2899
          %v2904 = vadd.f32 %v2876, %v2896
          %v2905 = vadd.f32 %v2877, %v2896
          %v2906 = vadd.f32 %v2878, %v2898
          %v2907 = vadd.f32 %v2879, %v2898
          %v2908 = vadd.f32 %v2880, %v2900
          %v2909 = vadd.f32 %v2881, %v2900
          %s2910 = sld [smem:[#allocation6 + $0x42]]
          %v2911 = vstv %s2910
          %v2912 = vmul.f32 %v2911, %v1952
          %v2913 = vmul.f32 %v2911, %v1954
          %v2914 = vmul.f32 %v2911, %v1956
          %v2918 = vrot.slane %v2912, 2
          %v2919 = vrot.slane %v2913, 2
          %v2920 = vsel %vm360, %v2918, %v2919
          %v2921 = vrot.slane %v2914, 2
          %v2922 = vsel %vm360, %v2919, %v2921
          %2923 = vrot.lane.b32.xlu0 %v2920, 125
          %v2924 = vpop.permute.xlu0 %2923
          %2925 = vrot.lane.b32.xlu0 %v2922, 125
          %v2926 = vpop.permute.xlu0 %2925
          %2927 = vrot.lane.b32.xlu0 %v2921, 125
          %v2928 = vpop.permute.xlu0 %2927
          %v2932 = vadd.f32 %v2904, %v2924
          %v2933 = vadd.f32 %v2905, %v2924
          %v2934 = vadd.f32 %v2906, %v2926
          %v2935 = vadd.f32 %v2907, %v2926
          %v2936 = vadd.f32 %v2908, %v2928
          %v2937 = vadd.f32 %v2909, %v2928
          %s2938 = sld [smem:[#allocation6 + $0x49]]
          %v2939 = vstv %s2938
          %v2940 = vmul.f32 %v2939, %v1954
          %v2941 = vmul.f32 %v2939, %v1956
          %v2944 = vrot.slane %v2940, 3
          %v2945 = vrot.slane %v2941, 3
          %v2946 = vsel %vm393, %v2944, %v2945
          %2947 = vrot.lane.b32.xlu0 %v2944, 125
          %v2948 = vpop.permute.xlu0 %2947
          %2949 = vrot.lane.b32.xlu0 %v2946, 125
          %v2950 = vpop.permute.xlu0 %2949
          %2951 = vrot.lane.b32.xlu0 %v2945, 125
          %v2952 = vpop.permute.xlu0 %2951
          %v2956 = vadd.f32 %v2932, %v2948
          %v2957 = vadd.f32 %v2933, %v2948
          %v2958 = vadd.f32 %v2934, %v2950
          %v2959 = vadd.f32 %v2935, %v2950
          %v2960 = vadd.f32 %v2936, %v2952
          %v2961 = vadd.f32 %v2937, %v2952
          %s2962 = sld [smem:[#allocation6 + $0x50]]
          %v2963 = vstv %s2962
          %v2964 = vmul.f32 %v2963, %v1954
          %v2965 = vmul.f32 %v2963, %v1956
          %v2966 = vmul.f32 %v2963, %v1958
          %v2970 = vrot.slane %v2964, 4
          %v2971 = vrot.slane %v2965, 4
          %v2972 = vsel %vm426, %v2970, %v2971
          %v2973 = vrot.slane %v2966, 4
          %v2974 = vsel %vm426, %v2971, %v2973
          %2975 = vrot.lane.b32.xlu0 %v2970, 125
          %v2976 = vpop.permute.xlu0 %2975
          %2977 = vrot.lane.b32.xlu0 %v2972, 125
          %v2978 = vpop.permute.xlu0 %2977
          %2979 = vrot.lane.b32.xlu0 %v2974, 125
          %v2980 = vpop.permute.xlu0 %2979
          %v2984 = vadd.f32 %v2956, %v2976
          %v2985 = vadd.f32 %v2957, %v2976
          %v2986 = vadd.f32 %v2958, %v2978
          %v2987 = vadd.f32 %v2959, %v2978
          %v2988 = vadd.f32 %v2960, %v2980
          %v2989 = vadd.f32 %v2961, %v2980
          %s2990 = sld [smem:[#allocation6 + $0x57]]
          %v2991 = vstv %s2990
          %v2992 = vmul.f32 %v2991, %v1954
          %v2993 = vmul.f32 %v2991, %v1956
          %v2994 = vmul.f32 %v2991, %v1958
          %v2998 = vrot.slane %v2992, 5
          %v2999 = vrot.slane %v2993, 5
          %v3000 = vsel %vm463, %v2998, %v2999
          %v3001 = vrot.slane %v2994, 5
          %v3002 = vsel %vm463, %v2999, %v3001
          %3003 = vrot.lane.b32.xlu0 %v2998, 125
          %v3004 = vpop.permute.xlu0 %3003
          %3005 = vrot.lane.b32.xlu0 %v3000, 125
          %v3006 = vpop.permute.xlu0 %3005
          %3007 = vrot.lane.b32.xlu0 %v3002, 125
          %v3008 = vpop.permute.xlu0 %3007
          %v3012 = vadd.f32 %v2984, %v3004
          %v3013 = vadd.f32 %v2985, %v3004
          %v3014 = vadd.f32 %v2986, %v3006
          %v3015 = vadd.f32 %v2987, %v3006
          %v3016 = vadd.f32 %v2988, %v3008
          %v3017 = vadd.f32 %v2989, %v3008
          %s3018 = sld [smem:[#allocation6 + $0x5e]]
          %v3019 = vstv %s3018
          %v3020 = vmul.f32 %v3019, %v1954
          %v3021 = vmul.f32 %v3019, %v1956
          %v3022 = vmul.f32 %v3019, %v1958
          %v3026 = vrot.slane %v3020, 6
          %v3027 = vrot.slane %v3021, 6
          %v3028 = vsel %vm500, %v3026, %v3027
          %v3029 = vrot.slane %v3022, 6
          %v3030 = vsel %vm500, %v3027, %v3029
          %3031 = vrot.lane.b32.xlu0 %v3026, 125
          %v3032 = vpop.permute.xlu0 %3031
          %3033 = vrot.lane.b32.xlu0 %v3028, 125
          %v3034 = vpop.permute.xlu0 %3033
          %3035 = vrot.lane.b32.xlu0 %v3030, 125
          %v3036 = vpop.permute.xlu0 %3035
          %v3040 = vadd.f32 %v3012, %v3032
          %v3041 = vadd.f32 %v3013, %v3032
          %v3042 = vadd.f32 %v3014, %v3034
          %v3043 = vadd.f32 %v3015, %v3034
          %v3044 = vadd.f32 %v3016, %v3036
          %v3045 = vadd.f32 %v3017, %v3036
          %s3046 = sld [smem:[#allocation6 + $0x35]]
          %v3047 = vstv %s3046
          %v3048 = vmul.f32 %v3047, %v1952
          %v3049 = vmul.f32 %v3047, %v1954
          %v3050 = vmul.f32 %v3047, %v1956
          %3054 = vrot.lane.b32.xlu0 %v3048, 124
          %v3055 = vpop.permute.xlu0 %3054
          %3056 = vrot.lane.b32.xlu0 %v3049, 124
          %v3057 = vpop.permute.xlu0 %3056
          %3058 = vrot.lane.b32.xlu0 %v3050, 124
          %v3059 = vpop.permute.xlu0 %3058
          %v3063 = vadd.f32 %v3040, %v3055
          %v3064 = vadd.f32 %v3041, %v3055
          %v3065 = vadd.f32 %v3042, %v3057
          %v3066 = vadd.f32 %v3043, %v3057
          %v3067 = vadd.f32 %v3044, %v3059
          %v3068 = vadd.f32 %v3045, %v3059
          %s3069 = sld [smem:[#allocation6 + $0x3c]]
          %v3070 = vstv %s3069
          %v3071 = vmul.f32 %v3070, %v1952
          %v3072 = vmul.f32 %v3070, %v1954
          %v3073 = vmul.f32 %v3070, %v1956
          %v3077 = vrot.slane %v3071, 1
          %v3078 = vrot.slane %v3072, 1
          %v3079 = vsel %vm323, %v3077, %v3078
          %v3080 = vrot.slane %v3073, 1
          %v3081 = vsel %vm323, %v3078, %v3080
          %3082 = vrot.lane.b32.xlu0 %v3079, 124
          %v3083 = vpop.permute.xlu0 %3082
          %3084 = vrot.lane.b32.xlu0 %v3081, 124
          %v3085 = vpop.permute.xlu0 %3084
          %3086 = vrot.lane.b32.xlu0 %v3080, 124
          %v3087 = vpop.permute.xlu0 %3086
          %v3091 = vadd.f32 %v3063, %v3083
          %v3092 = vadd.f32 %v3064, %v3083
          %v3093 = vadd.f32 %v3065, %v3085
          %v3094 = vadd.f32 %v3066, %v3085
          %v3095 = vadd.f32 %v3067, %v3087
          %v3096 = vadd.f32 %v3068, %v3087
          %s3097 = sld [smem:[#allocation6 + $0x43]]
          %v3098 = vstv %s3097
          %v3099 = vmul.f32 %v3098, %v1952
          %v3100 = vmul.f32 %v3098, %v1954
          %v3101 = vmul.f32 %v3098, %v1956
          %v3105 = vrot.slane %v3099, 2
          %v3106 = vrot.slane %v3100, 2
          %v3107 = vsel %vm360, %v3105, %v3106
          %v3108 = vrot.slane %v3101, 2
          %v3109 = vsel %vm360, %v3106, %v3108
          %3110 = vrot.lane.b32.xlu0 %v3107, 124
          %v3111 = vpop.permute.xlu0 %3110
          %3112 = vrot.lane.b32.xlu0 %v3109, 124
          %v3113 = vpop.permute.xlu0 %3112
          %3114 = vrot.lane.b32.xlu0 %v3108, 124
          %v3115 = vpop.permute.xlu0 %3114
          %v3119 = vadd.f32 %v3091, %v3111
          %v3120 = vadd.f32 %v3092, %v3111
          %v3121 = vadd.f32 %v3093, %v3113
          %v3122 = vadd.f32 %v3094, %v3113
          %v3123 = vadd.f32 %v3095, %v3115
          %v3124 = vadd.f32 %v3096, %v3115
          %s3125 = sld [smem:[#allocation6 + $0x4a]]
          %v3126 = vstv %s3125
          %v3127 = vmul.f32 %v3126, %v1954
          %v3128 = vmul.f32 %v3126, %v1956
          %v3131 = vrot.slane %v3127, 3
          %v3132 = vrot.slane %v3128, 3
          %v3133 = vsel %vm393, %v3131, %v3132
          %3134 = vrot.lane.b32.xlu0 %v3131, 124
          %v3135 = vpop.permute.xlu0 %3134
          %3136 = vrot.lane.b32.xlu0 %v3133, 124
          %v3137 = vpop.permute.xlu0 %3136
          %3138 = vrot.lane.b32.xlu0 %v3132, 124
          %v3139 = vpop.permute.xlu0 %3138
          %v3143 = vadd.f32 %v3119, %v3135
          %v3144 = vadd.f32 %v3120, %v3135
          %v3145 = vadd.f32 %v3121, %v3137
          %v3146 = vadd.f32 %v3122, %v3137
          %v3147 = vadd.f32 %v3123, %v3139
          %v3148 = vadd.f32 %v3124, %v3139
          %s3149 = sld [smem:[#allocation6 + $0x51]]
          %v3150 = vstv %s3149
          %v3151 = vmul.f32 %v3150, %v1954
          %v3152 = vmul.f32 %v3150, %v1956
          %v3153 = vmul.f32 %v3150, %v1958
          %v3157 = vrot.slane %v3151, 4
          %v3158 = vrot.slane %v3152, 4
          %v3159 = vsel %vm426, %v3157, %v3158
          %v3160 = vrot.slane %v3153, 4
          %v3161 = vsel %vm426, %v3158, %v3160
          %3162 = vrot.lane.b32.xlu0 %v3157, 124
          %v3163 = vpop.permute.xlu0 %3162
          %3164 = vrot.lane.b32.xlu0 %v3159, 124
          %v3165 = vpop.permute.xlu0 %3164
          %3166 = vrot.lane.b32.xlu0 %v3161, 124
          %v3167 = vpop.permute.xlu0 %3166
          %v3171 = vadd.f32 %v3143, %v3163
          %v3172 = vadd.f32 %v3144, %v3163
          %v3173 = vadd.f32 %v3145, %v3165
          %v3174 = vadd.f32 %v3146, %v3165
          %v3175 = vadd.f32 %v3147, %v3167
          %v3176 = vadd.f32 %v3148, %v3167
          %s3177 = sld [smem:[#allocation6 + $0x58]]
          %v3178 = vstv %s3177
          %v3179 = vmul.f32 %v3178, %v1954
          %v3180 = vmul.f32 %v3178, %v1956
          %v3181 = vmul.f32 %v3178, %v1958
          %v3185 = vrot.slane %v3179, 5
          %v3186 = vrot.slane %v3180, 5
          %v3187 = vsel %vm463, %v3185, %v3186
          %v3188 = vrot.slane %v3181, 5
          %v3189 = vsel %vm463, %v3186, %v3188
          %3190 = vrot.lane.b32.xlu0 %v3185, 124
          %v3191 = vpop.permute.xlu0 %3190
          %3192 = vrot.lane.b32.xlu0 %v3187, 124
          %v3193 = vpop.permute.xlu0 %3192
          %3194 = vrot.lane.b32.xlu0 %v3189, 124
          %v3195 = vpop.permute.xlu0 %3194
          %v3199 = vadd.f32 %v3171, %v3191
          %v3200 = vadd.f32 %v3172, %v3191
          %v3201 = vadd.f32 %v3173, %v3193
          %v3202 = vadd.f32 %v3174, %v3193
          %v3203 = vadd.f32 %v3175, %v3195
          %v3204 = vadd.f32 %v3176, %v3195
          %s3205 = sld [smem:[#allocation6 + $0x5f]]
          %v3206 = vstv %s3205
          %v3207 = vmul.f32 %v3206, %v1954
          %v3208 = vmul.f32 %v3206, %v1956
          %v3209 = vmul.f32 %v3206, %v1958
          %v3213 = vrot.slane %v3207, 6
          %v3214 = vrot.slane %v3208, 6
          %v3215 = vsel %vm500, %v3213, %v3214
          %v3216 = vrot.slane %v3209, 6
          %v3217 = vsel %vm500, %v3214, %v3216
          %3218 = vrot.lane.b32.xlu0 %v3213, 124
          %v3219 = vpop.permute.xlu0 %3218
          %3220 = vrot.lane.b32.xlu0 %v3215, 124
          %v3221 = vpop.permute.xlu0 %3220
          %3222 = vrot.lane.b32.xlu0 %v3217, 124
          %v3223 = vpop.permute.xlu0 %3222
          %v3227 = vadd.f32 %v3199, %v3219
          %v3228 = vadd.f32 %v3200, %v3219
          %v3229 = vadd.f32 %v3201, %v3221
          %v3230 = vadd.f32 %v3202, %v3221
          %v3231 = vadd.f32 %v3203, %v3223
          %v3232 = vadd.f32 %v3204, %v3223
          %s3233 = sld [smem:[#allocation6 + $0x36]]
          %v3234 = vstv %s3233
          %v3235 = vmul.f32 %v3234, %v1952
          %v3236 = vmul.f32 %v3234, %v1954
          %v3237 = vmul.f32 %v3234, %v1956
          %3241 = vrot.lane.b32.xlu0 %v3235, 123
          %v3242 = vpop.permute.xlu0 %3241
          %3243 = vrot.lane.b32.xlu0 %v3236, 123
          %v3244 = vpop.permute.xlu0 %3243
          %3245 = vrot.lane.b32.xlu0 %v3237, 123
          %v3246 = vpop.permute.xlu0 %3245
          %v3250 = vadd.f32 %v3227, %v3242
          %v3251 = vadd.f32 %v3228, %v3242
          %v3252 = vadd.f32 %v3229, %v3244
          %v3253 = vadd.f32 %v3230, %v3244
          %v3254 = vadd.f32 %v3231, %v3246
          %v3255 = vadd.f32 %v3232, %v3246
          %s3256 = sld [smem:[#allocation6 + $0x3d]]
          %v3257 = vstv %s3256
          %v3258 = vmul.f32 %v3257, %v1952
          %v3259 = vmul.f32 %v3257, %v1954
          %v3260 = vmul.f32 %v3257, %v1956
          %v3264 = vrot.slane %v3258, 1
          %v3265 = vrot.slane %v3259, 1
          %v3266 = vsel %vm323, %v3264, %v3265
          %v3267 = vrot.slane %v3260, 1
          %v3268 = vsel %vm323, %v3265, %v3267
          %3269 = vrot.lane.b32.xlu0 %v3266, 123
          %v3270 = vpop.permute.xlu0 %3269
          %3271 = vrot.lane.b32.xlu0 %v3268, 123
          %v3272 = vpop.permute.xlu0 %3271
          %3273 = vrot.lane.b32.xlu0 %v3267, 123
          %v3274 = vpop.permute.xlu0 %3273
          %v3278 = vadd.f32 %v3250, %v3270
          %v3279 = vadd.f32 %v3251, %v3270
          %v3280 = vadd.f32 %v3252, %v3272
          %v3281 = vadd.f32 %v3253, %v3272
          %v3282 = vadd.f32 %v3254, %v3274
          %v3283 = vadd.f32 %v3255, %v3274
          %s3284 = sld [smem:[#allocation6 + $0x44]]
          %v3285 = vstv %s3284
          %v3286 = vmul.f32 %v3285, %v1952
          %v3287 = vmul.f32 %v3285, %v1954
          %v3288 = vmul.f32 %v3285, %v1956
          %v3292 = vrot.slane %v3286, 2
          %v3293 = vrot.slane %v3287, 2
          %v3294 = vsel %vm360, %v3292, %v3293
          %v3295 = vrot.slane %v3288, 2
          %v3296 = vsel %vm360, %v3293, %v3295
          %3297 = vrot.lane.b32.xlu0 %v3294, 123
          %v3298 = vpop.permute.xlu0 %3297
          %3299 = vrot.lane.b32.xlu0 %v3296, 123
          %v3300 = vpop.permute.xlu0 %3299
          %3301 = vrot.lane.b32.xlu0 %v3295, 123
          %v3302 = vpop.permute.xlu0 %3301
          %v3306 = vadd.f32 %v3278, %v3298
          %v3307 = vadd.f32 %v3279, %v3298
          %v3308 = vadd.f32 %v3280, %v3300
          %v3309 = vadd.f32 %v3281, %v3300
          %v3310 = vadd.f32 %v3282, %v3302
          %v3311 = vadd.f32 %v3283, %v3302
          %s3312 = sld [smem:[#allocation6 + $0x4b]]
          %v3313 = vstv %s3312
          %v3314 = vmul.f32 %v3313, %v1954
          %v3315 = vmul.f32 %v3313, %v1956
          %v3318 = vrot.slane %v3314, 3
          %v3319 = vrot.slane %v3315, 3
          %v3320 = vsel %vm393, %v3318, %v3319
          %3321 = vrot.lane.b32.xlu0 %v3318, 123
          %v3322 = vpop.permute.xlu0 %3321
          %3323 = vrot.lane.b32.xlu0 %v3320, 123
          %v3324 = vpop.permute.xlu0 %3323
          %3325 = vrot.lane.b32.xlu0 %v3319, 123
          %v3326 = vpop.permute.xlu0 %3325
          %v3330 = vadd.f32 %v3306, %v3322
          %v3331 = vadd.f32 %v3307, %v3322
          %v3332 = vadd.f32 %v3308, %v3324
          %v3333 = vadd.f32 %v3309, %v3324
          %v3334 = vadd.f32 %v3310, %v3326
          %v3335 = vadd.f32 %v3311, %v3326
          %s3336 = sld [smem:[#allocation6 + $0x52]]
          %v3337 = vstv %s3336
          %v3338 = vmul.f32 %v3337, %v1954
          %v3339 = vmul.f32 %v3337, %v1956
          %v3340 = vmul.f32 %v3337, %v1958
          %v3344 = vrot.slane %v3338, 4
          %v3345 = vrot.slane %v3339, 4
          %v3346 = vsel %vm426, %v3344, %v3345
          %v3347 = vrot.slane %v3340, 4
          %v3348 = vsel %vm426, %v3345, %v3347
          %3349 = vrot.lane.b32.xlu0 %v3344, 123
          %v3350 = vpop.permute.xlu0 %3349
          %3351 = vrot.lane.b32.xlu0 %v3346, 123
          %v3352 = vpop.permute.xlu0 %3351
          %3353 = vrot.lane.b32.xlu0 %v3348, 123
          %v3354 = vpop.permute.xlu0 %3353
          %v3358 = vadd.f32 %v3330, %v3350
          %v3359 = vadd.f32 %v3331, %v3350
          %v3360 = vadd.f32 %v3332, %v3352
          %v3361 = vadd.f32 %v3333, %v3352
          %v3362 = vadd.f32 %v3334, %v3354
          %v3363 = vadd.f32 %v3335, %v3354
          %s3364 = sld [smem:[#allocation6 + $0x59]]
          %v3365 = vstv %s3364
          %v3366 = vmul.f32 %v3365, %v1954
          %v3367 = vmul.f32 %v3365, %v1956
          %v3368 = vmul.f32 %v3365, %v1958
          %v3372 = vrot.slane %v3366, 5
          %v3373 = vrot.slane %v3367, 5
          %v3374 = vsel %vm463, %v3372, %v3373
          %v3375 = vrot.slane %v3368, 5
          %v3376 = vsel %vm463, %v3373, %v3375
          %3377 = vrot.lane.b32.xlu0 %v3372, 123
          %v3378 = vpop.permute.xlu0 %3377
          %3379 = vrot.lane.b32.xlu0 %v3374, 123
          %v3380 = vpop.permute.xlu0 %3379
          %3381 = vrot.lane.b32.xlu0 %v3376, 123
          %v3382 = vpop.permute.xlu0 %3381
          %v3386 = vadd.f32 %v3358, %v3378
          %v3387 = vadd.f32 %v3359, %v3378
          %v3388 = vadd.f32 %v3360, %v3380
          %v3389 = vadd.f32 %v3361, %v3380
          %v3390 = vadd.f32 %v3362, %v3382
          %v3391 = vadd.f32 %v3363, %v3382
          %s3392 = sld [smem:[#allocation6 + $0x60]]
          %v3393 = vstv %s3392
          %v3394 = vmul.f32 %v3393, %v1954
          %v3395 = vmul.f32 %v3393, %v1956
          %v3396 = vmul.f32 %v3393, %v1958
          %v3400 = vrot.slane %v3394, 6
          %v3401 = vrot.slane %v3395, 6
          %v3402 = vsel %vm500, %v3400, %v3401
          %v3403 = vrot.slane %v3396, 6
          %v3404 = vsel %vm500, %v3401, %v3403
          %3405 = vrot.lane.b32.xlu0 %v3400, 123
          %v3406 = vpop.permute.xlu0 %3405
          %3407 = vrot.lane.b32.xlu0 %v3402, 123
          %v3408 = vpop.permute.xlu0 %3407
          %3409 = vrot.lane.b32.xlu0 %v3404, 123
          %v3410 = vpop.permute.xlu0 %3409
          %v3414 = vadd.f32 %v3386, %v3406
          %v3415 = vadd.f32 %v3387, %v3406
          %v3416 = vadd.f32 %v3388, %v3408
          %v3417 = vadd.f32 %v3389, %v3408
          %v3418 = vadd.f32 %v3390, %v3410
          %v3419 = vadd.f32 %v3391, %v3410
          %s3420 = sld [smem:[#allocation6 + $0x37]]
          %v3421 = vstv %s3420
          %v3422 = vmul.f32 %v3421, %v1952
          %v3423 = vmul.f32 %v3421, %v1954
          %v3424 = vmul.f32 %v3421, %v1956
          %3428 = vrot.lane.b32.xlu0 %v3422, 122
          %v3429 = vpop.permute.xlu0 %3428
          %3430 = vrot.lane.b32.xlu0 %v3423, 122
          %v3431 = vpop.permute.xlu0 %3430
          %3432 = vrot.lane.b32.xlu0 %v3424, 122
          %v3433 = vpop.permute.xlu0 %3432
          %v3437 = vadd.f32 %v3414, %v3429
          %v3438 = vadd.f32 %v3415, %v3429
          %v3439 = vadd.f32 %v3416, %v3431
          %v3440 = vadd.f32 %v3417, %v3431
          %v3441 = vadd.f32 %v3418, %v3433
          %v3442 = vadd.f32 %v3419, %v3433
          %s3443 = sld [smem:[#allocation6 + $0x3e]]
          %v3444 = vstv %s3443
          %v3445 = vmul.f32 %v3444, %v1952
          %v3446 = vmul.f32 %v3444, %v1954
          %v3447 = vmul.f32 %v3444, %v1956
          %v3451 = vrot.slane %v3445, 1
          %v3452 = vrot.slane %v3446, 1
          %v3453 = vsel %vm323, %v3451, %v3452
          %v3454 = vrot.slane %v3447, 1
          %v3455 = vsel %vm323, %v3452, %v3454
          %3456 = vrot.lane.b32.xlu0 %v3453, 122
          %v3457 = vpop.permute.xlu0 %3456
          %3458 = vrot.lane.b32.xlu0 %v3455, 122
          %v3459 = vpop.permute.xlu0 %3458
          %3460 = vrot.lane.b32.xlu0 %v3454, 122
          %v3461 = vpop.permute.xlu0 %3460
          %v3465 = vadd.f32 %v3437, %v3457
          %v3466 = vadd.f32 %v3438, %v3457
          %v3467 = vadd.f32 %v3439, %v3459
          %v3468 = vadd.f32 %v3440, %v3459
          %v3469 = vadd.f32 %v3441, %v3461
          %v3470 = vadd.f32 %v3442, %v3461
          %s3471 = sld [smem:[#allocation6 + $0x45]]
          %v3472 = vstv %s3471
          %v3473 = vmul.f32 %v3472, %v1952
          %v3474 = vmul.f32 %v3472, %v1954
          %v3475 = vmul.f32 %v3472, %v1956
          %v3479 = vrot.slane %v3473, 2
          %v3480 = vrot.slane %v3474, 2
          %v3481 = vsel %vm360, %v3479, %v3480
          %v3482 = vrot.slane %v3475, 2
          %v3483 = vsel %vm360, %v3480, %v3482
          %3484 = vrot.lane.b32.xlu0 %v3481, 122
          %v3485 = vpop.permute.xlu0 %3484
          %3486 = vrot.lane.b32.xlu0 %v3483, 122
          %v3487 = vpop.permute.xlu0 %3486
          %3488 = vrot.lane.b32.xlu0 %v3482, 122
          %v3489 = vpop.permute.xlu0 %3488
          %v3493 = vadd.f32 %v3465, %v3485
          %v3494 = vadd.f32 %v3466, %v3485
          %v3495 = vadd.f32 %v3467, %v3487
          %v3496 = vadd.f32 %v3468, %v3487
          %v3497 = vadd.f32 %v3469, %v3489
          %v3498 = vadd.f32 %v3470, %v3489
          %s3499 = sld [smem:[#allocation6 + $0x4c]]
          %v3500 = vstv %s3499
          %v3501 = vmul.f32 %v3500, %v1954
          %v3502 = vmul.f32 %v3500, %v1956
          %v3505 = vrot.slane %v3501, 3
          %v3506 = vrot.slane %v3502, 3
          %v3507 = vsel %vm393, %v3505, %v3506
          %3508 = vrot.lane.b32.xlu0 %v3505, 122
          %v3509 = vpop.permute.xlu0 %3508
          %3510 = vrot.lane.b32.xlu0 %v3507, 122
          %v3511 = vpop.permute.xlu0 %3510
          %3512 = vrot.lane.b32.xlu0 %v3506, 122
          %v3513 = vpop.permute.xlu0 %3512
          %v3517 = vadd.f32 %v3493, %v3509
          %v3518 = vadd.f32 %v3494, %v3509
          %v3519 = vadd.f32 %v3495, %v3511
          %v3520 = vadd.f32 %v3496, %v3511
          %v3521 = vadd.f32 %v3497, %v3513
          %v3522 = vadd.f32 %v3498, %v3513
          %s3523 = sld [smem:[#allocation6 + $0x53]]
          %v3524 = vstv %s3523
          %v3525 = vmul.f32 %v3524, %v1954
          %v3526 = vmul.f32 %v3524, %v1956
          %v3527 = vmul.f32 %v3524, %v1958
          %v3531 = vrot.slane %v3525, 4
          %v3532 = vrot.slane %v3526, 4
          %v3533 = vsel %vm426, %v3531, %v3532
          %v3534 = vrot.slane %v3527, 4
          %v3535 = vsel %vm426, %v3532, %v3534
          %3536 = vrot.lane.b32.xlu0 %v3531, 122
          %v3537 = vpop.permute.xlu0 %3536
          %3538 = vrot.lane.b32.xlu0 %v3533, 122
          %v3539 = vpop.permute.xlu0 %3538
          %3540 = vrot.lane.b32.xlu0 %v3535, 122
          %v3541 = vpop.permute.xlu0 %3540
          %v3545 = vadd.f32 %v3517, %v3537
          %v3546 = vadd.f32 %v3518, %v3537
          %v3547 = vadd.f32 %v3519, %v3539
          %v3548 = vadd.f32 %v3520, %v3539
          %v3549 = vadd.f32 %v3521, %v3541
          %v3550 = vadd.f32 %v3522, %v3541
          %s3551 = sld [smem:[#allocation6 + $0x5a]]
          %v3552 = vstv %s3551
          %v3553 = vmul.f32 %v3552, %v1954
          %v3554 = vmul.f32 %v3552, %v1956
          %v3555 = vmul.f32 %v3552, %v1958
          %v3559 = vrot.slane %v3553, 5
          %v3560 = vrot.slane %v3554, 5
          %v3561 = vsel %vm463, %v3559, %v3560
          %v3562 = vrot.slane %v3555, 5
          %v3563 = vsel %vm463, %v3560, %v3562
          %3564 = vrot.lane.b32.xlu0 %v3559, 122
          %v3565 = vpop.permute.xlu0 %3564
          %3566 = vrot.lane.b32.xlu0 %v3561, 122
          %v3567 = vpop.permute.xlu0 %3566
          %3568 = vrot.lane.b32.xlu0 %v3563, 122
          %v3569 = vpop.permute.xlu0 %3568
          %v3573 = vadd.f32 %v3545, %v3565
          %v3574 = vadd.f32 %v3546, %v3565
          %v3575 = vadd.f32 %v3547, %v3567
          %v3576 = vadd.f32 %v3548, %v3567
          %v3577 = vadd.f32 %v3549, %v3569
          %v3578 = vadd.f32 %v3550, %v3569
          %s3579 = sld [smem:[#allocation6 + $0x61]]
          %v3580 = vstv %s3579
          %v3581 = vmul.f32 %v3580, %v1954
          %v3582 = vmul.f32 %v3580, %v1956
          %v3583 = vmul.f32 %v3580, %v1958
          %v3587 = vrot.slane %v3581, 6
          %v3588 = vrot.slane %v3582, 6
          %v3589 = vsel %vm500, %v3587, %v3588
          %v3590 = vrot.slane %v3583, 6
          %v3591 = vsel %vm500, %v3588, %v3590
          %3592 = vrot.lane.b32.xlu0 %v3587, 122
          %v3593 = vpop.permute.xlu0 %3592
          %3594 = vrot.lane.b32.xlu0 %v3589, 122
          %v3595 = vpop.permute.xlu0 %3594
          %3596 = vrot.lane.b32.xlu0 %v3591, 122
          %v3597 = vpop.permute.xlu0 %3596
          %v3601 = vadd.f32 %v3573, %v3593
          %v3602 = vadd.f32 %v3574, %v3593
          %v3603 = vadd.f32 %v3575, %v3595
          %v3604 = vadd.f32 %v3576, %v3595
          %v3605 = vadd.f32 %v3577, %v3597
          %v3606 = vadd.f32 %v3578, %v3597
          %v3607 = vxor.u32 %v3601, 2147483648
          %v3608 = vxor.u32 %v3602, 2147483648
          %v3609 = vxor.u32 %v3603, 2147483648
          %v3610 = vxor.u32 %v3604, 2147483648
          %v3611 = vxor.u32 %v3605, 2147483648
          %v3612 = vxor.u32 %v3606, 2147483648
          %v3613 = vmul.f32 %v3607, 1.442695
          %v3614 = vpow.pop %v3613
          %v3615 = vmul.f32 %v3608, 1.442695
          %v3616 = vpow.pop %v3615
          %v3617 = vmul.f32 %v3609, 1.442695
          %v3618 = vpow.pop %v3617
          %v3619 = vmul.f32 %v3610, 1.442695
          %v3620 = vpow.pop %v3619
          %v3621 = vmul.f32 %v3611, 1.442695
          %v3622 = vpow.pop %v3621
          %v3623 = vmul.f32 %v3612, 1.442695
          %v3624 = vpow.pop %v3623
          %v3625 = vadd.f32 %v3614, 1.0
          %v3626 = vadd.f32 %v3616, 1.0
          %v3627 = vadd.f32 %v3618, 1.0
          %v3628 = vadd.f32 %v3620, 1.0
          %v3629 = vadd.f32 %v3622, 1.0
          %v3630 = vadd.f32 %v3624, 1.0
          %v3631 = vrcp.pop %v3625
          %v3632 = vmul.f32 1.0, %v3631
          %v3633 = vrcp.pop %v3626
          %v3634 = vmul.f32 1.0, %v3633
          %v3635 = vrcp.pop %v3627
          %v3636 = vmul.f32 1.0, %v3635
          %v3637 = vrcp.pop %v3628
          %v3638 = vmul.f32 1.0, %v3637
          %v3639 = vrcp.pop %v3629
          %v3640 = vmul.f32 1.0, %v3639
          %v3641 = vrcp.pop %v3630
          %v3642 = vmul.f32 1.0, %v3641
          %3649 = vrot.lane.b32.xlu0 %v3632, 3
          %v3650 = vpop.permute.xlu0 %3649
          %3651 = vrot.lane.b32.xlu0 %v3634, 3
          %v3652 = vpop.permute.xlu0 %3651
          %3653 = vrot.lane.b32.xlu0 %v3636, 3
          %v3654 = vpop.permute.xlu0 %3653
          %3655 = vrot.lane.b32.xlu0 %v3638, 3
          %v3656 = vpop.permute.xlu0 %3655
          %3657 = vrot.lane.b32.xlu0 %v3640, 3
          %v3658 = vpop.permute.xlu0 %3657
          %3659 = vrot.lane.b32.xlu0 %v3642, 3
          %v3660 = vpop.permute.xlu0 %3659
          %vm3661 = vcmask 23552
          %v3662 = vsel %vm3661, %v3650, %v3652
          %v3663 = vsel %vm3661, %v3654, %v3656
          %v3664 = vsel %vm3661, %v3658, %v3660
          %vm3668 = vcmask 130053
          %3669 = vst.msk [vmem:[%s190 - $0x5] sm:$0xe0] %vm3668, %v3662
          %3670 = vst.msk [vmem:[%s190 + $0x3] sm:$0xff] %vm211, %v3663
          %vm3671 = vcmask 126976
          %3672 = vst.msk [vmem:[%s190 + $0xb] sm:$0x1f] %vm3671, %v3664
        $region44: #{tpu_custom_call.1} parent=27 // pred_fallthru
          _
        %s3673 = sand.u32 %s89, 1
        %s3674 = scalar_lea.sflag [#allocation8], %s3673
        %s3675 = sand.u32 %s89, 1
        %s3676 = smul.addr %s3675, 16
        %s3677 = scalar_lea.vmem [#allocation11], %s3676
        // Predicated region
        $region45: #{tpu_custom_call.1} parent=27 // pred_check
          %p3678 = pneg %p99
        $region46: #{tpu_custom_call.1} parent=27 // pred_check_branch
          %3680 = sbr.rel (%p3678) target = $region48
        $region47: #{tpu_custom_call.1} parent=27 // pred_region
          %s3682 = ssub.s32 256, 256
          %3683 = vsyncadd %s3674, %s3682
          %s3684 = smul.addr %s24, 2
          %s3685 = smul.addr %s3684, 128
          %s3686 = scalar_lea.hbm %s2, %s3685
          %s3687 = sshll.u32 %s3677, 4
          %s3688 = int_to_ptr.vmem [resolvable:$true] %s3687
          %3693 = dma.vmem_to_hbm [thread:$0]  %s3688, 256, %s3686, %s3674, 128, 128, 8
        $region48: #{tpu_custom_call.1} parent=27 // pred_fallthru
          _
      $region28: #{tpu_custom_call.1} parent=5 // pred_fallthru
        _
      %p3694 = scmp.le.s32.totalorder 2, %s15
      // Predicated region
      $region49: #{tpu_custom_call.1} parent=5 // pred_check
        %p3695 = pneg %p3694
      $region50: #{tpu_custom_call.1} parent=5 // pred_check_branch
        %3697 = sbr.rel (%p3695) target = $region52
      $region51: #{tpu_custom_call.1} parent=5 // pred_region
        %s3698 = ssub.s32 %s15, 2
        // Predicated region
        $region53: #{tpu_custom_call.1} parent=51 // pred_check
          %p3699 = pneg %p105
        $region54: #{tpu_custom_call.1} parent=51 // pred_check_branch
          %3701 = sbr.rel (%p3699) target = $region56
        $region55: #{tpu_custom_call.1} parent=51 // pred_region
          %s3702 = sand.u32 %s90, 1
          %s3703 = scalar_lea.sflag [#allocation8], %s3702
          %s3704 = sand.u32 %s90, 1
          %s3705 = smul.addr %s3704, 16
          %s3706 = scalar_lea.vmem [#allocation11], %s3705
          %3707 = dma.done %s3703, 256
        $region56: #{tpu_custom_call.1} parent=51 // pred_fallthru
          _
      $region52: #{tpu_custom_call.1} parent=5 // pred_fallthru
        _
    $region6: #{tpu_custom_call.1} parent=1 // loop_footer
      %s19 = sadd.s32 1, %s15
    $region7: #{tpu_custom_call.1} parent=1 // loop_footer_branch
      %14 = sbr.rel target = $region3
    $region8: #{tpu_custom_call.1} parent=1 // loop_exit
      _
    %3708 = vsyncpa [#allocation7], 1
    %s3709 = scalar_lea.sflag [#allocation7], 1
    %3710 = vsyncpa %s3709, 1
    %3711 = vsyncpa [#allocation8], 1
    %s3712 = scalar_lea.sflag [#allocation8], 1
    %3713 = vsyncpa %s3712, 1
    %3714 = vsyncpa [#allocation9], 1
    %s3715 = scalar_lea.sflag [#allocation9], 1
    %3716 = vsyncpa %s3715, 1

</llo_original>
